<compile_context>
chip_gen: v7x
topology: tpu7x:2x2x1
jax: 0.10.0
libtpu: 0.0.40
codegen_flags: <defaults>
</compile_context>

<pallas_src>
import jax
import jax.numpy as jnp
from jax.experimental import pallas as pl
from jax.experimental.pallas import tpu as pltpu

IN_DIM = 2        # input features
H_DIM = 400       # PyTorch hidden width
H_PAD = 512       # hidden width padded to an MXU-friendly multiple of 128/256
OUT_DIM = 1
TILE_B_MAX = 512  # batch rows (lanes) per grid step (swept 256 -> 512)
LANE = 128        # minimum lane tile for the small-batch path


def _discriminator_kernel(x_ref,
                          w1_ref, b1_ref,
                          w2_ref, b2_ref,
                          w3_ref, b3_ref,
                          w4_ref, b4_ref,
                          o_ref):
    """One (H, tile_b) batch tile of the 4-layer MLP + sigmoid."""
    x = x_ref[...].astype(jnp.float32)                       # (2, tile_b)
    w1 = w1_ref[...]                                          # (H_PAD, 2) f32

    # Layer 1: K=2 -> two VPU broadcast-FMAs (outer products), fused f32
    # bias+ReLU epilogue, materialize only the bf16 activation.
    h = jnp.maximum(w1[:, 0:1] * x[0:1, :]
                    + w1[:, 1:2] * x[1:2, :]
                    + b1_ref[...], 0.0).astype(jnp.bfloat16)  # (H_PAD, tile_b)

    # Layer 2: bf16 MXU, f32 accumulation, fused epilogue -> bf16 activation.
    h = jnp.maximum(jnp.dot(w2_ref[...], h,
                            preferred_element_type=jnp.float32)
                    + b2_ref[...], 0.0).astype(jnp.bfloat16)

    # Layer 3: bf16 MXU, f32 accumulation; keep f32 (feeds the VPU reduce).
    h = jnp.maximum(jnp.dot(w3_ref[...], h,
                            preferred_element_type=jnp.float32)
                    + b3_ref[...], 0.0)                       # (H_PAD, tile_b) f32

    # Layer 4 + sigmoid: M=1 -> VPU multiply + sublane (axis 0) reduce on the
    # XLU instead of a 1-row MXU pass; output is a lane-dense (1, tile_b) row.
    z = jnp.sum(w4_ref[...] * h, axis=0, keepdims=True) + b4_ref[...]
    o_ref[...] = jax.nn.sigmoid(z).astype(o_ref.dtype)


@jax.jit
def discriminator_forward(x, prepped_params):
    """x: (N, 2) float32 -> (N,) float32 (matches PyTorch .view(-1))."""
    w1, b1, w2, b2, w3, b3, w4, b4 = prepped_params
    n = x.shape[0]

    # Small-batch path: shrink the lane tile to the 128-lane minimum instead
    # of computing a full TILE_B_MAX-wide tile; large batches use TILE_B_MAX.
    tile_b = min(TILE_B_MAX, max(LANE, pl.cdiv(n, LANE) * LANE))
    n_pad = pl.cdiv(n, tile_b) * tile_b

    xt = x.astype(jnp.float32).T                              # (2, N): batch on lanes
    if n_pad != n:
        xt = jnp.pad(xt, ((0, 0), (0, n_pad - n)))            # junk cols, sliced off

    grid = (n_pad // tile_b,)

    # Weights/biases: full-array blocks with constant index_map -> fetched once
    # and kept resident in VMEM for the whole grid.
    const = lambda shape: pl.BlockSpec(shape, lambda i: (0, 0))

    out = pl.pallas_call(
        _discriminator_kernel,
        out_shape=jax.ShapeDtypeStruct((1, n_pad), jnp.float32),
        grid_spec=pltpu.PrefetchScalarGridSpec(
            num_scalar_prefetch=0,
            grid=grid,
            in_specs=[
                pl.BlockSpec((IN_DIM, tile_b), lambda i: (0, i)),   # x tile
                const((H_PAD, IN_DIM)),  const((H_PAD, 1)),          # layer 1
                const((H_PAD, H_PAD)),   const((H_PAD, 1)),          # layer 2
                const((H_PAD, H_PAD)),   const((H_PAD, 1)),          # layer 3
                const((H_PAD, OUT_DIM)), const((OUT_DIM, 1)),        # layer 4
            ],
            out_specs=pl.BlockSpec((1, tile_b), lambda i: (0, i)),   # lane-dense row
        ),
        compiler_params=pltpu.CompilerParams(
            dimension_semantics=("parallel",)),
    )(xt, w1, b1, w2, b2, w3, b3, w4, b4)

    return out.reshape(-1)[:n]


def init_params(key):
    """PyTorch nn.Linear default init, PyTorch layout: W (out, in), b (out,).
    U(-1/sqrt(fan_in), 1/sqrt(fan_in)) for both weight and bias."""
    dims = [(H_DIM, IN_DIM), (H_DIM, H_DIM), (H_DIM, H_DIM), (OUT_DIM, H_DIM)]
    params = []
    for (fan_out, fan_in) in dims:
        key, kw, kb = jax.random.split(key, 3)
        bound = 1.0 / (float(fan_in) ** 0.5)
        w = jax.random.uniform(kw, (fan_out, fan_in), jnp.float32, -bound, bound)
        b = jax.random.uniform(kb, (fan_out,), jnp.float32, -bound, bound)
        params += [w, b]
    return tuple(params)


def prepare_params(params):
    """Pad hidden dim 400 -> 512 (zeros), reshape biases to columns, cast the
    big MXU weights to bf16, and ship w4 as an f32 column for the VPU reduce.

    Correctness invariant: padded channels stay exactly 0 only because the
    padded bias entries are 0 and ReLU(0) == 0.  If the activation or init
    ever changes so that f(0) != 0, padded channels would leak into the
    result."""
    w1, b1, w2, b2, w3, b3, w4, b4 = params
    ph = H_PAD - H_DIM
    assert ph >= 0
    w1p = jnp.pad(w1, ((0, ph), (0, 0))).astype(jnp.float32)               # (512, 2)
    b1p = jnp.pad(b1.reshape(-1, 1), ((0, ph), (0, 0))).astype(jnp.float32)
    w2p = jnp.pad(w2, ((0, ph), (0, ph))).astype(jnp.bfloat16)             # (512, 512)
    b2p = jnp.pad(b2.reshape(-1, 1), ((0, ph), (0, 0))).astype(jnp.float32)
    w3p = jnp.pad(w3, ((0, ph), (0, ph))).astype(jnp.bfloat16)             # (512, 512)
    b3p = jnp.pad(b3.reshape(-1, 1), ((0, ph), (0, 0))).astype(jnp.float32)
    # Layer 4 weight as an (H_PAD, 1) f32 column -> VPU multiply + XLU reduce.
    w4p = jnp.pad(w4.reshape(-1, 1), ((0, ph), (0, 0))).astype(jnp.float32)  # (512, 1)
    b4p = b4.reshape(1, 1).astype(jnp.float32)                              # (1, 1)
    return (w1p, b1p, w2p, b2p, w3p, b3p, w4p, b4p)


def _reference_forward(x, params):
    """Plain-JAX f32 reference (PyTorch-layout params) for correctness check."""
    w1, b1, w2, b2, w3, b3, w4, b4 = params
    h = jnp.maximum(x @ w1.T + b1, 0.0)
    h = jnp.maximum(h @ w2.T + b2, 0.0)
    h = jnp.maximum(h @ w3.T + b3, 0.0)
    return jax.nn.sigmoid(h @ w4.T + b4).reshape(-1)


if __name__ == "__main__":
    key = jax.random.PRNGKey(0)
    key, kx = jax.random.split(key)

    batch = 16
    x = jax.random.normal(kx, (batch, IN_DIM), dtype=jnp.float32)

    params = init_params(key)          # PyTorch-layout f32 params
    prepped = prepare_params(params)   # padded / bf16 kernel params

    out = discriminator_forward(x, prepped)
    out = jax.block_until_ready(out)

    ref = _reference_forward(x, params)
    assert out.shape == (batch,), out.shape
    # bf16 weights/activations in the kernel vs f32 reference -> loosened tol.
    assert jnp.allclose(out, ref, atol=1e-2, rtol=1e-2), (out, ref)

    print("KERNEL_OK")
</pallas_src>

<mosaic_0001>
module attributes {stable_mosaic.version = 11 : i64} {
  func.func @_discriminator_kernel(%arg0: i32, %arg1: memref<2x128xf32, #tpu.memory_space<vmem>>, %arg2: memref<512x2xf32, #tpu.memory_space<vmem>>, %arg3: memref<512x1xf32, #tpu.memory_space<vmem>>, %arg4: memref<512x512xbf16, #tpu.memory_space<vmem>>, %arg5: memref<512x1xf32, #tpu.memory_space<vmem>>, %arg6: memref<512x512xbf16, #tpu.memory_space<vmem>>, %arg7: memref<512x1xf32, #tpu.memory_space<vmem>>, %arg8: memref<512x1xf32, #tpu.memory_space<vmem>>, %arg9: memref<1x1xf32, #tpu.memory_space<vmem>>, %arg10: memref<1x128xf32, #tpu.memory_space<vmem>>) attributes {dimension_semantics = [#tpu.dimension_semantics<parallel>], iteration_bounds = array<i64: 1>, scalar_prefetch = 0 : i64, scratch_operands = 0 : i64, tpu.core_type = #tpu.core_type<tc>, window_params = [{transform_indices = @transform_0, window_bounds = array<i64: 2, 128>}, {pipeline_mode = #tpu.pipeline_mode<synchronous>, transform_indices = @transform_1, window_bounds = array<i64: 512, 2>}, {pipeline_mode = #tpu.pipeline_mode<synchronous>, transform_indices = @transform_2, window_bounds = array<i64: 512, 1>}, {pipeline_mode = #tpu.pipeline_mode<synchronous>, transform_indices = @transform_3, window_bounds = array<i64: 512, 512>}, {pipeline_mode = #tpu.pipeline_mode<synchronous>, transform_indices = @transform_4, window_bounds = array<i64: 512, 1>}, {pipeline_mode = #tpu.pipeline_mode<synchronous>, transform_indices = @transform_5, window_bounds = array<i64: 512, 512>}, {pipeline_mode = #tpu.pipeline_mode<synchronous>, transform_indices = @transform_6, window_bounds = array<i64: 512, 1>}, {pipeline_mode = #tpu.pipeline_mode<synchronous>, transform_indices = @transform_7, window_bounds = array<i64: 512, 1>}, {pipeline_mode = #tpu.pipeline_mode<synchronous>, transform_indices = @transform_8, window_bounds = array<i64: 1, 1>}, {transform_indices = @transform_9, window_bounds = array<i64: 1, 128>}]} {
    %c0 = arith.constant 0 : index
    %c0_0 = arith.constant 0 : index
    %0 = vector.load %arg1[%c0, %c0_0] : memref<2x128xf32, #tpu.memory_space<vmem>>, vector<2x128xf32>
    %c0_1 = arith.constant 0 : index
    %c0_2 = arith.constant 0 : index
    %1 = vector.load %arg2[%c0_1, %c0_2] : memref<512x2xf32, #tpu.memory_space<vmem>>, vector<512x2xf32>
    %2 = vector.extract_strided_slice %1 {offsets = [0, 0], sizes = [512, 1], strides = [1, 1]} : vector<512x2xf32> to vector<512x1xf32>
    %3 = vector.extract_strided_slice %0 {offsets = [0, 0], sizes = [1, 128], strides = [1, 1]} : vector<2x128xf32> to vector<1x128xf32>
    %4 = vector.broadcast %2 : vector<512x1xf32> to vector<512x128xf32>
    %5 = vector.broadcast %3 : vector<1x128xf32> to vector<512x128xf32>
    %6 = arith.mulf %4, %5 : vector<512x128xf32>
    %7 = vector.extract_strided_slice %1 {offsets = [0, 1], sizes = [512, 1], strides = [1, 1]} : vector<512x2xf32> to vector<512x1xf32>
    %8 = vector.extract_strided_slice %0 {offsets = [1, 0], sizes = [1, 128], strides = [1, 1]} : vector<2x128xf32> to vector<1x128xf32>
    %9 = vector.broadcast %7 : vector<512x1xf32> to vector<512x128xf32>
    %10 = vector.broadcast %8 : vector<1x128xf32> to vector<512x128xf32>
    %11 = arith.mulf %9, %10 : vector<512x128xf32>
    %12 = arith.addf %6, %11 : vector<512x128xf32>
    %c0_3 = arith.constant 0 : index
    %c0_4 = arith.constant 0 : index
    %13 = vector.load %arg3[%c0_3, %c0_4] : memref<512x1xf32, #tpu.memory_space<vmem>>, vector<512x1xf32>
    %14 = vector.broadcast %13 : vector<512x1xf32> to vector<512x128xf32>
    %15 = arith.addf %12, %14 : vector<512x128xf32>
    %cst = arith.constant 0.000000e+00 : f32
    %16 = vector.broadcast %cst : f32 to vector<512x128xf32>
    %17 = arith.maximumf %15, %16 : vector<512x128xf32>
    %18 = arith.truncf %17 : vector<512x128xf32> to vector<512x128xbf16>
    %c0_5 = arith.constant 0 : index
    %c0_6 = arith.constant 0 : index
    %19 = vector.load %arg4[%c0_5, %c0_6] : memref<512x512xbf16, #tpu.memory_space<vmem>>, vector<512x512xbf16>
    %cst_7 = arith.constant dense<0.000000e+00> : vector<512x128xf32>
    %20 = tpu.matmul %19, %18, %cst_7 {dimension_numbers = #tpu.dot_dimension_numbers<[1], [0], [0], [1], [0, 0, 1, 1], [], []>} : vector<512x512xbf16>, vector<512x128xbf16>, vector<512x128xf32> -> vector<512x128xf32>
    %c0_8 = arith.constant 0 : index
    %c0_9 = arith.constant 0 : index
    %21 = vector.load %arg5[%c0_8, %c0_9] : memref<512x1xf32, #tpu.memory_space<vmem>>, vector<512x1xf32>
    %22 = vector.broadcast %21 : vector<512x1xf32> to vector<512x128xf32>
    %23 = arith.addf %20, %22 : vector<512x128xf32>
    %cst_10 = arith.constant 0.000000e+00 : f32
    %24 = vector.broadcast %cst_10 : f32 to vector<512x128xf32>
    %25 = arith.maximumf %23, %24 : vector<512x128xf32>
    %26 = arith.truncf %25 : vector<512x128xf32> to vector<512x128xbf16>
    %c0_11 = arith.constant 0 : index
    %c0_12 = arith.constant 0 : index
    %27 = vector.load %arg6[%c0_11, %c0_12] : memref<512x512xbf16, #tpu.memory_space<vmem>>, vector<512x512xbf16>
    %cst_13 = arith.constant dense<0.000000e+00> : vector<512x128xf32>
    %28 = tpu.matmul %27, %26, %cst_13 {dimension_numbers = #tpu.dot_dimension_numbers<[1], [0], [0], [1], [0, 0, 1, 1], [], []>} : vector<512x512xbf16>, vector<512x128xbf16>, vector<512x128xf32> -> vector<512x128xf32>
    %c0_14 = arith.constant 0 : index
    %c0_15 = arith.constant 0 : index
    %29 = vector.load %arg7[%c0_14, %c0_15] : memref<512x1xf32, #tpu.memory_space<vmem>>, vector<512x1xf32>
    %30 = vector.broadcast %29 : vector<512x1xf32> to vector<512x128xf32>
    %31 = arith.addf %28, %30 : vector<512x128xf32>
    %cst_16 = arith.constant 0.000000e+00 : f32
    %32 = vector.broadcast %cst_16 : f32 to vector<512x128xf32>
    %33 = arith.maximumf %31, %32 : vector<512x128xf32>
    %c0_17 = arith.constant 0 : index
    %c0_18 = arith.constant 0 : index
    %34 = vector.load %arg8[%c0_17, %c0_18] : memref<512x1xf32, #tpu.memory_space<vmem>>, vector<512x1xf32>
    %35 = vector.broadcast %34 : vector<512x1xf32> to vector<512x128xf32>
    %36 = arith.mulf %35, %33 : vector<512x128xf32>
    %cst_19 = arith.constant dense<0.000000e+00> : vector<128xf32>
    %37 = vector.multi_reduction <add>, %36, %cst_19 [0] : vector<512x128xf32> to vector<128xf32>
    %38 = vector.shape_cast %37 : vector<128xf32> to vector<1x128xf32>
    %c0_20 = arith.constant 0 : index
    %c0_21 = arith.constant 0 : index
    %39 = vector.load %arg9[%c0_20, %c0_21] : memref<1x1xf32, #tpu.memory_space<vmem>>, vector<1x1xf32>
    %40 = vector.broadcast %39 : vector<1x1xf32> to vector<1x128xf32>
    %41 = arith.addf %38, %40 : vector<1x128xf32>
    %42 = arith.negf %41 : vector<1x128xf32>
    %43 = math.exp %42 : vector<1x128xf32>
    %cst_22 = arith.constant 1.000000e+00 : f32
    %44 = vector.broadcast %cst_22 : f32 to vector<1x128xf32>
    %45 = arith.addf %44, %43 : vector<1x128xf32>
    %46 = arith.divf %44, %45 : vector<1x128xf32>
    %c0_23 = arith.constant 0 : index
    %c0_24 = arith.constant 0 : index
    %47 = vector.load %arg10[%c0_23, %c0_24] : memref<1x128xf32, #tpu.memory_space<vmem>>, vector<1x128xf32>
    tpu.vector_store %arg10[%c0_23, %c0_24], %46 {strides = array<i32>} : memref<1x128xf32, #tpu.memory_space<vmem>>, vector<1x128xf32>,
    return
  }
  func.func @transform_0(%arg0: i32) -> (i32, i32) {
    %c0_i32 = arith.constant 0 : i32
    %c0_i32_0 = arith.constant 0 : i32
    return %c0_i32, %arg0 : i32, i32
  }
  func.func @transform_1(%arg0: i32) -> (i32, i32) {
    %c0_i32 = arith.constant 0 : i32
    %c0_i32_0 = arith.constant 0 : i32
    %c0_i32_1 = arith.constant 0 : i32
    return %c0_i32, %c0_i32_0 : i32, i32
  }
  func.func @transform_2(%arg0: i32) -> (i32, i32) {
    %c0_i32 = arith.constant 0 : i32
    %c0_i32_0 = arith.constant 0 : i32
    %c0_i32_1 = arith.constant 0 : i32
    return %c0_i32, %c0_i32_0 : i32, i32
  }
  func.func @transform_3(%arg0: i32) -> (i32, i32) {
    %c0_i32 = arith.constant 0 : i32
    %c0_i32_0 = arith.constant 0 : i32
    %c0_i32_1 = arith.constant 0 : i32
    return %c0_i32, %c0_i32_0 : i32, i32
  }
  func.func @transform_4(%arg0: i32) -> (i32, i32) {
    %c0_i32 = arith.constant 0 : i32
    %c0_i32_0 = arith.constant 0 : i32
    %c0_i32_1 = arith.constant 0 : i32
    return %c0_i32, %c0_i32_0 : i32, i32
  }
  func.func @transform_5(%arg0: i32) -> (i32, i32) {
    %c0_i32 = arith.constant 0 : i32
    %c0_i32_0 = arith.constant 0 : i32
    %c0_i32_1 = arith.constant 0 : i32
    return %c0_i32, %c0_i32_0 : i32, i32
  }
  func.func @transform_6(%arg0: i32) -> (i32, i32) {
    %c0_i32 = arith.constant 0 : i32
    %c0_i32_0 = arith.constant 0 : i32
    %c0_i32_1 = arith.constant 0 : i32
    return %c0_i32, %c0_i32_0 : i32, i32
  }
  func.func @transform_7(%arg0: i32) -> (i32, i32) {
    %c0_i32 = arith.constant 0 : i32
    %c0_i32_0 = arith.constant 0 : i32
    %c0_i32_1 = arith.constant 0 : i32
    return %c0_i32, %c0_i32_0 : i32, i32
  }
  func.func @transform_8(%arg0: i32) -> (i32, i32) {
    %c0_i32 = arith.constant 0 : i32
    %c0_i32_0 = arith.constant 0 : i32
    %c0_i32_1 = arith.constant 0 : i32
    return %c0_i32, %c0_i32_0 : i32, i32
  }
  func.func @transform_9(%arg0: i32) -> (i32, i32) {
    %c0_i32 = arith.constant 0 : i32
    %c0_i32_0 = arith.constant 0 : i32
    return %c0_i32, %arg0 : i32, i32
  }
}

</mosaic_0001>

<llo_original>
// kernel: discriminator_forward.1
$region0: #{discriminator_forward.1}
  #allocation0 [shape = 'u32[]', space=smem, size = 0x4, offset = 0x4, fixed_abs, tag = 'smem constant byte address 0x4 - core index']
  #allocation1 [shape = 'u32[144,128]{1,0:T(1,128)}', space=vmem, size = 0x12000, scoped, tag = 'internal scratch']
  #allocation2 [shape = 'f32[1,1]{1,0:T(1,128)S(1)}', space=vmem, size = 0x200, scoped, tag = 'scoped memory for discriminator_forward.1']
  %s0 = inlined_call_operand.vmem [shape: f32[2,128], index: 0, kind: input, shape index: {}]
  %s1 = inlined_call_operand.vmem [shape: f32[512,2], index: 1, kind: input, shape index: {}]
  %s2 = inlined_call_operand.vmem [shape: f32[512,1], index: 2, kind: input, shape index: {}]
  %s3 = inlined_call_operand.vmem [shape: bf16[512,512], index: 3, kind: input, shape index: {}]
  %s4 = inlined_call_operand.vmem [shape: f32[512,1], index: 4, kind: input, shape index: {}]
  %s5 = inlined_call_operand.vmem [shape: bf16[512,512], index: 5, kind: input, shape index: {}]
  %s6 = inlined_call_operand.vmem [shape: f32[512,1], index: 6, kind: input, shape index: {}]
  %s7 = inlined_call_operand.vmem [shape: f32[512,1], index: 7, kind: input, shape index: {}]
  %s8 = inlined_call_operand.<no memory space> [shape: f32[1,1], index: 8, kind: input, shape index: {}]
  %s9 = inlined_call_operand.vmem [shape: f32[1,128], index: 9, kind: output, shape index: {}]
  %s10 = sld [smem:[#allocation0]]
  $region46: #{discriminator_forward.1} parent=0
    _
  %s12 = ssub.s32 1, %s10
  %s13 = scalar_select 0, %s12, %s10
  %v14 = vstv %s8
  %15 = vst [vmem:[#allocation2] sm:$0x1] %v14
  // Predicated region
  $region2: #{discriminator_forward.1} parent=0 // pred_check
    _
  $region3: #{discriminator_forward.1} parent=0 // pred_check_branch
    %17 = sbr.rel (0) target = $region5
  $region4: #{discriminator_forward.1} parent=0 // pred_region
    _
  $region5: #{discriminator_forward.1} parent=0 // pred_fallthru
    _
  // Predicated region
  $region6: #{discriminator_forward.1} parent=0 // pred_check
    _
  $region7: #{discriminator_forward.1} parent=0 // pred_check_branch
    %19 = sbr.rel (0) target = $region9
  $region8: #{discriminator_forward.1} parent=0 // pred_region
    _
  $region9: #{discriminator_forward.1} parent=0 // pred_fallthru
    _
  // Predicated region
  $region10: #{discriminator_forward.1} parent=0 // pred_check
    _
  $region11: #{discriminator_forward.1} parent=0 // pred_check_branch
    %21 = sbr.rel (0) target = $region13
  $region12: #{discriminator_forward.1} parent=0 // pred_region
    _
  $region13: #{discriminator_forward.1} parent=0 // pred_fallthru
    _
  // Predicated region
  $region14: #{discriminator_forward.1} parent=0 // pred_check
    _
  $region15: #{discriminator_forward.1} parent=0 // pred_check_branch
    %23 = sbr.rel (0) target = $region17
  $region16: #{discriminator_forward.1} parent=0 // pred_region
    _
  $region17: #{discriminator_forward.1} parent=0 // pred_fallthru
    _
  // Predicated region
  $region18: #{discriminator_forward.1} parent=0 // pred_check
    _
  $region19: #{discriminator_forward.1} parent=0 // pred_check_branch
    %25 = sbr.rel (0) target = $region21
  $region20: #{discriminator_forward.1} parent=0 // pred_region
    _
  $region21: #{discriminator_forward.1} parent=0 // pred_fallthru
    _
  // Predicated region
  $region22: #{discriminator_forward.1} parent=0 // pred_check
    _
  $region23: #{discriminator_forward.1} parent=0 // pred_check_branch
    %27 = sbr.rel (0) target = $region25
  $region24: #{discriminator_forward.1} parent=0 // pred_region
    _
  $region25: #{discriminator_forward.1} parent=0 // pred_fallthru
    _
  // Predicated region
  $region26: #{discriminator_forward.1} parent=0 // pred_check
    _
  $region27: #{discriminator_forward.1} parent=0 // pred_check_branch
    %29 = sbr.rel (0) target = $region29
  $region28: #{discriminator_forward.1} parent=0 // pred_region
    _
  $region29: #{discriminator_forward.1} parent=0 // pred_fallthru
    _
  // Predicated region
  $region30: #{discriminator_forward.1} parent=0 // pred_check
    _
  $region31: #{discriminator_forward.1} parent=0 // pred_check_branch
    %31 = sbr.rel (0) target = $region33
  $region32: #{discriminator_forward.1} parent=0 // pred_region
    _
  $region33: #{discriminator_forward.1} parent=0 // pred_fallthru
    _
  // Predicated region
  $region34: #{discriminator_forward.1} parent=0 // pred_check
    _
  $region35: #{discriminator_forward.1} parent=0 // pred_check_branch
    %33 = sbr.rel (0) target = $region37
  $region36: #{discriminator_forward.1} parent=0 // pred_region
    _
  $region37: #{discriminator_forward.1} parent=0 // pred_fallthru
    _
  %v35 = vld [vmem:[%s0] sm:$0x3]
  %v36 = vld [vmem:[%s1] sm:$0xff]
  %v37 = vld [vmem:[%s1 + $0x8] sm:$0xff]
  %v38 = vld [vmem:[%s1 + $0x10] sm:$0xff]
  %v39 = vld [vmem:[%s1 + $0x18] sm:$0xff]
  %v40 = vld [vmem:[%s1 + $0x20] sm:$0xff]
  %v41 = vld [vmem:[%s1 + $0x28] sm:$0xff]
  %v42 = vld [vmem:[%s1 + $0x30] sm:$0xff]
  %v43 = vld [vmem:[%s1 + $0x38] sm:$0xff]
  %v44 = vld [vmem:[%s1 + $0x40] sm:$0xff]
  %v45 = vld [vmem:[%s1 + $0x48] sm:$0xff]
  %v46 = vld [vmem:[%s1 + $0x50] sm:$0xff]
  %v47 = vld [vmem:[%s1 + $0x58] sm:$0xff]
  %v48 = vld [vmem:[%s1 + $0x60] sm:$0xff]
  %v49 = vld [vmem:[%s1 + $0x68] sm:$0xff]
  %v50 = vld [vmem:[%s1 + $0x70] sm:$0xff]
  %v51 = vld [vmem:[%s1 + $0x78] sm:$0xff]
  %v52 = vld [vmem:[%s1 + $0x80] sm:$0xff]
  %v53 = vld [vmem:[%s1 + $0x88] sm:$0xff]
  %v54 = vld [vmem:[%s1 + $0x90] sm:$0xff]
  %v55 = vld [vmem:[%s1 + $0x98] sm:$0xff]
  %v56 = vld [vmem:[%s1 + $0xa0] sm:$0xff]
  %v57 = vld [vmem:[%s1 + $0xa8] sm:$0xff]
  %v58 = vld [vmem:[%s1 + $0xb0] sm:$0xff]
  %v59 = vld [vmem:[%s1 + $0xb8] sm:$0xff]
  %v60 = vld [vmem:[%s1 + $0xc0] sm:$0xff]
  %v61 = vld [vmem:[%s1 + $0xc8] sm:$0xff]
  %v62 = vld [vmem:[%s1 + $0xd0] sm:$0xff]
  %v63 = vld [vmem:[%s1 + $0xd8] sm:$0xff]
  %v64 = vld [vmem:[%s1 + $0xe0] sm:$0xff]
  %v65 = vld [vmem:[%s1 + $0xe8] sm:$0xff]
  %v66 = vld [vmem:[%s1 + $0xf0] sm:$0xff]
  %v67 = vld [vmem:[%s1 + $0xf8] sm:$0xff]
  %v68 = vld [vmem:[%s1 + $0x100] sm:$0xff]
  %v69 = vld [vmem:[%s1 + $0x108] sm:$0xff]
  %v70 = vld [vmem:[%s1 + $0x110] sm:$0xff]
  %v71 = vld [vmem:[%s1 + $0x118] sm:$0xff]
  %v72 = vld [vmem:[%s1 + $0x120] sm:$0xff]
  %v73 = vld [vmem:[%s1 + $0x128] sm:$0xff]
  %v74 = vld [vmem:[%s1 + $0x130] sm:$0xff]
  %v75 = vld [vmem:[%s1 + $0x138] sm:$0xff]
  %v76 = vld [vmem:[%s1 + $0x140] sm:$0xff]
  %v77 = vld [vmem:[%s1 + $0x148] sm:$0xff]
  %v78 = vld [vmem:[%s1 + $0x150] sm:$0xff]
  %v79 = vld [vmem:[%s1 + $0x158] sm:$0xff]
  %v80 = vld [vmem:[%s1 + $0x160] sm:$0xff]
  %v81 = vld [vmem:[%s1 + $0x168] sm:$0xff]
  %v82 = vld [vmem:[%s1 + $0x170] sm:$0xff]
  %v83 = vld [vmem:[%s1 + $0x178] sm:$0xff]
  %v84 = vld [vmem:[%s1 + $0x180] sm:$0xff]
  %v85 = vld [vmem:[%s1 + $0x188] sm:$0xff]
  %v86 = vld [vmem:[%s1 + $0x190] sm:$0xff]
  %v87 = vld [vmem:[%s1 + $0x198] sm:$0xff]
  %v88 = vld [vmem:[%s1 + $0x1a0] sm:$0xff]
  %v89 = vld [vmem:[%s1 + $0x1a8] sm:$0xff]
  %v90 = vld [vmem:[%s1 + $0x1b0] sm:$0xff]
  %v91 = vld [vmem:[%s1 + $0x1b8] sm:$0xff]
  %v92 = vld [vmem:[%s1 + $0x1c0] sm:$0xff]
  %v93 = vld [vmem:[%s1 + $0x1c8] sm:$0xff]
  %v94 = vld [vmem:[%s1 + $0x1d0] sm:$0xff]
  %v95 = vld [vmem:[%s1 + $0x1d8] sm:$0xff]
  %v96 = vld [vmem:[%s1 + $0x1e0] sm:$0xff]
  %v97 = vld [vmem:[%s1 + $0x1e8] sm:$0xff]
  %v98 = vld [vmem:[%s1 + $0x1f0] sm:$0xff]
  %v99 = vld [vmem:[%s1 + $0x1f8] sm:$0xff]
  %101 = vset.pattern.permute.xlu0 0
  %102 = vperm.xlu0 %101, %v36
  %v103 = vpop.permute.xlu0 %102
  %106 = vset.pattern.permute.xlu0 0
  %107 = vperm.xlu0 %106, %v37
  %v108 = vpop.permute.xlu0 %107
  %111 = vset.pattern.permute.xlu0 0
  %112 = vperm.xlu0 %111, %v38
  %v113 = vpop.permute.xlu0 %112
  %116 = vset.pattern.permute.xlu0 0
  %117 = vperm.xlu0 %116, %v39
  %v118 = vpop.permute.xlu0 %117
  %121 = vset.pattern.permute.xlu0 0
  %122 = vperm.xlu0 %121, %v40
  %v123 = vpop.permute.xlu0 %122
  %126 = vset.pattern.permute.xlu0 0
  %127 = vperm.xlu0 %126, %v41
  %v128 = vpop.permute.xlu0 %127
  %131 = vset.pattern.permute.xlu0 0
  %132 = vperm.xlu0 %131, %v42
  %v133 = vpop.permute.xlu0 %132
  %136 = vset.pattern.permute.xlu0 0
  %137 = vperm.xlu0 %136, %v43
  %v138 = vpop.permute.xlu0 %137
  %141 = vset.pattern.permute.xlu0 0
  %142 = vperm.xlu0 %141, %v44
  %v143 = vpop.permute.xlu0 %142
  %146 = vset.pattern.permute.xlu0 0
  %147 = vperm.xlu0 %146, %v45
  %v148 = vpop.permute.xlu0 %147
  %151 = vset.pattern.permute.xlu0 0
  %152 = vperm.xlu0 %151, %v46
  %v153 = vpop.permute.xlu0 %152
  %156 = vset.pattern.permute.xlu0 0
  %157 = vperm.xlu0 %156, %v47
  %v158 = vpop.permute.xlu0 %157
  %161 = vset.pattern.permute.xlu0 0
  %162 = vperm.xlu0 %161, %v48
  %v163 = vpop.permute.xlu0 %162
  %166 = vset.pattern.permute.xlu0 0
  %167 = vperm.xlu0 %166, %v49
  %v168 = vpop.permute.xlu0 %167
  %171 = vset.pattern.permute.xlu0 0
  %172 = vperm.xlu0 %171, %v50
  %v173 = vpop.permute.xlu0 %172
  %176 = vset.pattern.permute.xlu0 0
  %177 = vperm.xlu0 %176, %v51
  %v178 = vpop.permute.xlu0 %177
  %181 = vset.pattern.permute.xlu0 0
  %182 = vperm.xlu0 %181, %v52
  %v183 = vpop.permute.xlu0 %182
  %186 = vset.pattern.permute.xlu0 0
  %187 = vperm.xlu0 %186, %v53
  %v188 = vpop.permute.xlu0 %187
  %191 = vset.pattern.permute.xlu0 0
  %192 = vperm.xlu0 %191, %v54
  %v193 = vpop.permute.xlu0 %192
  %196 = vset.pattern.permute.xlu0 0
  %197 = vperm.xlu0 %196, %v55
  %v198 = vpop.permute.xlu0 %197
  %201 = vset.pattern.permute.xlu0 0
  %202 = vperm.xlu0 %201, %v56
  %v203 = vpop.permute.xlu0 %202
  %206 = vset.pattern.permute.xlu0 0
  %207 = vperm.xlu0 %206, %v57
  %v208 = vpop.permute.xlu0 %207
  %211 = vset.pattern.permute.xlu0 0
  %212 = vperm.xlu0 %211, %v58
  %v213 = vpop.permute.xlu0 %212
  %216 = vset.pattern.permute.xlu0 0
  %217 = vperm.xlu0 %216, %v59
  %v218 = vpop.permute.xlu0 %217
  %221 = vset.pattern.permute.xlu0 0
  %222 = vperm.xlu0 %221, %v60
  %v223 = vpop.permute.xlu0 %222
  %226 = vset.pattern.permute.xlu0 0
  %227 = vperm.xlu0 %226, %v61
  %v228 = vpop.permute.xlu0 %227
  %231 = vset.pattern.permute.xlu0 0
  %232 = vperm.xlu0 %231, %v62
  %v233 = vpop.permute.xlu0 %232
  %236 = vset.pattern.permute.xlu0 0
  %237 = vperm.xlu0 %236, %v63
  %v238 = vpop.permute.xlu0 %237
  %241 = vset.pattern.permute.xlu0 0
  %242 = vperm.xlu0 %241, %v64
  %v243 = vpop.permute.xlu0 %242
  %246 = vset.pattern.permute.xlu0 0
  %247 = vperm.xlu0 %246, %v65
  %v248 = vpop.permute.xlu0 %247
  %251 = vset.pattern.permute.xlu0 0
  %252 = vperm.xlu0 %251, %v66
  %v253 = vpop.permute.xlu0 %252
  %256 = vset.pattern.permute.xlu0 0
  %257 = vperm.xlu0 %256, %v67
  %v258 = vpop.permute.xlu0 %257
  %261 = vset.pattern.permute.xlu0 0
  %262 = vperm.xlu0 %261, %v68
  %v263 = vpop.permute.xlu0 %262
  %266 = vset.pattern.permute.xlu0 0
  %267 = vperm.xlu0 %266, %v69
  %v268 = vpop.permute.xlu0 %267
  %271 = vset.pattern.permute.xlu0 0
  %272 = vperm.xlu0 %271, %v70
  %v273 = vpop.permute.xlu0 %272
  %276 = vset.pattern.permute.xlu0 0
  %277 = vperm.xlu0 %276, %v71
  %v278 = vpop.permute.xlu0 %277
  %281 = vset.pattern.permute.xlu0 0
  %282 = vperm.xlu0 %281, %v72
  %v283 = vpop.permute.xlu0 %282
  %286 = vset.pattern.permute.xlu0 0
  %287 = vperm.xlu0 %286, %v73
  %v288 = vpop.permute.xlu0 %287
  %291 = vset.pattern.permute.xlu0 0
  %292 = vperm.xlu0 %291, %v74
  %v293 = vpop.permute.xlu0 %292
  %296 = vset.pattern.permute.xlu0 0
  %297 = vperm.xlu0 %296, %v75
  %v298 = vpop.permute.xlu0 %297
  %301 = vset.pattern.permute.xlu0 0
  %302 = vperm.xlu0 %301, %v76
  %v303 = vpop.permute.xlu0 %302
  %306 = vset.pattern.permute.xlu0 0
  %307 = vperm.xlu0 %306, %v77
  %v308 = vpop.permute.xlu0 %307
  %311 = vset.pattern.permute.xlu0 0
  %312 = vperm.xlu0 %311, %v78
  %v313 = vpop.permute.xlu0 %312
  %316 = vset.pattern.permute.xlu0 0
  %317 = vperm.xlu0 %316, %v79
  %v318 = vpop.permute.xlu0 %317
  %321 = vset.pattern.permute.xlu0 0
  %322 = vperm.xlu0 %321, %v80
  %v323 = vpop.permute.xlu0 %322
  %326 = vset.pattern.permute.xlu0 0
  %327 = vperm.xlu0 %326, %v81
  %v328 = vpop.permute.xlu0 %327
  %331 = vset.pattern.permute.xlu0 0
  %332 = vperm.xlu0 %331, %v82
  %v333 = vpop.permute.xlu0 %332
  %336 = vset.pattern.permute.xlu0 0
  %337 = vperm.xlu0 %336, %v83
  %v338 = vpop.permute.xlu0 %337
  %341 = vset.pattern.permute.xlu0 0
  %342 = vperm.xlu0 %341, %v84
  %v343 = vpop.permute.xlu0 %342
  %346 = vset.pattern.permute.xlu0 0
  %347 = vperm.xlu0 %346, %v85
  %v348 = vpop.permute.xlu0 %347
  %351 = vset.pattern.permute.xlu0 0
  %352 = vperm.xlu0 %351, %v86
  %v353 = vpop.permute.xlu0 %352
  %356 = vset.pattern.permute.xlu0 0
  %357 = vperm.xlu0 %356, %v87
  %v358 = vpop.permute.xlu0 %357
  %361 = vset.pattern.permute.xlu0 0
  %362 = vperm.xlu0 %361, %v88
  %v363 = vpop.permute.xlu0 %362
  %366 = vset.pattern.permute.xlu0 0
  %367 = vperm.xlu0 %366, %v89
  %v368 = vpop.permute.xlu0 %367
  %371 = vset.pattern.permute.xlu0 0
  %372 = vperm.xlu0 %371, %v90
  %v373 = vpop.permute.xlu0 %372
  %376 = vset.pattern.permute.xlu0 0
  %377 = vperm.xlu0 %376, %v91
  %v378 = vpop.permute.xlu0 %377
  %381 = vset.pattern.permute.xlu0 0
  %382 = vperm.xlu0 %381, %v92
  %v383 = vpop.permute.xlu0 %382
  %386 = vset.pattern.permute.xlu0 0
  %387 = vperm.xlu0 %386, %v93
  %v388 = vpop.permute.xlu0 %387
  %391 = vset.pattern.permute.xlu0 0
  %392 = vperm.xlu0 %391, %v94
  %v393 = vpop.permute.xlu0 %392
  %396 = vset.pattern.permute.xlu0 0
  %397 = vperm.xlu0 %396, %v95
  %v398 = vpop.permute.xlu0 %397
  %401 = vset.pattern.permute.xlu0 0
  %402 = vperm.xlu0 %401, %v96
  %v403 = vpop.permute.xlu0 %402
  %406 = vset.pattern.permute.xlu0 0
  %407 = vperm.xlu0 %406, %v97
  %v408 = vpop.permute.xlu0 %407
  %411 = vset.pattern.permute.xlu0 0
  %412 = vperm.xlu0 %411, %v98
  %v413 = vpop.permute.xlu0 %412
  %416 = vset.pattern.permute.xlu0 0
  %417 = vperm.xlu0 %416, %v99
  %v418 = vpop.permute.xlu0 %417
  %v420 = vlaneseq
  %v421 = vshrl.u32 %v420, 7
  %v422 = vsub.s32 0, %v421
  %v423 = vrot.slane %v35, %v422
  %v424 = vmul.f32 %v103, %v423
  %v425 = vmul.f32 %v108, %v423
  %v426 = vmul.f32 %v113, %v423
  %v427 = vmul.f32 %v118, %v423
  %v428 = vmul.f32 %v123, %v423
  %v429 = vmul.f32 %v128, %v423
  %v430 = vmul.f32 %v133, %v423
  %v431 = vmul.f32 %v138, %v423
  %v432 = vmul.f32 %v143, %v423
  %v433 = vmul.f32 %v148, %v423
  %v434 = vmul.f32 %v153, %v423
  %v435 = vmul.f32 %v158, %v423
  %v436 = vmul.f32 %v163, %v423
  %v437 = vmul.f32 %v168, %v423
  %v438 = vmul.f32 %v173, %v423
  %v439 = vmul.f32 %v178, %v423
  %v440 = vmul.f32 %v183, %v423
  %v441 = vmul.f32 %v188, %v423
  %v442 = vmul.f32 %v193, %v423
  %v443 = vmul.f32 %v198, %v423
  %v444 = vmul.f32 %v203, %v423
  %v445 = vmul.f32 %v208, %v423
  %v446 = vmul.f32 %v213, %v423
  %v447 = vmul.f32 %v218, %v423
  %v448 = vmul.f32 %v223, %v423
  %v449 = vmul.f32 %v228, %v423
  %v450 = vmul.f32 %v233, %v423
  %v451 = vmul.f32 %v238, %v423
  %v452 = vmul.f32 %v243, %v423
  %v453 = vmul.f32 %v248, %v423
  %v454 = vmul.f32 %v253, %v423
  %v455 = vmul.f32 %v258, %v423
  %v456 = vmul.f32 %v263, %v423
  %v457 = vmul.f32 %v268, %v423
  %v458 = vmul.f32 %v273, %v423
  %v459 = vmul.f32 %v278, %v423
  %v460 = vmul.f32 %v283, %v423
  %v461 = vmul.f32 %v288, %v423
  %v462 = vmul.f32 %v293, %v423
  %v463 = vmul.f32 %v298, %v423
  %v464 = vmul.f32 %v303, %v423
  %v465 = vmul.f32 %v308, %v423
  %v466 = vmul.f32 %v313, %v423
  %v467 = vmul.f32 %v318, %v423
  %v468 = vmul.f32 %v323, %v423
  %v469 = vmul.f32 %v328, %v423
  %v470 = vmul.f32 %v333, %v423
  %v471 = vmul.f32 %v338, %v423
  %v472 = vmul.f32 %v343, %v423
  %v473 = vmul.f32 %v348, %v423
  %v474 = vmul.f32 %v353, %v423
  %v475 = vmul.f32 %v358, %v423
  %v476 = vmul.f32 %v363, %v423
  %v477 = vmul.f32 %v368, %v423
  %v478 = vmul.f32 %v373, %v423
  %v479 = vmul.f32 %v378, %v423
  %v480 = vmul.f32 %v383, %v423
  %v481 = vmul.f32 %v388, %v423
  %v482 = vmul.f32 %v393, %v423
  %v483 = vmul.f32 %v398, %v423
  %v484 = vmul.f32 %v403, %v423
  %v485 = vmul.f32 %v408, %v423
  %v486 = vmul.f32 %v413, %v423
  %v487 = vmul.f32 %v418, %v423
  %488 = vset.pattern.permute.xlu0 1
  %489 = vperm.xlu0 %488, %v36
  %v490 = vpop.permute.xlu0 %489
  %492 = vset.pattern.permute.xlu0 1
  %493 = vperm.xlu0 %492, %v37
  %v494 = vpop.permute.xlu0 %493
  %496 = vset.pattern.permute.xlu0 1
  %497 = vperm.xlu0 %496, %v38
  %v498 = vpop.permute.xlu0 %497
  %500 = vset.pattern.permute.xlu0 1
  %501 = vperm.xlu0 %500, %v39
  %v502 = vpop.permute.xlu0 %501
  %504 = vset.pattern.permute.xlu0 1
  %505 = vperm.xlu0 %504, %v40
  %v506 = vpop.permute.xlu0 %505
  %508 = vset.pattern.permute.xlu0 1
  %509 = vperm.xlu0 %508, %v41
  %v510 = vpop.permute.xlu0 %509
  %512 = vset.pattern.permute.xlu0 1
  %513 = vperm.xlu0 %512, %v42
  %v514 = vpop.permute.xlu0 %513
  %516 = vset.pattern.permute.xlu0 1
  %517 = vperm.xlu0 %516, %v43
  %v518 = vpop.permute.xlu0 %517
  %520 = vset.pattern.permute.xlu0 1
  %521 = vperm.xlu0 %520, %v44
  %v522 = vpop.permute.xlu0 %521
  %524 = vset.pattern.permute.xlu0 1
  %525 = vperm.xlu0 %524, %v45
  %v526 = vpop.permute.xlu0 %525
  %528 = vset.pattern.permute.xlu0 1
  %529 = vperm.xlu0 %528, %v46
  %v530 = vpop.permute.xlu0 %529
  %532 = vset.pattern.permute.xlu0 1
  %533 = vperm.xlu0 %532, %v47
  %v534 = vpop.permute.xlu0 %533
  %536 = vset.pattern.permute.xlu0 1
  %537 = vperm.xlu0 %536, %v48
  %v538 = vpop.permute.xlu0 %537
  %540 = vset.pattern.permute.xlu0 1
  %541 = vperm.xlu0 %540, %v49
  %v542 = vpop.permute.xlu0 %541
  %544 = vset.pattern.permute.xlu0 1
  %545 = vperm.xlu0 %544, %v50
  %v546 = vpop.permute.xlu0 %545
  %548 = vset.pattern.permute.xlu0 1
  %549 = vperm.xlu0 %548, %v51
  %v550 = vpop.permute.xlu0 %549
  %552 = vset.pattern.permute.xlu0 1
  %553 = vperm.xlu0 %552, %v52
  %v554 = vpop.permute.xlu0 %553
  %556 = vset.pattern.permute.xlu0 1
  %557 = vperm.xlu0 %556, %v53
  %v558 = vpop.permute.xlu0 %557
  %560 = vset.pattern.permute.xlu0 1
  %561 = vperm.xlu0 %560, %v54
  %v562 = vpop.permute.xlu0 %561
  %564 = vset.pattern.permute.xlu0 1
  %565 = vperm.xlu0 %564, %v55
  %v566 = vpop.permute.xlu0 %565
  %568 = vset.pattern.permute.xlu0 1
  %569 = vperm.xlu0 %568, %v56
  %v570 = vpop.permute.xlu0 %569
  %572 = vset.pattern.permute.xlu0 1
  %573 = vperm.xlu0 %572, %v57
  %v574 = vpop.permute.xlu0 %573
  %576 = vset.pattern.permute.xlu0 1
  %577 = vperm.xlu0 %576, %v58
  %v578 = vpop.permute.xlu0 %577
  %580 = vset.pattern.permute.xlu0 1
  %581 = vperm.xlu0 %580, %v59
  %v582 = vpop.permute.xlu0 %581
  %584 = vset.pattern.permute.xlu0 1
  %585 = vperm.xlu0 %584, %v60
  %v586 = vpop.permute.xlu0 %585
  %588 = vset.pattern.permute.xlu0 1
  %589 = vperm.xlu0 %588, %v61
  %v590 = vpop.permute.xlu0 %589
  %592 = vset.pattern.permute.xlu0 1
  %593 = vperm.xlu0 %592, %v62
  %v594 = vpop.permute.xlu0 %593
  %596 = vset.pattern.permute.xlu0 1
  %597 = vperm.xlu0 %596, %v63
  %v598 = vpop.permute.xlu0 %597
  %600 = vset.pattern.permute.xlu0 1
  %601 = vperm.xlu0 %600, %v64
  %v602 = vpop.permute.xlu0 %601
  %604 = vset.pattern.permute.xlu0 1
  %605 = vperm.xlu0 %604, %v65
  %v606 = vpop.permute.xlu0 %605
  %608 = vset.pattern.permute.xlu0 1
  %609 = vperm.xlu0 %608, %v66
  %v610 = vpop.permute.xlu0 %609
  %612 = vset.pattern.permute.xlu0 1
  %613 = vperm.xlu0 %612, %v67
  %v614 = vpop.permute.xlu0 %613
  %616 = vset.pattern.permute.xlu0 1
  %617 = vperm.xlu0 %616, %v68
  %v618 = vpop.permute.xlu0 %617
  %620 = vset.pattern.permute.xlu0 1
  %621 = vperm.xlu0 %620, %v69
  %v622 = vpop.permute.xlu0 %621
  %624 = vset.pattern.permute.xlu0 1
  %625 = vperm.xlu0 %624, %v70
  %v626 = vpop.permute.xlu0 %625
  %628 = vset.pattern.permute.xlu0 1
  %629 = vperm.xlu0 %628, %v71
  %v630 = vpop.permute.xlu0 %629
  %632 = vset.pattern.permute.xlu0 1
  %633 = vperm.xlu0 %632, %v72
  %v634 = vpop.permute.xlu0 %633
  %636 = vset.pattern.permute.xlu0 1
  %637 = vperm.xlu0 %636, %v73
  %v638 = vpop.permute.xlu0 %637
  %640 = vset.pattern.permute.xlu0 1
  %641 = vperm.xlu0 %640, %v74
  %v642 = vpop.permute.xlu0 %641
  %644 = vset.pattern.permute.xlu0 1
  %645 = vperm.xlu0 %644, %v75
  %v646 = vpop.permute.xlu0 %645
  %648 = vset.pattern.permute.xlu0 1
  %649 = vperm.xlu0 %648, %v76
  %v650 = vpop.permute.xlu0 %649
  %652 = vset.pattern.permute.xlu0 1
  %653 = vperm.xlu0 %652, %v77
  %v654 = vpop.permute.xlu0 %653
  %656 = vset.pattern.permute.xlu0 1
  %657 = vperm.xlu0 %656, %v78
  %v658 = vpop.permute.xlu0 %657
  %660 = vset.pattern.permute.xlu0 1
  %661 = vperm.xlu0 %660, %v79
  %v662 = vpop.permute.xlu0 %661
  %664 = vset.pattern.permute.xlu0 1
  %665 = vperm.xlu0 %664, %v80
  %v666 = vpop.permute.xlu0 %665
  %668 = vset.pattern.permute.xlu0 1
  %669 = vperm.xlu0 %668, %v81
  %v670 = vpop.permute.xlu0 %669
  %672 = vset.pattern.permute.xlu0 1
  %673 = vperm.xlu0 %672, %v82
  %v674 = vpop.permute.xlu0 %673
  %676 = vset.pattern.permute.xlu0 1
  %677 = vperm.xlu0 %676, %v83
  %v678 = vpop.permute.xlu0 %677
  %680 = vset.pattern.permute.xlu0 1
  %681 = vperm.xlu0 %680, %v84
  %v682 = vpop.permute.xlu0 %681
  %684 = vset.pattern.permute.xlu0 1
  %685 = vperm.xlu0 %684, %v85
  %v686 = vpop.permute.xlu0 %685
  %688 = vset.pattern.permute.xlu0 1
  %689 = vperm.xlu0 %688, %v86
  %v690 = vpop.permute.xlu0 %689
  %692 = vset.pattern.permute.xlu0 1
  %693 = vperm.xlu0 %692, %v87
  %v694 = vpop.permute.xlu0 %693
  %696 = vset.pattern.permute.xlu0 1
  %697 = vperm.xlu0 %696, %v88
  %v698 = vpop.permute.xlu0 %697
  %700 = vset.pattern.permute.xlu0 1
  %701 = vperm.xlu0 %700, %v89
  %v702 = vpop.permute.xlu0 %701
  %704 = vset.pattern.permute.xlu0 1
  %705 = vperm.xlu0 %704, %v90
  %v706 = vpop.permute.xlu0 %705
  %708 = vset.pattern.permute.xlu0 1
  %709 = vperm.xlu0 %708, %v91
  %v710 = vpop.permute.xlu0 %709
  %712 = vset.pattern.permute.xlu0 1
  %713 = vperm.xlu0 %712, %v92
  %v714 = vpop.permute.xlu0 %713
  %716 = vset.pattern.permute.xlu0 1
  %717 = vperm.xlu0 %716, %v93
  %v718 = vpop.permute.xlu0 %717
  %720 = vset.pattern.permute.xlu0 1
  %721 = vperm.xlu0 %720, %v94
  %v722 = vpop.permute.xlu0 %721
  %724 = vset.pattern.permute.xlu0 1
  %725 = vperm.xlu0 %724, %v95
  %v726 = vpop.permute.xlu0 %725
  %728 = vset.pattern.permute.xlu0 1
  %729 = vperm.xlu0 %728, %v96
  %v730 = vpop.permute.xlu0 %729
  %732 = vset.pattern.permute.xlu0 1
  %733 = vperm.xlu0 %732, %v97
  %v734 = vpop.permute.xlu0 %733
  %736 = vset.pattern.permute.xlu0 1
  %737 = vperm.xlu0 %736, %v98
  %v738 = vpop.permute.xlu0 %737
  %740 = vset.pattern.permute.xlu0 1
  %741 = vperm.xlu0 %740, %v99
  %v742 = vpop.permute.xlu0 %741
  %v744 = vlaneseq
  %v745 = vshrl.u32 %v744, 7
  %v746 = vsub.s32 1, %v745
  %v747 = vrot.slane %v35, %v746
  %v748 = vmul.f32 %v490, %v747
  %v749 = vmul.f32 %v494, %v747
  %v750 = vmul.f32 %v498, %v747
  %v751 = vmul.f32 %v502, %v747
  %v752 = vmul.f32 %v506, %v747
  %v753 = vmul.f32 %v510, %v747
  %v754 = vmul.f32 %v514, %v747
  %v755 = vmul.f32 %v518, %v747
  %v756 = vmul.f32 %v522, %v747
  %v757 = vmul.f32 %v526, %v747
  %v758 = vmul.f32 %v530, %v747
  %v759 = vmul.f32 %v534, %v747
  %v760 = vmul.f32 %v538, %v747
  %v761 = vmul.f32 %v542, %v747
  %v762 = vmul.f32 %v546, %v747
  %v763 = vmul.f32 %v550, %v747
  %v764 = vmul.f32 %v554, %v747
  %v765 = vmul.f32 %v558, %v747
  %v766 = vmul.f32 %v562, %v747
  %v767 = vmul.f32 %v566, %v747
  %v768 = vmul.f32 %v570, %v747
  %v769 = vmul.f32 %v574, %v747
  %v770 = vmul.f32 %v578, %v747
  %v771 = vmul.f32 %v582, %v747
  %v772 = vmul.f32 %v586, %v747
  %v773 = vmul.f32 %v590, %v747
  %v774 = vmul.f32 %v594, %v747
  %v775 = vmul.f32 %v598, %v747
  %v776 = vmul.f32 %v602, %v747
  %v777 = vmul.f32 %v606, %v747
  %v778 = vmul.f32 %v610, %v747
  %v779 = vmul.f32 %v614, %v747
  %v780 = vmul.f32 %v618, %v747
  %v781 = vmul.f32 %v622, %v747
  %v782 = vmul.f32 %v626, %v747
  %v783 = vmul.f32 %v630, %v747
  %v784 = vmul.f32 %v634, %v747
  %v785 = vmul.f32 %v638, %v747
  %v786 = vmul.f32 %v642, %v747
  %v787 = vmul.f32 %v646, %v747
  %v788 = vmul.f32 %v650, %v747
  %v789 = vmul.f32 %v654, %v747
  %v790 = vmul.f32 %v658, %v747
  %v791 = vmul.f32 %v662, %v747
  %v792 = vmul.f32 %v666, %v747
  %v793 = vmul.f32 %v670, %v747
  %v794 = vmul.f32 %v674, %v747
  %v795 = vmul.f32 %v678, %v747
  %v796 = vmul.f32 %v682, %v747
  %v797 = vmul.f32 %v686, %v747
  %v798 = vmul.f32 %v690, %v747
  %v799 = vmul.f32 %v694, %v747
  %v800 = vmul.f32 %v698, %v747
  %v801 = vmul.f32 %v702, %v747
  %v802 = vmul.f32 %v706, %v747
  %v803 = vmul.f32 %v710, %v747
  %v804 = vmul.f32 %v714, %v747
  %v805 = vmul.f32 %v718, %v747
  %v806 = vmul.f32 %v722, %v747
  %v807 = vmul.f32 %v726, %v747
  %v808 = vmul.f32 %v730, %v747
  %v809 = vmul.f32 %v734, %v747
  %v810 = vmul.f32 %v738, %v747
  %v811 = vmul.f32 %v742, %v747
  %v812 = vadd.f32 %v424, %v748
  %v813 = vadd.f32 %v425, %v749
  %v814 = vadd.f32 %v426, %v750
  %v815 = vadd.f32 %v427, %v751
  %v816 = vadd.f32 %v428, %v752
  %v817 = vadd.f32 %v429, %v753
  %v818 = vadd.f32 %v430, %v754
  %v819 = vadd.f32 %v431, %v755
  %v820 = vadd.f32 %v432, %v756
  %v821 = vadd.f32 %v433, %v757
  %v822 = vadd.f32 %v434, %v758
  %v823 = vadd.f32 %v435, %v759
  %v824 = vadd.f32 %v436, %v760
  %v825 = vadd.f32 %v437, %v761
  %v826 = vadd.f32 %v438, %v762
  %v827 = vadd.f32 %v439, %v763
  %v828 = vadd.f32 %v440, %v764
  %v829 = vadd.f32 %v441, %v765
  %v830 = vadd.f32 %v442, %v766
  %v831 = vadd.f32 %v443, %v767
  %v832 = vadd.f32 %v444, %v768
  %v833 = vadd.f32 %v445, %v769
  %v834 = vadd.f32 %v446, %v770
  %v835 = vadd.f32 %v447, %v771
  %v836 = vadd.f32 %v448, %v772
  %v837 = vadd.f32 %v449, %v773
  %v838 = vadd.f32 %v450, %v774
  %v839 = vadd.f32 %v451, %v775
  %v840 = vadd.f32 %v452, %v776
  %v841 = vadd.f32 %v453, %v777
  %v842 = vadd.f32 %v454, %v778
  %v843 = vadd.f32 %v455, %v779
  %v844 = vadd.f32 %v456, %v780
  %v845 = vadd.f32 %v457, %v781
  %v846 = vadd.f32 %v458, %v782
  %v847 = vadd.f32 %v459, %v783
  %v848 = vadd.f32 %v460, %v784
  %v849 = vadd.f32 %v461, %v785
  %v850 = vadd.f32 %v462, %v786
  %v851 = vadd.f32 %v463, %v787
  %v852 = vadd.f32 %v464, %v788
  %v853 = vadd.f32 %v465, %v789
  %v854 = vadd.f32 %v466, %v790
  %v855 = vadd.f32 %v467, %v791
  %v856 = vadd.f32 %v468, %v792
  %v857 = vadd.f32 %v469, %v793
  %v858 = vadd.f32 %v470, %v794
  %v859 = vadd.f32 %v471, %v795
  %v860 = vadd.f32 %v472, %v796
  %v861 = vadd.f32 %v473, %v797
  %v862 = vadd.f32 %v474, %v798
  %v863 = vadd.f32 %v475, %v799
  %v864 = vadd.f32 %v476, %v800
  %v865 = vadd.f32 %v477, %v801
  %v866 = vadd.f32 %v478, %v802
  %v867 = vadd.f32 %v479, %v803
  %v868 = vadd.f32 %v480, %v804
  %v869 = vadd.f32 %v481, %v805
  %v870 = vadd.f32 %v482, %v806
  %v871 = vadd.f32 %v483, %v807
  %v872 = vadd.f32 %v484, %v808
  %v873 = vadd.f32 %v485, %v809
  %v874 = vadd.f32 %v486, %v810
  %v875 = vadd.f32 %v487, %v811
  %v876 = vld [vmem:[%s2] sm:$0xff]
  %v877 = vld [vmem:[%s2 + $0x8] sm:$0xff]
  %v878 = vld [vmem:[%s2 + $0x10] sm:$0xff]
  %v879 = vld [vmem:[%s2 + $0x18] sm:$0xff]
  %v880 = vld [vmem:[%s2 + $0x20] sm:$0xff]
  %v881 = vld [vmem:[%s2 + $0x28] sm:$0xff]
  %v882 = vld [vmem:[%s2 + $0x30] sm:$0xff]
  %v883 = vld [vmem:[%s2 + $0x38] sm:$0xff]
  %v884 = vld [vmem:[%s2 + $0x40] sm:$0xff]
  %v885 = vld [vmem:[%s2 + $0x48] sm:$0xff]
  %v886 = vld [vmem:[%s2 + $0x50] sm:$0xff]
  %v887 = vld [vmem:[%s2 + $0x58] sm:$0xff]
  %v888 = vld [vmem:[%s2 + $0x60] sm:$0xff]
  %v889 = vld [vmem:[%s2 + $0x68] sm:$0xff]
  %v890 = vld [vmem:[%s2 + $0x70] sm:$0xff]
  %v891 = vld [vmem:[%s2 + $0x78] sm:$0xff]
  %v892 = vld [vmem:[%s2 + $0x80] sm:$0xff]
  %v893 = vld [vmem:[%s2 + $0x88] sm:$0xff]
  %v894 = vld [vmem:[%s2 + $0x90] sm:$0xff]
  %v895 = vld [vmem:[%s2 + $0x98] sm:$0xff]
  %v896 = vld [vmem:[%s2 + $0xa0] sm:$0xff]
  %v897 = vld [vmem:[%s2 + $0xa8] sm:$0xff]
  %v898 = vld [vmem:[%s2 + $0xb0] sm:$0xff]
  %v899 = vld [vmem:[%s2 + $0xb8] sm:$0xff]
  %v900 = vld [vmem:[%s2 + $0xc0] sm:$0xff]
  %v901 = vld [vmem:[%s2 + $0xc8] sm:$0xff]
  %v902 = vld [vmem:[%s2 + $0xd0] sm:$0xff]
  %v903 = vld [vmem:[%s2 + $0xd8] sm:$0xff]
  %v904 = vld [vmem:[%s2 + $0xe0] sm:$0xff]
  %v905 = vld [vmem:[%s2 + $0xe8] sm:$0xff]
  %v906 = vld [vmem:[%s2 + $0xf0] sm:$0xff]
  %v907 = vld [vmem:[%s2 + $0xf8] sm:$0xff]
  %v908 = vld [vmem:[%s2 + $0x100] sm:$0xff]
  %v909 = vld [vmem:[%s2 + $0x108] sm:$0xff]
  %v910 = vld [vmem:[%s2 + $0x110] sm:$0xff]
  %v911 = vld [vmem:[%s2 + $0x118] sm:$0xff]
  %v912 = vld [vmem:[%s2 + $0x120] sm:$0xff]
  %v913 = vld [vmem:[%s2 + $0x128] sm:$0xff]
  %v914 = vld [vmem:[%s2 + $0x130] sm:$0xff]
  %v915 = vld [vmem:[%s2 + $0x138] sm:$0xff]
  %v916 = vld [vmem:[%s2 + $0x140] sm:$0xff]
  %v917 = vld [vmem:[%s2 + $0x148] sm:$0xff]
  %v918 = vld [vmem:[%s2 + $0x150] sm:$0xff]
  %v919 = vld [vmem:[%s2 + $0x158] sm:$0xff]
  %v920 = vld [vmem:[%s2 + $0x160] sm:$0xff]
  %v921 = vld [vmem:[%s2 + $0x168] sm:$0xff]
  %v922 = vld [vmem:[%s2 + $0x170] sm:$0xff]
  %v923 = vld [vmem:[%s2 + $0x178] sm:$0xff]
  %v924 = vld [vmem:[%s2 + $0x180] sm:$0xff]
  %v925 = vld [vmem:[%s2 + $0x188] sm:$0xff]
  %v926 = vld [vmem:[%s2 + $0x190] sm:$0xff]
  %v927 = vld [vmem:[%s2 + $0x198] sm:$0xff]
  %v928 = vld [vmem:[%s2 + $0x1a0] sm:$0xff]
  %v929 = vld [vmem:[%s2 + $0x1a8] sm:$0xff]
  %v930 = vld [vmem:[%s2 + $0x1b0] sm:$0xff]
  %v931 = vld [vmem:[%s2 + $0x1b8] sm:$0xff]
  %v932 = vld [vmem:[%s2 + $0x1c0] sm:$0xff]
  %v933 = vld [vmem:[%s2 + $0x1c8] sm:$0xff]
  %v934 = vld [vmem:[%s2 + $0x1d0] sm:$0xff]
  %v935 = vld [vmem:[%s2 + $0x1d8] sm:$0xff]
  %v936 = vld [vmem:[%s2 + $0x1e0] sm:$0xff]
  %v937 = vld [vmem:[%s2 + $0x1e8] sm:$0xff]
  %v938 = vld [vmem:[%s2 + $0x1f0] sm:$0xff]
  %v939 = vld [vmem:[%s2 + $0x1f8] sm:$0xff]
  %941 = vset.pattern.permute.xlu0 0
  %942 = vperm.xlu0 %941, %v876
  %v943 = vpop.permute.xlu0 %942
  %946 = vset.pattern.permute.xlu0 0
  %947 = vperm.xlu0 %946, %v877
  %v948 = vpop.permute.xlu0 %947
  %951 = vset.pattern.permute.xlu0 0
  %952 = vperm.xlu0 %951, %v878
  %v953 = vpop.permute.xlu0 %952
  %956 = vset.pattern.permute.xlu0 0
  %957 = vperm.xlu0 %956, %v879
  %v958 = vpop.permute.xlu0 %957
  %961 = vset.pattern.permute.xlu0 0
  %962 = vperm.xlu0 %961, %v880
  %v963 = vpop.permute.xlu0 %962
  %966 = vset.pattern.permute.xlu0 0
  %967 = vperm.xlu0 %966, %v881
  %v968 = vpop.permute.xlu0 %967
  %971 = vset.pattern.permute.xlu0 0
  %972 = vperm.xlu0 %971, %v882
  %v973 = vpop.permute.xlu0 %972
  %976 = vset.pattern.permute.xlu0 0
  %977 = vperm.xlu0 %976, %v883
  %v978 = vpop.permute.xlu0 %977
  %981 = vset.pattern.permute.xlu0 0
  %982 = vperm.xlu0 %981, %v884
  %v983 = vpop.permute.xlu0 %982
  %986 = vset.pattern.permute.xlu0 0
  %987 = vperm.xlu0 %986, %v885
  %v988 = vpop.permute.xlu0 %987
  %991 = vset.pattern.permute.xlu0 0
  %992 = vperm.xlu0 %991, %v886
  %v993 = vpop.permute.xlu0 %992
  %996 = vset.pattern.permute.xlu0 0
  %997 = vperm.xlu0 %996, %v887
  %v998 = vpop.permute.xlu0 %997
  %1001 = vset.pattern.permute.xlu0 0
  %1002 = vperm.xlu0 %1001, %v888
  %v1003 = vpop.permute.xlu0 %1002
  %1006 = vset.pattern.permute.xlu0 0
  %1007 = vperm.xlu0 %1006, %v889
  %v1008 = vpop.permute.xlu0 %1007
  %1011 = vset.pattern.permute.xlu0 0
  %1012 = vperm.xlu0 %1011, %v890
  %v1013 = vpop.permute.xlu0 %1012
  %1016 = vset.pattern.permute.xlu0 0
  %1017 = vperm.xlu0 %1016, %v891
  %v1018 = vpop.permute.xlu0 %1017
  %1021 = vset.pattern.permute.xlu0 0
  %1022 = vperm.xlu0 %1021, %v892
  %v1023 = vpop.permute.xlu0 %1022
  %1026 = vset.pattern.permute.xlu0 0
  %1027 = vperm.xlu0 %1026, %v893
  %v1028 = vpop.permute.xlu0 %1027
  %1031 = vset.pattern.permute.xlu0 0
  %1032 = vperm.xlu0 %1031, %v894
  %v1033 = vpop.permute.xlu0 %1032
  %1036 = vset.pattern.permute.xlu0 0
  %1037 = vperm.xlu0 %1036, %v895
  %v1038 = vpop.permute.xlu0 %1037
  %1041 = vset.pattern.permute.xlu0 0
  %1042 = vperm.xlu0 %1041, %v896
  %v1043 = vpop.permute.xlu0 %1042
  %1046 = vset.pattern.permute.xlu0 0
  %1047 = vperm.xlu0 %1046, %v897
  %v1048 = vpop.permute.xlu0 %1047
  %1051 = vset.pattern.permute.xlu0 0
  %1052 = vperm.xlu0 %1051, %v898
  %v1053 = vpop.permute.xlu0 %1052
  %1056 = vset.pattern.permute.xlu0 0
  %1057 = vperm.xlu0 %1056, %v899
  %v1058 = vpop.permute.xlu0 %1057
  %1061 = vset.pattern.permute.xlu0 0
  %1062 = vperm.xlu0 %1061, %v900
  %v1063 = vpop.permute.xlu0 %1062
  %1066 = vset.pattern.permute.xlu0 0
  %1067 = vperm.xlu0 %1066, %v901
  %v1068 = vpop.permute.xlu0 %1067
  %1071 = vset.pattern.permute.xlu0 0
  %1072 = vperm.xlu0 %1071, %v902
  %v1073 = vpop.permute.xlu0 %1072
  %1076 = vset.pattern.permute.xlu0 0
  %1077 = vperm.xlu0 %1076, %v903
  %v1078 = vpop.permute.xlu0 %1077
  %1081 = vset.pattern.permute.xlu0 0
  %1082 = vperm.xlu0 %1081, %v904
  %v1083 = vpop.permute.xlu0 %1082
  %1086 = vset.pattern.permute.xlu0 0
  %1087 = vperm.xlu0 %1086, %v905
  %v1088 = vpop.permute.xlu0 %1087
  %1091 = vset.pattern.permute.xlu0 0
  %1092 = vperm.xlu0 %1091, %v906
  %v1093 = vpop.permute.xlu0 %1092
  %1096 = vset.pattern.permute.xlu0 0
  %1097 = vperm.xlu0 %1096, %v907
  %v1098 = vpop.permute.xlu0 %1097
  %1101 = vset.pattern.permute.xlu0 0
  %1102 = vperm.xlu0 %1101, %v908
  %v1103 = vpop.permute.xlu0 %1102
  %1106 = vset.pattern.permute.xlu0 0
  %1107 = vperm.xlu0 %1106, %v909
  %v1108 = vpop.permute.xlu0 %1107
  %1111 = vset.pattern.permute.xlu0 0
  %1112 = vperm.xlu0 %1111, %v910
  %v1113 = vpop.permute.xlu0 %1112
  %1116 = vset.pattern.permute.xlu0 0
  %1117 = vperm.xlu0 %1116, %v911
  %v1118 = vpop.permute.xlu0 %1117
  %1121 = vset.pattern.permute.xlu0 0
  %1122 = vperm.xlu0 %1121, %v912
  %v1123 = vpop.permute.xlu0 %1122
  %1126 = vset.pattern.permute.xlu0 0
  %1127 = vperm.xlu0 %1126, %v913
  %v1128 = vpop.permute.xlu0 %1127
  %1131 = vset.pattern.permute.xlu0 0
  %1132 = vperm.xlu0 %1131, %v914
  %v1133 = vpop.permute.xlu0 %1132
  %1136 = vset.pattern.permute.xlu0 0
  %1137 = vperm.xlu0 %1136, %v915
  %v1138 = vpop.permute.xlu0 %1137
  %1141 = vset.pattern.permute.xlu0 0
  %1142 = vperm.xlu0 %1141, %v916
  %v1143 = vpop.permute.xlu0 %1142
  %1146 = vset.pattern.permute.xlu0 0
  %1147 = vperm.xlu0 %1146, %v917
  %v1148 = vpop.permute.xlu0 %1147
  %1151 = vset.pattern.permute.xlu0 0
  %1152 = vperm.xlu0 %1151, %v918
  %v1153 = vpop.permute.xlu0 %1152
  %1156 = vset.pattern.permute.xlu0 0
  %1157 = vperm.xlu0 %1156, %v919
  %v1158 = vpop.permute.xlu0 %1157
  %1161 = vset.pattern.permute.xlu0 0
  %1162 = vperm.xlu0 %1161, %v920
  %v1163 = vpop.permute.xlu0 %1162
  %1166 = vset.pattern.permute.xlu0 0
  %1167 = vperm.xlu0 %1166, %v921
  %v1168 = vpop.permute.xlu0 %1167
  %1171 = vset.pattern.permute.xlu0 0
  %1172 = vperm.xlu0 %1171, %v922
  %v1173 = vpop.permute.xlu0 %1172
  %1176 = vset.pattern.permute.xlu0 0
  %1177 = vperm.xlu0 %1176, %v923
  %v1178 = vpop.permute.xlu0 %1177
  %1181 = vset.pattern.permute.xlu0 0
  %1182 = vperm.xlu0 %1181, %v924
  %v1183 = vpop.permute.xlu0 %1182
  %1186 = vset.pattern.permute.xlu0 0
  %1187 = vperm.xlu0 %1186, %v925
  %v1188 = vpop.permute.xlu0 %1187
  %1191 = vset.pattern.permute.xlu0 0
  %1192 = vperm.xlu0 %1191, %v926
  %v1193 = vpop.permute.xlu0 %1192
  %1196 = vset.pattern.permute.xlu0 0
  %1197 = vperm.xlu0 %1196, %v927
  %v1198 = vpop.permute.xlu0 %1197
  %1201 = vset.pattern.permute.xlu0 0
  %1202 = vperm.xlu0 %1201, %v928
  %v1203 = vpop.permute.xlu0 %1202
  %1206 = vset.pattern.permute.xlu0 0
  %1207 = vperm.xlu0 %1206, %v929
  %v1208 = vpop.permute.xlu0 %1207
  %1211 = vset.pattern.permute.xlu0 0
  %1212 = vperm.xlu0 %1211, %v930
  %v1213 = vpop.permute.xlu0 %1212
  %1216 = vset.pattern.permute.xlu0 0
  %1217 = vperm.xlu0 %1216, %v931
  %v1218 = vpop.permute.xlu0 %1217
  %1221 = vset.pattern.permute.xlu0 0
  %1222 = vperm.xlu0 %1221, %v932
  %v1223 = vpop.permute.xlu0 %1222
  %1226 = vset.pattern.permute.xlu0 0
  %1227 = vperm.xlu0 %1226, %v933
  %v1228 = vpop.permute.xlu0 %1227
  %1231 = vset.pattern.permute.xlu0 0
  %1232 = vperm.xlu0 %1231, %v934
  %v1233 = vpop.permute.xlu0 %1232
  %1236 = vset.pattern.permute.xlu0 0
  %1237 = vperm.xlu0 %1236, %v935
  %v1238 = vpop.permute.xlu0 %1237
  %1241 = vset.pattern.permute.xlu0 0
  %1242 = vperm.xlu0 %1241, %v936
  %v1243 = vpop.permute.xlu0 %1242
  %1246 = vset.pattern.permute.xlu0 0
  %1247 = vperm.xlu0 %1246, %v937
  %v1248 = vpop.permute.xlu0 %1247
  %1251 = vset.pattern.permute.xlu0 0
  %1252 = vperm.xlu0 %1251, %v938
  %v1253 = vpop.permute.xlu0 %1252
  %1256 = vset.pattern.permute.xlu0 0
  %1257 = vperm.xlu0 %1256, %v939
  %v1258 = vpop.permute.xlu0 %1257
  %v1260 = vadd.f32 %v812, %v943
  %v1261 = vadd.f32 %v813, %v948
  %v1262 = vadd.f32 %v814, %v953
  %v1263 = vadd.f32 %v815, %v958
  %v1264 = vadd.f32 %v816, %v963
  %v1265 = vadd.f32 %v817, %v968
  %v1266 = vadd.f32 %v818, %v973
  %v1267 = vadd.f32 %v819, %v978
  %v1268 = vadd.f32 %v820, %v983
  %v1269 = vadd.f32 %v821, %v988
  %v1270 = vadd.f32 %v822, %v993
  %v1271 = vadd.f32 %v823, %v998
  %v1272 = vadd.f32 %v824, %v1003
  %v1273 = vadd.f32 %v825, %v1008
  %v1274 = vadd.f32 %v826, %v1013
  %v1275 = vadd.f32 %v827, %v1018
  %v1276 = vadd.f32 %v828, %v1023
  %v1277 = vadd.f32 %v829, %v1028
  %v1278 = vadd.f32 %v830, %v1033
  %v1279 = vadd.f32 %v831, %v1038
  %v1280 = vadd.f32 %v832, %v1043
  %v1281 = vadd.f32 %v833, %v1048
  %v1282 = vadd.f32 %v834, %v1053
  %v1283 = vadd.f32 %v835, %v1058
  %v1284 = vadd.f32 %v836, %v1063
  %v1285 = vadd.f32 %v837, %v1068
  %v1286 = vadd.f32 %v838, %v1073
  %v1287 = vadd.f32 %v839, %v1078
  %v1288 = vadd.f32 %v840, %v1083
  %v1289 = vadd.f32 %v841, %v1088
  %v1290 = vadd.f32 %v842, %v1093
  %v1291 = vadd.f32 %v843, %v1098
  %v1292 = vadd.f32 %v844, %v1103
  %v1293 = vadd.f32 %v845, %v1108
  %v1294 = vadd.f32 %v846, %v1113
  %v1295 = vadd.f32 %v847, %v1118
  %v1296 = vadd.f32 %v848, %v1123
  %v1297 = vadd.f32 %v849, %v1128
  %v1298 = vadd.f32 %v850, %v1133
  %v1299 = vadd.f32 %v851, %v1138
  %v1300 = vadd.f32 %v852, %v1143
  %v1301 = vadd.f32 %v853, %v1148
  %v1302 = vadd.f32 %v854, %v1153
  %v1303 = vadd.f32 %v855, %v1158
  %v1304 = vadd.f32 %v856, %v1163
  %v1305 = vadd.f32 %v857, %v1168
  %v1306 = vadd.f32 %v858, %v1173
  %v1307 = vadd.f32 %v859, %v1178
  %v1308 = vadd.f32 %v860, %v1183
  %v1309 = vadd.f32 %v861, %v1188
  %v1310 = vadd.f32 %v862, %v1193
  %v1311 = vadd.f32 %v863, %v1198
  %v1312 = vadd.f32 %v864, %v1203
  %v1313 = vadd.f32 %v865, %v1208
  %v1314 = vadd.f32 %v866, %v1213
  %v1315 = vadd.f32 %v867, %v1218
  %v1316 = vadd.f32 %v868, %v1223
  %v1317 = vadd.f32 %v869, %v1228
  %v1318 = vadd.f32 %v870, %v1233
  %v1319 = vadd.f32 %v871, %v1238
  %v1320 = vadd.f32 %v872, %v1243
  %v1321 = vadd.f32 %v873, %v1248
  %v1322 = vadd.f32 %v874, %v1253
  %v1323 = vadd.f32 %v875, %v1258
  %v1324 = vmax.f32 %v1260, 0.0
  %v1325 = vmax.f32 %v1261, 0.0
  %v1326 = vmax.f32 %v1262, 0.0
  %v1327 = vmax.f32 %v1263, 0.0
  %v1328 = vmax.f32 %v1264, 0.0
  %v1329 = vmax.f32 %v1265, 0.0
  %v1330 = vmax.f32 %v1266, 0.0
  %v1331 = vmax.f32 %v1267, 0.0
  %v1332 = vmax.f32 %v1268, 0.0
  %v1333 = vmax.f32 %v1269, 0.0
  %v1334 = vmax.f32 %v1270, 0.0
  %v1335 = vmax.f32 %v1271, 0.0
  %v1336 = vmax.f32 %v1272, 0.0
  %v1337 = vmax.f32 %v1273, 0.0
  %v1338 = vmax.f32 %v1274, 0.0
  %v1339 = vmax.f32 %v1275, 0.0
  %v1340 = vmax.f32 %v1276, 0.0
  %v1341 = vmax.f32 %v1277, 0.0
  %v1342 = vmax.f32 %v1278, 0.0
  %v1343 = vmax.f32 %v1279, 0.0
  %v1344 = vmax.f32 %v1280, 0.0
  %v1345 = vmax.f32 %v1281, 0.0
  %v1346 = vmax.f32 %v1282, 0.0
  %v1347 = vmax.f32 %v1283, 0.0
  %v1348 = vmax.f32 %v1284, 0.0
  %v1349 = vmax.f32 %v1285, 0.0
  %v1350 = vmax.f32 %v1286, 0.0
  %v1351 = vmax.f32 %v1287, 0.0
  %v1352 = vmax.f32 %v1288, 0.0
  %v1353 = vmax.f32 %v1289, 0.0
  %v1354 = vmax.f32 %v1290, 0.0
  %v1355 = vmax.f32 %v1291, 0.0
  %v1356 = vmax.f32 %v1292, 0.0
  %v1357 = vmax.f32 %v1293, 0.0
  %v1358 = vmax.f32 %v1294, 0.0
  %v1359 = vmax.f32 %v1295, 0.0
  %v1360 = vmax.f32 %v1296, 0.0
  %v1361 = vmax.f32 %v1297, 0.0
  %v1362 = vmax.f32 %v1298, 0.0
  %v1363 = vmax.f32 %v1299, 0.0
  %v1364 = vmax.f32 %v1300, 0.0
  %v1365 = vmax.f32 %v1301, 0.0
  %v1366 = vmax.f32 %v1302, 0.0
  %v1367 = vmax.f32 %v1303, 0.0
  %v1368 = vmax.f32 %v1304, 0.0
  %v1369 = vmax.f32 %v1305, 0.0
  %v1370 = vmax.f32 %v1306, 0.0
  %v1371 = vmax.f32 %v1307, 0.0
  %v1372 = vmax.f32 %v1308, 0.0
  %v1373 = vmax.f32 %v1309, 0.0
  %v1374 = vmax.f32 %v1310, 0.0
  %v1375 = vmax.f32 %v1311, 0.0
  %v1376 = vmax.f32 %v1312, 0.0
  %v1377 = vmax.f32 %v1313, 0.0
  %v1378 = vmax.f32 %v1314, 0.0
  %v1379 = vmax.f32 %v1315, 0.0
  %v1380 = vmax.f32 %v1316, 0.0
  %v1381 = vmax.f32 %v1317, 0.0
  %v1382 = vmax.f32 %v1318, 0.0
  %v1383 = vmax.f32 %v1319, 0.0
  %v1384 = vmax.f32 %v1320, 0.0
  %v1385 = vmax.f32 %v1321, 0.0
  %v1386 = vmax.f32 %v1322, 0.0
  %v1387 = vmax.f32 %v1323, 0.0
  %v1388 = vpack.c.bf16 %v1325, %v1324
  %v1389 = vpack.c.bf16 %v1327, %v1326
  %v1390 = vpack.c.bf16 %v1329, %v1328
  %v1391 = vpack.c.bf16 %v1331, %v1330
  %v1392 = vpack.c.bf16 %v1333, %v1332
  %v1393 = vpack.c.bf16 %v1335, %v1334
  %v1394 = vpack.c.bf16 %v1337, %v1336
  %v1395 = vpack.c.bf16 %v1339, %v1338
  %v1396 = vpack.c.bf16 %v1341, %v1340
  %v1397 = vpack.c.bf16 %v1343, %v1342
  %v1398 = vpack.c.bf16 %v1345, %v1344
  %v1399 = vpack.c.bf16 %v1347, %v1346
  %v1400 = vpack.c.bf16 %v1349, %v1348
  %v1401 = vpack.c.bf16 %v1351, %v1350
  %v1402 = vpack.c.bf16 %v1353, %v1352
  %v1403 = vpack.c.bf16 %v1355, %v1354
  %v1404 = vpack.c.bf16 %v1357, %v1356
  %v1405 = vpack.c.bf16 %v1359, %v1358
  %v1406 = vpack.c.bf16 %v1361, %v1360
  %v1407 = vpack.c.bf16 %v1363, %v1362
  %v1408 = vpack.c.bf16 %v1365, %v1364
  %v1409 = vpack.c.bf16 %v1367, %v1366
  %v1410 = vpack.c.bf16 %v1369, %v1368
  %v1411 = vpack.c.bf16 %v1371, %v1370
  %v1412 = vpack.c.bf16 %v1373, %v1372
  %v1413 = vpack.c.bf16 %v1375, %v1374
  %v1414 = vpack.c.bf16 %v1377, %v1376
  %v1415 = vpack.c.bf16 %v1379, %v1378
  %v1416 = vpack.c.bf16 %v1381, %v1380
  %v1417 = vpack.c.bf16 %v1383, %v1382
  %v1418 = vpack.c.bf16 %v1385, %v1384
  %v1419 = vpack.c.bf16 %v1387, %v1386
  %v1420 = vld [vmem:[%s3] sm:$0xff]
  %v1421 = vld [vmem:[%s3 + $0x8] sm:$0xff]
  %v1422 = vld [vmem:[%s3 + $0x10] sm:$0xff]
  %v1423 = vld [vmem:[%s3 + $0x18] sm:$0xff]
  %v1424 = vld [vmem:[%s3 + $0x20] sm:$0xff]
  %v1425 = vld [vmem:[%s3 + $0x28] sm:$0xff]
  %v1426 = vld [vmem:[%s3 + $0x30] sm:$0xff]
  %v1427 = vld [vmem:[%s3 + $0x38] sm:$0xff]
  %v1428 = vld [vmem:[%s3 + $0x40] sm:$0xff]
  %v1429 = vld [vmem:[%s3 + $0x48] sm:$0xff]
  %v1430 = vld [vmem:[%s3 + $0x50] sm:$0xff]
  %v1431 = vld [vmem:[%s3 + $0x58] sm:$0xff]
  %v1432 = vld [vmem:[%s3 + $0x60] sm:$0xff]
  %v1433 = vld [vmem:[%s3 + $0x68] sm:$0xff]
  %v1434 = vld [vmem:[%s3 + $0x70] sm:$0xff]
  %v1435 = vld [vmem:[%s3 + $0x78] sm:$0xff]
  %v1436 = vld [vmem:[%s3 + $0x80] sm:$0xff]
  %v1437 = vld [vmem:[%s3 + $0x88] sm:$0xff]
  %v1438 = vld [vmem:[%s3 + $0x90] sm:$0xff]
  %v1439 = vld [vmem:[%s3 + $0x98] sm:$0xff]
  %v1440 = vld [vmem:[%s3 + $0xa0] sm:$0xff]
  %v1441 = vld [vmem:[%s3 + $0xa8] sm:$0xff]
  %v1442 = vld [vmem:[%s3 + $0xb0] sm:$0xff]
  %v1443 = vld [vmem:[%s3 + $0xb8] sm:$0xff]
  %v1444 = vld [vmem:[%s3 + $0xc0] sm:$0xff]
  %v1445 = vld [vmem:[%s3 + $0xc8] sm:$0xff]
  %v1446 = vld [vmem:[%s3 + $0xd0] sm:$0xff]
  %v1447 = vld [vmem:[%s3 + $0xd8] sm:$0xff]
  %v1448 = vld [vmem:[%s3 + $0xe0] sm:$0xff]
  %v1449 = vld [vmem:[%s3 + $0xe8] sm:$0xff]
  %v1450 = vld [vmem:[%s3 + $0xf0] sm:$0xff]
  %v1451 = vld [vmem:[%s3 + $0xf8] sm:$0xff]
  %v1452 = vld [vmem:[%s3 + $0x100] sm:$0xff]
  %v1453 = vld [vmem:[%s3 + $0x108] sm:$0xff]
  %v1454 = vld [vmem:[%s3 + $0x110] sm:$0xff]
  %v1455 = vld [vmem:[%s3 + $0x118] sm:$0xff]
  %v1456 = vld [vmem:[%s3 + $0x120] sm:$0xff]
  %v1457 = vld [vmem:[%s3 + $0x128] sm:$0xff]
  %v1458 = vld [vmem:[%s3 + $0x130] sm:$0xff]
  %v1459 = vld [vmem:[%s3 + $0x138] sm:$0xff]
  %v1460 = vld [vmem:[%s3 + $0x140] sm:$0xff]
  %v1461 = vld [vmem:[%s3 + $0x148] sm:$0xff]
  %v1462 = vld [vmem:[%s3 + $0x150] sm:$0xff]
  %v1463 = vld [vmem:[%s3 + $0x158] sm:$0xff]
  %v1464 = vld [vmem:[%s3 + $0x160] sm:$0xff]
  %v1465 = vld [vmem:[%s3 + $0x168] sm:$0xff]
  %v1466 = vld [vmem:[%s3 + $0x170] sm:$0xff]
  %v1467 = vld [vmem:[%s3 + $0x178] sm:$0xff]
  %v1468 = vld [vmem:[%s3 + $0x180] sm:$0xff]
  %v1469 = vld [vmem:[%s3 + $0x188] sm:$0xff]
  %v1470 = vld [vmem:[%s3 + $0x190] sm:$0xff]
  %v1471 = vld [vmem:[%s3 + $0x198] sm:$0xff]
  %v1472 = vld [vmem:[%s3 + $0x1a0] sm:$0xff]
  %v1473 = vld [vmem:[%s3 + $0x1a8] sm:$0xff]
  %v1474 = vld [vmem:[%s3 + $0x1b0] sm:$0xff]
  %v1475 = vld [vmem:[%s3 + $0x1b8] sm:$0xff]
  %v1476 = vld [vmem:[%s3 + $0x1c0] sm:$0xff]
  %v1477 = vld [vmem:[%s3 + $0x1c8] sm:$0xff]
  %v1478 = vld [vmem:[%s3 + $0x1d0] sm:$0xff]
  %v1479 = vld [vmem:[%s3 + $0x1d8] sm:$0xff]
  %v1480 = vld [vmem:[%s3 + $0x1e0] sm:$0xff]
  %v1481 = vld [vmem:[%s3 + $0x1e8] sm:$0xff]
  %v1482 = vld [vmem:[%s3 + $0x1f0] sm:$0xff]
  %v1483 = vld [vmem:[%s3 + $0x1f8] sm:$0xff]
  %v1484 = vld [vmem:[%s3 + $0x200] sm:$0xff]
  %v1485 = vld [vmem:[%s3 + $0x208] sm:$0xff]
  %v1486 = vld [vmem:[%s3 + $0x210] sm:$0xff]
  %v1487 = vld [vmem:[%s3 + $0x218] sm:$0xff]
  %v1488 = vld [vmem:[%s3 + $0x220] sm:$0xff]
  %v1489 = vld [vmem:[%s3 + $0x228] sm:$0xff]
  %v1490 = vld [vmem:[%s3 + $0x230] sm:$0xff]
  %v1491 = vld [vmem:[%s3 + $0x238] sm:$0xff]
  %v1492 = vld [vmem:[%s3 + $0x240] sm:$0xff]
  %v1493 = vld [vmem:[%s3 + $0x248] sm:$0xff]
  %v1494 = vld [vmem:[%s3 + $0x250] sm:$0xff]
  %v1495 = vld [vmem:[%s3 + $0x258] sm:$0xff]
  %v1496 = vld [vmem:[%s3 + $0x260] sm:$0xff]
  %v1497 = vld [vmem:[%s3 + $0x268] sm:$0xff]
  %v1498 = vld [vmem:[%s3 + $0x270] sm:$0xff]
  %v1499 = vld [vmem:[%s3 + $0x278] sm:$0xff]
  %v1500 = vld [vmem:[%s3 + $0x280] sm:$0xff]
  %v1501 = vld [vmem:[%s3 + $0x288] sm:$0xff]
  %v1502 = vld [vmem:[%s3 + $0x290] sm:$0xff]
  %v1503 = vld [vmem:[%s3 + $0x298] sm:$0xff]
  %v1504 = vld [vmem:[%s3 + $0x2a0] sm:$0xff]
  %v1505 = vld [vmem:[%s3 + $0x2a8] sm:$0xff]
  %v1506 = vld [vmem:[%s3 + $0x2b0] sm:$0xff]
  %v1507 = vld [vmem:[%s3 + $0x2b8] sm:$0xff]
  %v1508 = vld [vmem:[%s3 + $0x2c0] sm:$0xff]
  %v1509 = vld [vmem:[%s3 + $0x2c8] sm:$0xff]
  %v1510 = vld [vmem:[%s3 + $0x2d0] sm:$0xff]
  %v1511 = vld [vmem:[%s3 + $0x2d8] sm:$0xff]
  %v1512 = vld [vmem:[%s3 + $0x2e0] sm:$0xff]
  %v1513 = vld [vmem:[%s3 + $0x2e8] sm:$0xff]
  %v1514 = vld [vmem:[%s3 + $0x2f0] sm:$0xff]
  %v1515 = vld [vmem:[%s3 + $0x2f8] sm:$0xff]
  %v1516 = vld [vmem:[%s3 + $0x300] sm:$0xff]
  %v1517 = vld [vmem:[%s3 + $0x308] sm:$0xff]
  %v1518 = vld [vmem:[%s3 + $0x310] sm:$0xff]
  %v1519 = vld [vmem:[%s3 + $0x318] sm:$0xff]
  %v1520 = vld [vmem:[%s3 + $0x320] sm:$0xff]
  %v1521 = vld [vmem:[%s3 + $0x328] sm:$0xff]
  %v1522 = vld [vmem:[%s3 + $0x330] sm:$0xff]
  %v1523 = vld [vmem:[%s3 + $0x338] sm:$0xff]
  %v1524 = vld [vmem:[%s3 + $0x340] sm:$0xff]
  %v1525 = vld [vmem:[%s3 + $0x348] sm:$0xff]
  %v1526 = vld [vmem:[%s3 + $0x350] sm:$0xff]
  %v1527 = vld [vmem:[%s3 + $0x358] sm:$0xff]
  %v1528 = vld [vmem:[%s3 + $0x360] sm:$0xff]
  %v1529 = vld [vmem:[%s3 + $0x368] sm:$0xff]
  %v1530 = vld [vmem:[%s3 + $0x370] sm:$0xff]
  %v1531 = vld [vmem:[%s3 + $0x378] sm:$0xff]
  %v1532 = vld [vmem:[%s3 + $0x380] sm:$0xff]
  %v1533 = vld [vmem:[%s3 + $0x388] sm:$0xff]
  %v1534 = vld [vmem:[%s3 + $0x390] sm:$0xff]
  %v1535 = vld [vmem:[%s3 + $0x398] sm:$0xff]
  %v1536 = vld [vmem:[%s3 + $0x3a0] sm:$0xff]
  %v1537 = vld [vmem:[%s3 + $0x3a8] sm:$0xff]
  %v1538 = vld [vmem:[%s3 + $0x3b0] sm:$0xff]
  %v1539 = vld [vmem:[%s3 + $0x3b8] sm:$0xff]
  %v1540 = vld [vmem:[%s3 + $0x3c0] sm:$0xff]
  %v1541 = vld [vmem:[%s3 + $0x3c8] sm:$0xff]
  %v1542 = vld [vmem:[%s3 + $0x3d0] sm:$0xff]
  %v1543 = vld [vmem:[%s3 + $0x3d8] sm:$0xff]
  %v1544 = vld [vmem:[%s3 + $0x3e0] sm:$0xff]
  %v1545 = vld [vmem:[%s3 + $0x3e8] sm:$0xff]
  %v1546 = vld [vmem:[%s3 + $0x3f0] sm:$0xff]
  %v1547 = vld [vmem:[%s3 + $0x3f8] sm:$0xff]
  %v1548 = vld [vmem:[%s4] sm:$0xff]
  %v1549 = vld [vmem:[%s4 + $0x8] sm:$0xff]
  %v1550 = vld [vmem:[%s4 + $0x10] sm:$0xff]
  %v1551 = vld [vmem:[%s4 + $0x18] sm:$0xff]
  %v1552 = vld [vmem:[%s4 + $0x20] sm:$0xff]
  %v1553 = vld [vmem:[%s4 + $0x28] sm:$0xff]
  %v1554 = vld [vmem:[%s4 + $0x30] sm:$0xff]
  %v1555 = vld [vmem:[%s4 + $0x38] sm:$0xff]
  %v1556 = vld [vmem:[%s4 + $0x40] sm:$0xff]
  %v1557 = vld [vmem:[%s4 + $0x48] sm:$0xff]
  %v1558 = vld [vmem:[%s4 + $0x50] sm:$0xff]
  %v1559 = vld [vmem:[%s4 + $0x58] sm:$0xff]
  %v1560 = vld [vmem:[%s4 + $0x60] sm:$0xff]
  %v1561 = vld [vmem:[%s4 + $0x68] sm:$0xff]
  %v1562 = vld [vmem:[%s4 + $0x70] sm:$0xff]
  %v1563 = vld [vmem:[%s4 + $0x78] sm:$0xff]
  %v1564 = vld [vmem:[%s4 + $0x80] sm:$0xff]
  %v1565 = vld [vmem:[%s4 + $0x88] sm:$0xff]
  %v1566 = vld [vmem:[%s4 + $0x90] sm:$0xff]
  %v1567 = vld [vmem:[%s4 + $0x98] sm:$0xff]
  %v1568 = vld [vmem:[%s4 + $0xa0] sm:$0xff]
  %v1569 = vld [vmem:[%s4 + $0xa8] sm:$0xff]
  %v1570 = vld [vmem:[%s4 + $0xb0] sm:$0xff]
  %v1571 = vld [vmem:[%s4 + $0xb8] sm:$0xff]
  %v1572 = vld [vmem:[%s4 + $0xc0] sm:$0xff]
  %v1573 = vld [vmem:[%s4 + $0xc8] sm:$0xff]
  %v1574 = vld [vmem:[%s4 + $0xd0] sm:$0xff]
  %v1575 = vld [vmem:[%s4 + $0xd8] sm:$0xff]
  %v1576 = vld [vmem:[%s4 + $0xe0] sm:$0xff]
  %v1577 = vld [vmem:[%s4 + $0xe8] sm:$0xff]
  %v1578 = vld [vmem:[%s4 + $0xf0] sm:$0xff]
  %v1579 = vld [vmem:[%s4 + $0xf8] sm:$0xff]
  %v1580 = vld [vmem:[%s4 + $0x100] sm:$0xff]
  %v1581 = vld [vmem:[%s4 + $0x108] sm:$0xff]
  %v1582 = vld [vmem:[%s4 + $0x110] sm:$0xff]
  %v1583 = vld [vmem:[%s4 + $0x118] sm:$0xff]
  %v1584 = vld [vmem:[%s4 + $0x120] sm:$0xff]
  %v1585 = vld [vmem:[%s4 + $0x128] sm:$0xff]
  %v1586 = vld [vmem:[%s4 + $0x130] sm:$0xff]
  %v1587 = vld [vmem:[%s4 + $0x138] sm:$0xff]
  %v1588 = vld [vmem:[%s4 + $0x140] sm:$0xff]
  %v1589 = vld [vmem:[%s4 + $0x148] sm:$0xff]
  %v1590 = vld [vmem:[%s4 + $0x150] sm:$0xff]
  %v1591 = vld [vmem:[%s4 + $0x158] sm:$0xff]
  %v1592 = vld [vmem:[%s4 + $0x160] sm:$0xff]
  %v1593 = vld [vmem:[%s4 + $0x168] sm:$0xff]
  %v1594 = vld [vmem:[%s4 + $0x170] sm:$0xff]
  %v1595 = vld [vmem:[%s4 + $0x178] sm:$0xff]
  %v1596 = vld [vmem:[%s4 + $0x180] sm:$0xff]
  %v1597 = vld [vmem:[%s4 + $0x188] sm:$0xff]
  %v1598 = vld [vmem:[%s4 + $0x190] sm:$0xff]
  %v1599 = vld [vmem:[%s4 + $0x198] sm:$0xff]
  %v1600 = vld [vmem:[%s4 + $0x1a0] sm:$0xff]
  %v1601 = vld [vmem:[%s4 + $0x1a8] sm:$0xff]
  %v1602 = vld [vmem:[%s4 + $0x1b0] sm:$0xff]
  %v1603 = vld [vmem:[%s4 + $0x1b8] sm:$0xff]
  %v1604 = vld [vmem:[%s4 + $0x1c0] sm:$0xff]
  %v1605 = vld [vmem:[%s4 + $0x1c8] sm:$0xff]
  %v1606 = vld [vmem:[%s4 + $0x1d0] sm:$0xff]
  %v1607 = vld [vmem:[%s4 + $0x1d8] sm:$0xff]
  %v1608 = vld [vmem:[%s4 + $0x1e0] sm:$0xff]
  %v1609 = vld [vmem:[%s4 + $0x1e8] sm:$0xff]
  %v1610 = vld [vmem:[%s4 + $0x1f0] sm:$0xff]
  %v1611 = vld [vmem:[%s4 + $0x1f8] sm:$0xff]
  %1613 = vset.pattern.permute.xlu0 0
  %1614 = vperm.xlu0 %1613, %v1548
  %v1615 = vpop.permute.xlu0 %1614
  %1618 = vset.pattern.permute.xlu0 0
  %1619 = vperm.xlu0 %1618, %v1549
  %v1620 = vpop.permute.xlu0 %1619
  %1623 = vset.pattern.permute.xlu0 0
  %1624 = vperm.xlu0 %1623, %v1550
  %v1625 = vpop.permute.xlu0 %1624
  %1628 = vset.pattern.permute.xlu0 0
  %1629 = vperm.xlu0 %1628, %v1551
  %v1630 = vpop.permute.xlu0 %1629
  %1633 = vset.pattern.permute.xlu0 0
  %1634 = vperm.xlu0 %1633, %v1552
  %v1635 = vpop.permute.xlu0 %1634
  %1638 = vset.pattern.permute.xlu0 0
  %1639 = vperm.xlu0 %1638, %v1553
  %v1640 = vpop.permute.xlu0 %1639
  %1643 = vset.pattern.permute.xlu0 0
  %1644 = vperm.xlu0 %1643, %v1554
  %v1645 = vpop.permute.xlu0 %1644
  %1648 = vset.pattern.permute.xlu0 0
  %1649 = vperm.xlu0 %1648, %v1555
  %v1650 = vpop.permute.xlu0 %1649
  %1653 = vset.pattern.permute.xlu0 0
  %1654 = vperm.xlu0 %1653, %v1556
  %v1655 = vpop.permute.xlu0 %1654
  %1658 = vset.pattern.permute.xlu0 0
  %1659 = vperm.xlu0 %1658, %v1557
  %v1660 = vpop.permute.xlu0 %1659
  %1663 = vset.pattern.permute.xlu0 0
  %1664 = vperm.xlu0 %1663, %v1558
  %v1665 = vpop.permute.xlu0 %1664
  %1668 = vset.pattern.permute.xlu0 0
  %1669 = vperm.xlu0 %1668, %v1559
  %v1670 = vpop.permute.xlu0 %1669
  %1673 = vset.pattern.permute.xlu0 0
  %1674 = vperm.xlu0 %1673, %v1560
  %v1675 = vpop.permute.xlu0 %1674
  %1678 = vset.pattern.permute.xlu0 0
  %1679 = vperm.xlu0 %1678, %v1561
  %v1680 = vpop.permute.xlu0 %1679
  %1683 = vset.pattern.permute.xlu0 0
  %1684 = vperm.xlu0 %1683, %v1562
  %v1685 = vpop.permute.xlu0 %1684
  %1688 = vset.pattern.permute.xlu0 0
  %1689 = vperm.xlu0 %1688, %v1563
  %v1690 = vpop.permute.xlu0 %1689
  %1693 = vset.pattern.permute.xlu0 0
  %1694 = vperm.xlu0 %1693, %v1564
  %v1695 = vpop.permute.xlu0 %1694
  %1698 = vset.pattern.permute.xlu0 0
  %1699 = vperm.xlu0 %1698, %v1565
  %v1700 = vpop.permute.xlu0 %1699
  %1703 = vset.pattern.permute.xlu0 0
  %1704 = vperm.xlu0 %1703, %v1566
  %v1705 = vpop.permute.xlu0 %1704
  %1708 = vset.pattern.permute.xlu0 0
  %1709 = vperm.xlu0 %1708, %v1567
  %v1710 = vpop.permute.xlu0 %1709
  %1713 = vset.pattern.permute.xlu0 0
  %1714 = vperm.xlu0 %1713, %v1568
  %v1715 = vpop.permute.xlu0 %1714
  %1718 = vset.pattern.permute.xlu0 0
  %1719 = vperm.xlu0 %1718, %v1569
  %v1720 = vpop.permute.xlu0 %1719
  %1723 = vset.pattern.permute.xlu0 0
  %1724 = vperm.xlu0 %1723, %v1570
  %v1725 = vpop.permute.xlu0 %1724
  %1728 = vset.pattern.permute.xlu0 0
  %1729 = vperm.xlu0 %1728, %v1571
  %v1730 = vpop.permute.xlu0 %1729
  %1733 = vset.pattern.permute.xlu0 0
  %1734 = vperm.xlu0 %1733, %v1572
  %v1735 = vpop.permute.xlu0 %1734
  %1738 = vset.pattern.permute.xlu0 0
  %1739 = vperm.xlu0 %1738, %v1573
  %v1740 = vpop.permute.xlu0 %1739
  %1743 = vset.pattern.permute.xlu0 0
  %1744 = vperm.xlu0 %1743, %v1574
  %v1745 = vpop.permute.xlu0 %1744
  %1748 = vset.pattern.permute.xlu0 0
  %1749 = vperm.xlu0 %1748, %v1575
  %v1750 = vpop.permute.xlu0 %1749
  %1753 = vset.pattern.permute.xlu0 0
  %1754 = vperm.xlu0 %1753, %v1576
  %v1755 = vpop.permute.xlu0 %1754
  %1758 = vset.pattern.permute.xlu0 0
  %1759 = vperm.xlu0 %1758, %v1577
  %v1760 = vpop.permute.xlu0 %1759
  %1763 = vset.pattern.permute.xlu0 0
  %1764 = vperm.xlu0 %1763, %v1578
  %v1765 = vpop.permute.xlu0 %1764
  %1768 = vset.pattern.permute.xlu0 0
  %1769 = vperm.xlu0 %1768, %v1579
  %v1770 = vpop.permute.xlu0 %1769
  %1773 = vset.pattern.permute.xlu0 0
  %1774 = vperm.xlu0 %1773, %v1580
  %v1775 = vpop.permute.xlu0 %1774
  %1778 = vset.pattern.permute.xlu0 0
  %1779 = vperm.xlu0 %1778, %v1581
  %v1780 = vpop.permute.xlu0 %1779
  %1783 = vset.pattern.permute.xlu0 0
  %1784 = vperm.xlu0 %1783, %v1582
  %v1785 = vpop.permute.xlu0 %1784
  %1788 = vset.pattern.permute.xlu0 0
  %1789 = vperm.xlu0 %1788, %v1583
  %v1790 = vpop.permute.xlu0 %1789
  %1793 = vset.pattern.permute.xlu0 0
  %1794 = vperm.xlu0 %1793, %v1584
  %v1795 = vpop.permute.xlu0 %1794
  %1798 = vset.pattern.permute.xlu0 0
  %1799 = vperm.xlu0 %1798, %v1585
  %v1800 = vpop.permute.xlu0 %1799
  %1803 = vset.pattern.permute.xlu0 0
  %1804 = vperm.xlu0 %1803, %v1586
  %v1805 = vpop.permute.xlu0 %1804
  %1808 = vset.pattern.permute.xlu0 0
  %1809 = vperm.xlu0 %1808, %v1587
  %v1810 = vpop.permute.xlu0 %1809
  %1813 = vset.pattern.permute.xlu0 0
  %1814 = vperm.xlu0 %1813, %v1588
  %v1815 = vpop.permute.xlu0 %1814
  %1818 = vset.pattern.permute.xlu0 0
  %1819 = vperm.xlu0 %1818, %v1589
  %v1820 = vpop.permute.xlu0 %1819
  %1823 = vset.pattern.permute.xlu0 0
  %1824 = vperm.xlu0 %1823, %v1590
  %v1825 = vpop.permute.xlu0 %1824
  %1828 = vset.pattern.permute.xlu0 0
  %1829 = vperm.xlu0 %1828, %v1591
  %v1830 = vpop.permute.xlu0 %1829
  %1833 = vset.pattern.permute.xlu0 0
  %1834 = vperm.xlu0 %1833, %v1592
  %v1835 = vpop.permute.xlu0 %1834
  %1838 = vset.pattern.permute.xlu0 0
  %1839 = vperm.xlu0 %1838, %v1593
  %v1840 = vpop.permute.xlu0 %1839
  %1843 = vset.pattern.permute.xlu0 0
  %1844 = vperm.xlu0 %1843, %v1594
  %v1845 = vpop.permute.xlu0 %1844
  %1848 = vset.pattern.permute.xlu0 0
  %1849 = vperm.xlu0 %1848, %v1595
  %v1850 = vpop.permute.xlu0 %1849
  %1853 = vset.pattern.permute.xlu0 0
  %1854 = vperm.xlu0 %1853, %v1596
  %v1855 = vpop.permute.xlu0 %1854
  %1858 = vset.pattern.permute.xlu0 0
  %1859 = vperm.xlu0 %1858, %v1597
  %v1860 = vpop.permute.xlu0 %1859
  %1863 = vset.pattern.permute.xlu0 0
  %1864 = vperm.xlu0 %1863, %v1598
  %v1865 = vpop.permute.xlu0 %1864
  %1868 = vset.pattern.permute.xlu0 0
  %1869 = vperm.xlu0 %1868, %v1599
  %v1870 = vpop.permute.xlu0 %1869
  %1873 = vset.pattern.permute.xlu0 0
  %1874 = vperm.xlu0 %1873, %v1600
  %v1875 = vpop.permute.xlu0 %1874
  %1878 = vset.pattern.permute.xlu0 0
  %1879 = vperm.xlu0 %1878, %v1601
  %v1880 = vpop.permute.xlu0 %1879
  %1883 = vset.pattern.permute.xlu0 0
  %1884 = vperm.xlu0 %1883, %v1602
  %v1885 = vpop.permute.xlu0 %1884
  %1888 = vset.pattern.permute.xlu0 0
  %1889 = vperm.xlu0 %1888, %v1603
  %v1890 = vpop.permute.xlu0 %1889
  %1893 = vset.pattern.permute.xlu0 0
  %1894 = vperm.xlu0 %1893, %v1604
  %v1895 = vpop.permute.xlu0 %1894
  %1898 = vset.pattern.permute.xlu0 0
  %1899 = vperm.xlu0 %1898, %v1605
  %v1900 = vpop.permute.xlu0 %1899
  %1903 = vset.pattern.permute.xlu0 0
  %1904 = vperm.xlu0 %1903, %v1606
  %v1905 = vpop.permute.xlu0 %1904
  %1908 = vset.pattern.permute.xlu0 0
  %1909 = vperm.xlu0 %1908, %v1607
  %v1910 = vpop.permute.xlu0 %1909
  %1913 = vset.pattern.permute.xlu0 0
  %1914 = vperm.xlu0 %1913, %v1608
  %v1915 = vpop.permute.xlu0 %1914
  %1918 = vset.pattern.permute.xlu0 0
  %1919 = vperm.xlu0 %1918, %v1609
  %v1920 = vpop.permute.xlu0 %1919
  %1923 = vset.pattern.permute.xlu0 0
  %1924 = vperm.xlu0 %1923, %v1610
  %v1925 = vpop.permute.xlu0 %1924
  %1928 = vset.pattern.permute.xlu0 0
  %1929 = vperm.xlu0 %1928, %v1611
  %v1930 = vpop.permute.xlu0 %1929
  %v2060 = vunpack.c.l.b16 %v1420
  %v2061 = vunpack.c.h.b16 %v1420
  %v2062 = vunpack.c.l.b16 %v1421
  %v2063 = vunpack.c.h.b16 %v1421
  %v2064 = vunpack.c.l.b16 %v1422
  %v2065 = vunpack.c.h.b16 %v1422
  %v2066 = vunpack.c.l.b16 %v1423
  %v2067 = vunpack.c.h.b16 %v1423
  %v2068 = vunpack.c.l.b16 %v1424
  %v2069 = vunpack.c.h.b16 %v1424
  %v2070 = vunpack.c.l.b16 %v1425
  %v2071 = vunpack.c.h.b16 %v1425
  %v2072 = vunpack.c.l.b16 %v1426
  %v2073 = vunpack.c.h.b16 %v1426
  %v2074 = vunpack.c.l.b16 %v1427
  %v2075 = vunpack.c.h.b16 %v1427
  %v2076 = vunpack.c.l.b16 %v1428
  %v2077 = vunpack.c.h.b16 %v1428
  %v2078 = vunpack.c.l.b16 %v1429
  %v2079 = vunpack.c.h.b16 %v1429
  %v2080 = vunpack.c.l.b16 %v1430
  %v2081 = vunpack.c.h.b16 %v1430
  %v2082 = vunpack.c.l.b16 %v1431
  %v2083 = vunpack.c.h.b16 %v1431
  %v2084 = vunpack.c.l.b16 %v1432
  %v2085 = vunpack.c.h.b16 %v1432
  %v2086 = vunpack.c.l.b16 %v1433
  %v2087 = vunpack.c.h.b16 %v1433
  %v2088 = vunpack.c.l.b16 %v1434
  %v2089 = vunpack.c.h.b16 %v1434
  %v2090 = vunpack.c.l.b16 %v1435
  %v2091 = vunpack.c.h.b16 %v1435
  %v2092 = vunpack.c.l.b16 %v1436
  %v2093 = vunpack.c.h.b16 %v1436
  %v2094 = vunpack.c.l.b16 %v1437
  %v2095 = vunpack.c.h.b16 %v1437
  %v2096 = vunpack.c.l.b16 %v1438
  %v2097 = vunpack.c.h.b16 %v1438
  %v2098 = vunpack.c.l.b16 %v1439
  %v2099 = vunpack.c.h.b16 %v1439
  %v2100 = vunpack.c.l.b16 %v1440
  %v2101 = vunpack.c.h.b16 %v1440
  %v2102 = vunpack.c.l.b16 %v1441
  %v2103 = vunpack.c.h.b16 %v1441
  %v2104 = vunpack.c.l.b16 %v1442
  %v2105 = vunpack.c.h.b16 %v1442
  %v2106 = vunpack.c.l.b16 %v1443
  %v2107 = vunpack.c.h.b16 %v1443
  %v2108 = vunpack.c.l.b16 %v1444
  %v2109 = vunpack.c.h.b16 %v1444
  %v2110 = vunpack.c.l.b16 %v1445
  %v2111 = vunpack.c.h.b16 %v1445
  %v2112 = vunpack.c.l.b16 %v1446
  %v2113 = vunpack.c.h.b16 %v1446
  %v2114 = vunpack.c.l.b16 %v1447
  %v2115 = vunpack.c.h.b16 %v1447
  %v2116 = vunpack.c.l.b16 %v1448
  %v2117 = vunpack.c.h.b16 %v1448
  %v2118 = vunpack.c.l.b16 %v1449
  %v2119 = vunpack.c.h.b16 %v1449
  %v2120 = vunpack.c.l.b16 %v1450
  %v2121 = vunpack.c.h.b16 %v1450
  %v2122 = vunpack.c.l.b16 %v1451
  %v2123 = vunpack.c.h.b16 %v1451
  %v2124 = vunpack.c.l.b16 %v1452
  %v2125 = vunpack.c.h.b16 %v1452
  %v2126 = vunpack.c.l.b16 %v1453
  %v2127 = vunpack.c.h.b16 %v1453
  %v2128 = vunpack.c.l.b16 %v1454
  %v2129 = vunpack.c.h.b16 %v1454
  %v2130 = vunpack.c.l.b16 %v1455
  %v2131 = vunpack.c.h.b16 %v1455
  %v2132 = vunpack.c.l.b16 %v1456
  %v2133 = vunpack.c.h.b16 %v1456
  %v2134 = vunpack.c.l.b16 %v1457
  %v2135 = vunpack.c.h.b16 %v1457
  %v2136 = vunpack.c.l.b16 %v1458
  %v2137 = vunpack.c.h.b16 %v1458
  %v2138 = vunpack.c.l.b16 %v1459
  %v2139 = vunpack.c.h.b16 %v1459
  %v2140 = vunpack.c.l.b16 %v1460
  %v2141 = vunpack.c.h.b16 %v1460
  %v2142 = vunpack.c.l.b16 %v1461
  %v2143 = vunpack.c.h.b16 %v1461
  %v2144 = vunpack.c.l.b16 %v1462
  %v2145 = vunpack.c.h.b16 %v1462
  %v2146 = vunpack.c.l.b16 %v1463
  %v2147 = vunpack.c.h.b16 %v1463
  %v2148 = vunpack.c.l.b16 %v1464
  %v2149 = vunpack.c.h.b16 %v1464
  %v2150 = vunpack.c.l.b16 %v1465
  %v2151 = vunpack.c.h.b16 %v1465
  %v2152 = vunpack.c.l.b16 %v1466
  %v2153 = vunpack.c.h.b16 %v1466
  %v2154 = vunpack.c.l.b16 %v1467
  %v2155 = vunpack.c.h.b16 %v1467
  %v2156 = vunpack.c.l.b16 %v1468
  %v2157 = vunpack.c.h.b16 %v1468
  %v2158 = vunpack.c.l.b16 %v1469
  %v2159 = vunpack.c.h.b16 %v1469
  %v2160 = vunpack.c.l.b16 %v1470
  %v2161 = vunpack.c.h.b16 %v1470
  %v2162 = vunpack.c.l.b16 %v1471
  %v2163 = vunpack.c.h.b16 %v1471
  %v2164 = vunpack.c.l.b16 %v1472
  %v2165 = vunpack.c.h.b16 %v1472
  %v2166 = vunpack.c.l.b16 %v1473
  %v2167 = vunpack.c.h.b16 %v1473
  %v2168 = vunpack.c.l.b16 %v1474
  %v2169 = vunpack.c.h.b16 %v1474
  %v2170 = vunpack.c.l.b16 %v1475
  %v2171 = vunpack.c.h.b16 %v1475
  %v2172 = vunpack.c.l.b16 %v1476
  %v2173 = vunpack.c.h.b16 %v1476
  %v2174 = vunpack.c.l.b16 %v1477
  %v2175 = vunpack.c.h.b16 %v1477
  %v2176 = vunpack.c.l.b16 %v1478
  %v2177 = vunpack.c.h.b16 %v1478
  %v2178 = vunpack.c.l.b16 %v1479
  %v2179 = vunpack.c.h.b16 %v1479
  %v2180 = vunpack.c.l.b16 %v1480
  %v2181 = vunpack.c.h.b16 %v1480
  %v2182 = vunpack.c.l.b16 %v1481
  %v2183 = vunpack.c.h.b16 %v1481
  %v2184 = vunpack.c.l.b16 %v1482
  %v2185 = vunpack.c.h.b16 %v1482
  %v2186 = vunpack.c.l.b16 %v1483
  %v2187 = vunpack.c.h.b16 %v1483
  %v2188 = vunpack.c.l.b16 %v1484
  %v2189 = vunpack.c.h.b16 %v1484
  %v2190 = vunpack.c.l.b16 %v1485
  %v2191 = vunpack.c.h.b16 %v1485
  %v2192 = vunpack.c.l.b16 %v1486
  %v2193 = vunpack.c.h.b16 %v1486
  %v2194 = vunpack.c.l.b16 %v1487
  %v2195 = vunpack.c.h.b16 %v1487
  %v2196 = vunpack.c.l.b16 %v1488
  %v2197 = vunpack.c.h.b16 %v1488
  %v2198 = vunpack.c.l.b16 %v1489
  %v2199 = vunpack.c.h.b16 %v1489
  %v2200 = vunpack.c.l.b16 %v1490
  %v2201 = vunpack.c.h.b16 %v1490
  %v2202 = vunpack.c.l.b16 %v1491
  %v2203 = vunpack.c.h.b16 %v1491
  %v2204 = vunpack.c.l.b16 %v1492
  %v2205 = vunpack.c.h.b16 %v1492
  %v2206 = vunpack.c.l.b16 %v1493
  %v2207 = vunpack.c.h.b16 %v1493
  %v2208 = vunpack.c.l.b16 %v1494
  %v2209 = vunpack.c.h.b16 %v1494
  %v2210 = vunpack.c.l.b16 %v1495
  %v2211 = vunpack.c.h.b16 %v1495
  %v2212 = vunpack.c.l.b16 %v1496
  %v2213 = vunpack.c.h.b16 %v1496
  %v2214 = vunpack.c.l.b16 %v1497
  %v2215 = vunpack.c.h.b16 %v1497
  %v2216 = vunpack.c.l.b16 %v1498
  %v2217 = vunpack.c.h.b16 %v1498
  %v2218 = vunpack.c.l.b16 %v1499
  %v2219 = vunpack.c.h.b16 %v1499
  %v2220 = vunpack.c.l.b16 %v1500
  %v2221 = vunpack.c.h.b16 %v1500
  %v2222 = vunpack.c.l.b16 %v1501
  %v2223 = vunpack.c.h.b16 %v1501
  %v2224 = vunpack.c.l.b16 %v1502
  %v2225 = vunpack.c.h.b16 %v1502
  %v2226 = vunpack.c.l.b16 %v1503
  %v2227 = vunpack.c.h.b16 %v1503
  %v2228 = vunpack.c.l.b16 %v1504
  %v2229 = vunpack.c.h.b16 %v1504
  %v2230 = vunpack.c.l.b16 %v1505
  %v2231 = vunpack.c.h.b16 %v1505
  %v2232 = vunpack.c.l.b16 %v1506
  %v2233 = vunpack.c.h.b16 %v1506
  %v2234 = vunpack.c.l.b16 %v1507
  %v2235 = vunpack.c.h.b16 %v1507
  %v2236 = vunpack.c.l.b16 %v1508
  %v2237 = vunpack.c.h.b16 %v1508
  %v2238 = vunpack.c.l.b16 %v1509
  %v2239 = vunpack.c.h.b16 %v1509
  %v2240 = vunpack.c.l.b16 %v1510
  %v2241 = vunpack.c.h.b16 %v1510
  %v2242 = vunpack.c.l.b16 %v1511
  %v2243 = vunpack.c.h.b16 %v1511
  %v2244 = vunpack.c.l.b16 %v1512
  %v2245 = vunpack.c.h.b16 %v1512
  %v2246 = vunpack.c.l.b16 %v1513
  %v2247 = vunpack.c.h.b16 %v1513
  %v2248 = vunpack.c.l.b16 %v1514
  %v2249 = vunpack.c.h.b16 %v1514
  %v2250 = vunpack.c.l.b16 %v1515
  %v2251 = vunpack.c.h.b16 %v1515
  %v2252 = vunpack.c.l.b16 %v1516
  %v2253 = vunpack.c.h.b16 %v1516
  %v2254 = vunpack.c.l.b16 %v1517
  %v2255 = vunpack.c.h.b16 %v1517
  %v2256 = vunpack.c.l.b16 %v1518
  %v2257 = vunpack.c.h.b16 %v1518
  %v2258 = vunpack.c.l.b16 %v1519
  %v2259 = vunpack.c.h.b16 %v1519
  %v2260 = vunpack.c.l.b16 %v1520
  %v2261 = vunpack.c.h.b16 %v1520
  %v2262 = vunpack.c.l.b16 %v1521
  %v2263 = vunpack.c.h.b16 %v1521
  %v2264 = vunpack.c.l.b16 %v1522
  %v2265 = vunpack.c.h.b16 %v1522
  %v2266 = vunpack.c.l.b16 %v1523
  %v2267 = vunpack.c.h.b16 %v1523
  %v2268 = vunpack.c.l.b16 %v1524
  %v2269 = vunpack.c.h.b16 %v1524
  %v2270 = vunpack.c.l.b16 %v1525
  %v2271 = vunpack.c.h.b16 %v1525
  %v2272 = vunpack.c.l.b16 %v1526
  %v2273 = vunpack.c.h.b16 %v1526
  %v2274 = vunpack.c.l.b16 %v1527
  %v2275 = vunpack.c.h.b16 %v1527
  %v2276 = vunpack.c.l.b16 %v1528
  %v2277 = vunpack.c.h.b16 %v1528
  %v2278 = vunpack.c.l.b16 %v1529
  %v2279 = vunpack.c.h.b16 %v1529
  %v2280 = vunpack.c.l.b16 %v1530
  %v2281 = vunpack.c.h.b16 %v1530
  %v2282 = vunpack.c.l.b16 %v1531
  %v2283 = vunpack.c.h.b16 %v1531
  %v2284 = vunpack.c.l.b16 %v1532
  %v2285 = vunpack.c.h.b16 %v1532
  %v2286 = vunpack.c.l.b16 %v1533
  %v2287 = vunpack.c.h.b16 %v1533
  %v2288 = vunpack.c.l.b16 %v1534
  %v2289 = vunpack.c.h.b16 %v1534
  %v2290 = vunpack.c.l.b16 %v1535
  %v2291 = vunpack.c.h.b16 %v1535
  %v2292 = vunpack.c.l.b16 %v1536
  %v2293 = vunpack.c.h.b16 %v1536
  %v2294 = vunpack.c.l.b16 %v1537
  %v2295 = vunpack.c.h.b16 %v1537
  %v2296 = vunpack.c.l.b16 %v1538
  %v2297 = vunpack.c.h.b16 %v1538
  %v2298 = vunpack.c.l.b16 %v1539
  %v2299 = vunpack.c.h.b16 %v1539
  %v2300 = vunpack.c.l.b16 %v1540
  %v2301 = vunpack.c.h.b16 %v1540
  %v2302 = vunpack.c.l.b16 %v1541
  %v2303 = vunpack.c.h.b16 %v1541
  %v2304 = vunpack.c.l.b16 %v1542
  %v2305 = vunpack.c.h.b16 %v1542
  %v2306 = vunpack.c.l.b16 %v1543
  %v2307 = vunpack.c.h.b16 %v1543
  %v2308 = vunpack.c.l.b16 %v1544
  %v2309 = vunpack.c.h.b16 %v1544
  %v2310 = vunpack.c.l.b16 %v1545
  %v2311 = vunpack.c.h.b16 %v1545
  %v2312 = vunpack.c.l.b16 %v1546
  %v2313 = vunpack.c.h.b16 %v1546
  %v2314 = vunpack.c.l.b16 %v1547
  %v2315 = vunpack.c.h.b16 %v1547
  %v2316 = vpack.c.b16 %v2064, %v2060
  %v2317 = vpack.c.b16 %v2065, %v2061
  %v2318 = vpack.c.b16 %v2066, %v2062
  %v2319 = vpack.c.b16 %v2067, %v2063
  %v2320 = vpack.c.b16 %v2072, %v2068
  %v2321 = vpack.c.b16 %v2073, %v2069
  %v2322 = vpack.c.b16 %v2074, %v2070
  %v2323 = vpack.c.b16 %v2075, %v2071
  %v2324 = vpack.c.b16 %v2080, %v2076
  %v2325 = vpack.c.b16 %v2081, %v2077
  %v2326 = vpack.c.b16 %v2082, %v2078
  %v2327 = vpack.c.b16 %v2083, %v2079
  %v2328 = vpack.c.b16 %v2088, %v2084
  %v2329 = vpack.c.b16 %v2089, %v2085
  %v2330 = vpack.c.b16 %v2090, %v2086
  %v2331 = vpack.c.b16 %v2091, %v2087
  %v2332 = vpack.c.b16 %v2096, %v2092
  %v2333 = vpack.c.b16 %v2097, %v2093
  %v2334 = vpack.c.b16 %v2098, %v2094
  %v2335 = vpack.c.b16 %v2099, %v2095
  %v2336 = vpack.c.b16 %v2104, %v2100
  %v2337 = vpack.c.b16 %v2105, %v2101
  %v2338 = vpack.c.b16 %v2106, %v2102
  %v2339 = vpack.c.b16 %v2107, %v2103
  %v2340 = vpack.c.b16 %v2112, %v2108
  %v2341 = vpack.c.b16 %v2113, %v2109
  %v2342 = vpack.c.b16 %v2114, %v2110
  %v2343 = vpack.c.b16 %v2115, %v2111
  %v2344 = vpack.c.b16 %v2120, %v2116
  %v2345 = vpack.c.b16 %v2121, %v2117
  %v2346 = vpack.c.b16 %v2122, %v2118
  %v2347 = vpack.c.b16 %v2123, %v2119
  %v2348 = vpack.c.b16 %v2128, %v2124
  %v2349 = vpack.c.b16 %v2129, %v2125
  %v2350 = vpack.c.b16 %v2130, %v2126
  %v2351 = vpack.c.b16 %v2131, %v2127
  %v2352 = vpack.c.b16 %v2136, %v2132
  %v2353 = vpack.c.b16 %v2137, %v2133
  %v2354 = vpack.c.b16 %v2138, %v2134
  %v2355 = vpack.c.b16 %v2139, %v2135
  %v2356 = vpack.c.b16 %v2144, %v2140
  %v2357 = vpack.c.b16 %v2145, %v2141
  %v2358 = vpack.c.b16 %v2146, %v2142
  %v2359 = vpack.c.b16 %v2147, %v2143
  %v2360 = vpack.c.b16 %v2152, %v2148
  %v2361 = vpack.c.b16 %v2153, %v2149
  %v2362 = vpack.c.b16 %v2154, %v2150
  %v2363 = vpack.c.b16 %v2155, %v2151
  %v2364 = vpack.c.b16 %v2160, %v2156
  %v2365 = vpack.c.b16 %v2161, %v2157
  %v2366 = vpack.c.b16 %v2162, %v2158
  %v2367 = vpack.c.b16 %v2163, %v2159
  %v2368 = vpack.c.b16 %v2168, %v2164
  %v2369 = vpack.c.b16 %v2169, %v2165
  %v2370 = vpack.c.b16 %v2170, %v2166
  %v2371 = vpack.c.b16 %v2171, %v2167
  %v2372 = vpack.c.b16 %v2176, %v2172
  %v2373 = vpack.c.b16 %v2177, %v2173
  %v2374 = vpack.c.b16 %v2178, %v2174
  %v2375 = vpack.c.b16 %v2179, %v2175
  %v2376 = vpack.c.b16 %v2184, %v2180
  %v2377 = vpack.c.b16 %v2185, %v2181
  %v2378 = vpack.c.b16 %v2186, %v2182
  %v2379 = vpack.c.b16 %v2187, %v2183
  %v2380 = vpack.c.b16 %v2192, %v2188
  %v2381 = vpack.c.b16 %v2193, %v2189
  %v2382 = vpack.c.b16 %v2194, %v2190
  %v2383 = vpack.c.b16 %v2195, %v2191
  %v2384 = vpack.c.b16 %v2200, %v2196
  %v2385 = vpack.c.b16 %v2201, %v2197
  %v2386 = vpack.c.b16 %v2202, %v2198
  %v2387 = vpack.c.b16 %v2203, %v2199
  %v2388 = vpack.c.b16 %v2208, %v2204
  %v2389 = vpack.c.b16 %v2209, %v2205
  %v2390 = vpack.c.b16 %v2210, %v2206
  %v2391 = vpack.c.b16 %v2211, %v2207
  %v2392 = vpack.c.b16 %v2216, %v2212
  %v2393 = vpack.c.b16 %v2217, %v2213
  %v2394 = vpack.c.b16 %v2218, %v2214
  %v2395 = vpack.c.b16 %v2219, %v2215
  %v2396 = vpack.c.b16 %v2224, %v2220
  %v2397 = vpack.c.b16 %v2225, %v2221
  %v2398 = vpack.c.b16 %v2226, %v2222
  %v2399 = vpack.c.b16 %v2227, %v2223
  %v2400 = vpack.c.b16 %v2232, %v2228
  %v2401 = vpack.c.b16 %v2233, %v2229
  %v2402 = vpack.c.b16 %v2234, %v2230
  %v2403 = vpack.c.b16 %v2235, %v2231
  %v2404 = vpack.c.b16 %v2240, %v2236
  %v2405 = vpack.c.b16 %v2241, %v2237
  %v2406 = vpack.c.b16 %v2242, %v2238
  %v2407 = vpack.c.b16 %v2243, %v2239
  %v2408 = vpack.c.b16 %v2248, %v2244
  %v2409 = vpack.c.b16 %v2249, %v2245
  %v2410 = vpack.c.b16 %v2250, %v2246
  %v2411 = vpack.c.b16 %v2251, %v2247
  %v2412 = vpack.c.b16 %v2256, %v2252
  %v2413 = vpack.c.b16 %v2257, %v2253
  %v2414 = vpack.c.b16 %v2258, %v2254
  %v2415 = vpack.c.b16 %v2259, %v2255
  %v2416 = vpack.c.b16 %v2264, %v2260
  %v2417 = vpack.c.b16 %v2265, %v2261
  %v2418 = vpack.c.b16 %v2266, %v2262
  %v2419 = vpack.c.b16 %v2267, %v2263
  %v2420 = vpack.c.b16 %v2272, %v2268
  %v2421 = vpack.c.b16 %v2273, %v2269
  %v2422 = vpack.c.b16 %v2274, %v2270
  %v2423 = vpack.c.b16 %v2275, %v2271
  %v2424 = vpack.c.b16 %v2280, %v2276
  %v2425 = vpack.c.b16 %v2281, %v2277
  %v2426 = vpack.c.b16 %v2282, %v2278
  %v2427 = vpack.c.b16 %v2283, %v2279
  %v2428 = vpack.c.b16 %v2288, %v2284
  %v2429 = vpack.c.b16 %v2289, %v2285
  %v2430 = vpack.c.b16 %v2290, %v2286
  %v2431 = vpack.c.b16 %v2291, %v2287
  %v2432 = vpack.c.b16 %v2296, %v2292
  %v2433 = vpack.c.b16 %v2297, %v2293
  %v2434 = vpack.c.b16 %v2298, %v2294
  %v2435 = vpack.c.b16 %v2299, %v2295
  %v2436 = vpack.c.b16 %v2304, %v2300
  %v2437 = vpack.c.b16 %v2305, %v2301
  %v2438 = vpack.c.b16 %v2306, %v2302
  %v2439 = vpack.c.b16 %v2307, %v2303
  %v2440 = vpack.c.b16 %v2312, %v2308
  %v2441 = vpack.c.b16 %v2313, %v2309
  %v2442 = vpack.c.b16 %v2314, %v2310
  %v2443 = vpack.c.b16 %v2315, %v2311
  %2572 = vmatprep.subr.bf16.mxu0 0
  %2573 = vmatpush1.bf16.msra.mxu0 %v1388
  %2574 = vmatprep.subr.bf16.mxu0 0
  %2575 = vmatpush1.bf16.msra.mxu0 %v1389
  %2576 = vmatprep.subr.bf16.mxu0 0
  %2577 = vmatpush1.bf16.msra.mxu0 %v1390
  %2578 = vmatprep.subr.bf16.mxu0 0
  %2579 = vmatpush1.bf16.msra.mxu0 %v1391
  %2580 = vmatprep.subr.bf16.mxu0 0
  %2581 = vmatpush1.bf16.msra.mxu0 %v1392
  %2582 = vmatprep.subr.bf16.mxu0 0
  %2583 = vmatpush1.bf16.msra.mxu0 %v1393
  %2584 = vmatprep.subr.bf16.mxu0 0
  %2585 = vmatpush1.bf16.msra.mxu0 %v1394
  %2586 = vmatprep.subr.bf16.mxu0 0
  %2587 = vmatpush1.bf16.msra.mxu0 %v1395
  %2588 = vmatprep.subr.bf16.mxu0 0
  %2589 = vmatpush1.bf16.msra.mxu0 %v1396
  %2590 = vmatprep.subr.bf16.mxu0 0
  %2591 = vmatpush1.bf16.msra.mxu0 %v1397
  %2592 = vmatprep.subr.bf16.mxu0 0
  %2593 = vmatpush1.bf16.msra.mxu0 %v1398
  %2594 = vmatprep.subr.bf16.mxu0 0
  %2595 = vmatpush1.bf16.msra.mxu0 %v1399
  %2596 = vmatprep.subr.bf16.mxu0 0
  %2597 = vmatpush1.bf16.msra.mxu0 %v1400
  %2598 = vmatprep.subr.bf16.mxu0 0
  %2599 = vmatpush1.bf16.msra.mxu0 %v1401
  %2600 = vmatprep.subr.bf16.mxu0 0
  %2601 = vmatpush1.bf16.msra.mxu0 %v1402
  %2602 = vmatprep.subr.bf16.mxu0 0
  %2603 = vmatpush1.bf16.msra.mxu0 %v1403
  %2604 = vmatprep.mubr.bf16.mxu0 %v2317
  %2605 = vmatmul.mubr.bf16.gmra.mrb[0].mxu0 %v2316
  %v2606 = vpop.f32.mrb[0].mxu0
  %v2607 = vadd.f32 %v1615, %v2606
  %v2608 = vpop.f32.mrb[0].mxu0
  %v2609 = vpop.f32.mrb[0].mxu0
  %v2610 = vadd.f32 %v1620, %v2609
  %v2611 = vpop.f32.mrb[0].mxu0
  %2612 = vmatprep.mubr.bf16.mxu0 %v2321
  %2613 = vmatmul.mubr.bf16.gmra.mrb[0].mxu0 %v2320
  %v2614 = vpop.f32.mrb[0].mxu0
  %v2615 = vadd.f32 %v1625, %v2614
  %v2616 = vpop.f32.mrb[0].mxu0
  %v2617 = vpop.f32.mrb[0].mxu0
  %v2618 = vadd.f32 %v1630, %v2617
  %v2619 = vpop.f32.mrb[0].mxu0
  %2620 = vmatprep.mubr.bf16.mxu0 %v2325
  %2621 = vmatmul.mubr.bf16.gmra.mrb[0].mxu0 %v2324
  %v2622 = vpop.f32.mrb[0].mxu0
  %v2623 = vadd.f32 %v1635, %v2622
  %v2624 = vpop.f32.mrb[0].mxu0
  %v2625 = vpop.f32.mrb[0].mxu0
  %v2626 = vadd.f32 %v1640, %v2625
  %v2627 = vpop.f32.mrb[0].mxu0
  %2628 = vmatprep.mubr.bf16.mxu0 %v2329
  %2629 = vmatmul.mubr.bf16.gmra.mrb[0].mxu0 %v2328
  %v2630 = vpop.f32.mrb[0].mxu0
  %v2631 = vadd.f32 %v1645, %v2630
  %v2632 = vpop.f32.mrb[0].mxu0
  %v2633 = vpop.f32.mrb[0].mxu0
  %v2634 = vadd.f32 %v1650, %v2633
  %v2635 = vpop.f32.mrb[0].mxu0
  %2636 = vmatprep.mubr.bf16.mxu0 %v2333
  %2637 = vmatmul.mubr.bf16.gmra.mrb[0].mxu0 %v2332
  %v2638 = vpop.f32.mrb[0].mxu0
  %v2639 = vadd.f32 %v1655, %v2638
  %v2640 = vpop.f32.mrb[0].mxu0
  %v2641 = vpop.f32.mrb[0].mxu0
  %v2642 = vadd.f32 %v1660, %v2641
  %v2643 = vpop.f32.mrb[0].mxu0
  %2644 = vmatprep.mubr.bf16.mxu0 %v2337
  %2645 = vmatmul.mubr.bf16.gmra.mrb[0].mxu0 %v2336
  %v2646 = vpop.f32.mrb[0].mxu0
  %v2647 = vadd.f32 %v1665, %v2646
  %v2648 = vpop.f32.mrb[0].mxu0
  %v2649 = vpop.f32.mrb[0].mxu0
  %v2650 = vadd.f32 %v1670, %v2649
  %v2651 = vpop.f32.mrb[0].mxu0
  %2652 = vmatprep.mubr.bf16.mxu0 %v2341
  %2653 = vmatmul.mubr.bf16.gmra.mrb[0].mxu0 %v2340
  %v2654 = vpop.f32.mrb[0].mxu0
  %v2655 = vadd.f32 %v1675, %v2654
  %v2656 = vpop.f32.mrb[0].mxu0
  %v2657 = vpop.f32.mrb[0].mxu0
  %v2658 = vadd.f32 %v1680, %v2657
  %v2659 = vpop.f32.mrb[0].mxu0
  %2660 = vmatprep.mubr.bf16.mxu0 %v2345
  %2661 = vmatmul.mubr.bf16.gmra.mrb[0].mxu0 %v2344
  %v2662 = vpop.f32.mrb[0].mxu0
  %v2663 = vadd.f32 %v1685, %v2662
  %v2664 = vpop.f32.mrb[0].mxu0
  %v2665 = vpop.f32.mrb[0].mxu0
  %v2666 = vadd.f32 %v1690, %v2665
  %v2667 = vpop.f32.mrb[0].mxu0
  %2668 = vmatprep.mubr.bf16.mxu0 %v2349
  %2669 = vmatmul.mubr.bf16.gmra.mrb[0].mxu0 %v2348
  %v2670 = vpop.f32.mrb[0].mxu0
  %v2671 = vadd.f32 %v1695, %v2670
  %v2672 = vpop.f32.mrb[0].mxu0
  %v2673 = vpop.f32.mrb[0].mxu0
  %v2674 = vadd.f32 %v1700, %v2673
  %v2675 = vpop.f32.mrb[0].mxu0
  %2676 = vmatprep.mubr.bf16.mxu0 %v2353
  %2677 = vmatmul.mubr.bf16.gmra.mrb[0].mxu0 %v2352
  %v2678 = vpop.f32.mrb[0].mxu0
  %v2679 = vadd.f32 %v1705, %v2678
  %v2680 = vpop.f32.mrb[0].mxu0
  %v2681 = vpop.f32.mrb[0].mxu0
  %v2682 = vadd.f32 %v1710, %v2681
  %v2683 = vpop.f32.mrb[0].mxu0
  %2684 = vmatprep.mubr.bf16.mxu0 %v2357
  %2685 = vmatmul.mubr.bf16.gmra.mrb[0].mxu0 %v2356
  %v2686 = vpop.f32.mrb[0].mxu0
  %v2687 = vadd.f32 %v1715, %v2686
  %v2688 = vpop.f32.mrb[0].mxu0
  %v2689 = vpop.f32.mrb[0].mxu0
  %v2690 = vadd.f32 %v1720, %v2689
  %v2691 = vpop.f32.mrb[0].mxu0
  %2692 = vmatprep.mubr.bf16.mxu0 %v2361
  %2693 = vmatmul.mubr.bf16.gmra.mrb[0].mxu0 %v2360
  %v2694 = vpop.f32.mrb[0].mxu0
  %v2695 = vadd.f32 %v1725, %v2694
  %v2696 = vpop.f32.mrb[0].mxu0
  %v2697 = vpop.f32.mrb[0].mxu0
  %v2698 = vadd.f32 %v1730, %v2697
  %v2699 = vpop.f32.mrb[0].mxu0
  %2700 = vmatprep.mubr.bf16.mxu0 %v2365
  %2701 = vmatmul.mubr.bf16.gmra.mrb[0].mxu0 %v2364
  %v2702 = vpop.f32.mrb[0].mxu0
  %v2703 = vadd.f32 %v1735, %v2702
  %v2704 = vpop.f32.mrb[0].mxu0
  %v2705 = vpop.f32.mrb[0].mxu0
  %v2706 = vadd.f32 %v1740, %v2705
  %v2707 = vpop.f32.mrb[0].mxu0
  %2708 = vmatprep.mubr.bf16.mxu0 %v2369
  %2709 = vmatmul.mubr.bf16.gmra.mrb[0].mxu0 %v2368
  %v2710 = vpop.f32.mrb[0].mxu0
  %v2711 = vadd.f32 %v1745, %v2710
  %v2712 = vpop.f32.mrb[0].mxu0
  %v2713 = vpop.f32.mrb[0].mxu0
  %v2714 = vadd.f32 %v1750, %v2713
  %v2715 = vpop.f32.mrb[0].mxu0
  %2716 = vmatprep.mubr.bf16.mxu0 %v2373
  %2717 = vmatmul.mubr.bf16.gmra.mrb[0].mxu0 %v2372
  %v2718 = vpop.f32.mrb[0].mxu0
  %v2719 = vadd.f32 %v1755, %v2718
  %v2720 = vpop.f32.mrb[0].mxu0
  %v2721 = vpop.f32.mrb[0].mxu0
  %v2722 = vadd.f32 %v1760, %v2721
  %v2723 = vpop.f32.mrb[0].mxu0
  %2724 = vmatprep.mubr.bf16.mxu0 %v2377
  %2725 = vmatmul.mubr.bf16.gmra.mrb[0].mxu0 %v2376
  %v2726 = vpop.f32.mrb[0].mxu0
  %v2727 = vadd.f32 %v1765, %v2726
  %v2728 = vpop.f32.mrb[0].mxu0
  %v2729 = vpop.f32.mrb[0].mxu0
  %v2730 = vadd.f32 %v1770, %v2729
  %v2731 = vpop.f32.mrb[0].mxu0
  %2732 = vmatprep.mubr.bf16.mxu0 %v2381
  %2733 = vmatmul.mubr.bf16.gmra.mrb[0].mxu0 %v2380
  %v2734 = vpop.f32.mrb[0].mxu0
  %v2735 = vadd.f32 %v1775, %v2734
  %v2736 = vpop.f32.mrb[0].mxu0
  %v2737 = vpop.f32.mrb[0].mxu0
  %v2738 = vadd.f32 %v1780, %v2737
  %v2739 = vpop.f32.mrb[0].mxu0
  %2740 = vmatprep.mubr.bf16.mxu0 %v2385
  %2741 = vmatmul.mubr.bf16.gmra.mrb[0].mxu0 %v2384
  %v2742 = vpop.f32.mrb[0].mxu0
  %v2743 = vadd.f32 %v1785, %v2742
  %v2744 = vpop.f32.mrb[0].mxu0
  %v2745 = vpop.f32.mrb[0].mxu0
  %v2746 = vadd.f32 %v1790, %v2745
  %v2747 = vpop.f32.mrb[0].mxu0
  %2748 = vmatprep.mubr.bf16.mxu0 %v2389
  %2749 = vmatmul.mubr.bf16.gmra.mrb[0].mxu0 %v2388
  %v2750 = vpop.f32.mrb[0].mxu0
  %v2751 = vadd.f32 %v1795, %v2750
  %v2752 = vpop.f32.mrb[0].mxu0
  %v2753 = vpop.f32.mrb[0].mxu0
  %v2754 = vadd.f32 %v1800, %v2753
  %v2755 = vpop.f32.mrb[0].mxu0
  %2756 = vmatprep.mubr.bf16.mxu0 %v2393
  %2757 = vmatmul.mubr.bf16.gmra.mrb[0].mxu0 %v2392
  %v2758 = vpop.f32.mrb[0].mxu0
  %v2759 = vadd.f32 %v1805, %v2758
  %v2760 = vpop.f32.mrb[0].mxu0
  %v2761 = vpop.f32.mrb[0].mxu0
  %v2762 = vadd.f32 %v1810, %v2761
  %v2763 = vpop.f32.mrb[0].mxu0
  %2764 = vmatprep.mubr.bf16.mxu0 %v2397
  %2765 = vmatmul.mubr.bf16.gmra.mrb[0].mxu0 %v2396
  %v2766 = vpop.f32.mrb[0].mxu0
  %v2767 = vadd.f32 %v1815, %v2766
  %v2768 = vpop.f32.mrb[0].mxu0
  %v2769 = vpop.f32.mrb[0].mxu0
  %v2770 = vadd.f32 %v1820, %v2769
  %v2771 = vpop.f32.mrb[0].mxu0
  %2772 = vmatprep.mubr.bf16.mxu0 %v2401
  %2773 = vmatmul.mubr.bf16.gmra.mrb[0].mxu0 %v2400
  %v2774 = vpop.f32.mrb[0].mxu0
  %v2775 = vadd.f32 %v1825, %v2774
  %v2776 = vpop.f32.mrb[0].mxu0
  %v2777 = vpop.f32.mrb[0].mxu0
  %v2778 = vadd.f32 %v1830, %v2777
  %v2779 = vpop.f32.mrb[0].mxu0
  %2780 = vmatprep.mubr.bf16.mxu0 %v2405
  %2781 = vmatmul.mubr.bf16.gmra.mrb[0].mxu0 %v2404
  %v2782 = vpop.f32.mrb[0].mxu0
  %v2783 = vadd.f32 %v1835, %v2782
  %v2784 = vpop.f32.mrb[0].mxu0
  %v2785 = vpop.f32.mrb[0].mxu0
  %v2786 = vadd.f32 %v1840, %v2785
  %v2787 = vpop.f32.mrb[0].mxu0
  %2788 = vmatprep.mubr.bf16.mxu0 %v2409
  %2789 = vmatmul.mubr.bf16.gmra.mrb[0].mxu0 %v2408
  %v2790 = vpop.f32.mrb[0].mxu0
  %v2791 = vadd.f32 %v1845, %v2790
  %v2792 = vpop.f32.mrb[0].mxu0
  %v2793 = vpop.f32.mrb[0].mxu0
  %v2794 = vadd.f32 %v1850, %v2793
  %v2795 = vpop.f32.mrb[0].mxu0
  %2796 = vmatprep.mubr.bf16.mxu0 %v2413
  %2797 = vmatmul.mubr.bf16.gmra.mrb[0].mxu0 %v2412
  %v2798 = vpop.f32.mrb[0].mxu0
  %v2799 = vadd.f32 %v1855, %v2798
  %v2800 = vpop.f32.mrb[0].mxu0
  %v2801 = vpop.f32.mrb[0].mxu0
  %v2802 = vadd.f32 %v1860, %v2801
  %v2803 = vpop.f32.mrb[0].mxu0
  %2804 = vmatprep.mubr.bf16.mxu0 %v2417
  %2805 = vmatmul.mubr.bf16.gmra.mrb[0].mxu0 %v2416
  %v2806 = vpop.f32.mrb[0].mxu0
  %v2807 = vadd.f32 %v1865, %v2806
  %v2808 = vpop.f32.mrb[0].mxu0
  %v2809 = vpop.f32.mrb[0].mxu0
  %v2810 = vadd.f32 %v1870, %v2809
  %v2811 = vpop.f32.mrb[0].mxu0
  %2812 = vmatprep.mubr.bf16.mxu0 %v2421
  %2813 = vmatmul.mubr.bf16.gmra.mrb[0].mxu0 %v2420
  %v2814 = vpop.f32.mrb[0].mxu0
  %v2815 = vadd.f32 %v1875, %v2814
  %v2816 = vpop.f32.mrb[0].mxu0
  %v2817 = vpop.f32.mrb[0].mxu0
  %v2818 = vadd.f32 %v1880, %v2817
  %v2819 = vpop.f32.mrb[0].mxu0
  %2820 = vmatprep.mubr.bf16.mxu0 %v2425
  %2821 = vmatmul.mubr.bf16.gmra.mrb[0].mxu0 %v2424
  %v2822 = vpop.f32.mrb[0].mxu0
  %v2823 = vadd.f32 %v1885, %v2822
  %v2824 = vpop.f32.mrb[0].mxu0
  %v2825 = vpop.f32.mrb[0].mxu0
  %v2826 = vadd.f32 %v1890, %v2825
  %v2827 = vpop.f32.mrb[0].mxu0
  %2828 = vmatprep.mubr.bf16.mxu0 %v2429
  %2829 = vmatmul.mubr.bf16.gmra.mrb[0].mxu0 %v2428
  %v2830 = vpop.f32.mrb[0].mxu0
  %v2831 = vadd.f32 %v1895, %v2830
  %v2832 = vpop.f32.mrb[0].mxu0
  %v2833 = vpop.f32.mrb[0].mxu0
  %v2834 = vadd.f32 %v1900, %v2833
  %v2835 = vpop.f32.mrb[0].mxu0
  %2836 = vmatprep.mubr.bf16.mxu0 %v2433
  %2837 = vmatmul.mubr.bf16.gmra.mrb[0].mxu0 %v2432
  %v2838 = vpop.f32.mrb[0].mxu0
  %v2839 = vadd.f32 %v1905, %v2838
  %v2840 = vpop.f32.mrb[0].mxu0
  %v2841 = vpop.f32.mrb[0].mxu0
  %v2842 = vadd.f32 %v1910, %v2841
  %v2843 = vpop.f32.mrb[0].mxu0
  %2844 = vmatprep.mubr.bf16.mxu0 %v2437
  %2845 = vmatmul.mubr.bf16.gmra.mrb[0].mxu0 %v2436
  %v2846 = vpop.f32.mrb[0].mxu0
  %v2847 = vadd.f32 %v1915, %v2846
  %v2848 = vpop.f32.mrb[0].mxu0
  %v2849 = vpop.f32.mrb[0].mxu0
  %v2850 = vadd.f32 %v1920, %v2849
  %v2851 = vpop.f32.mrb[0].mxu0
  %2852 = vmatprep.mubr.bf16.mxu0 %v2441
  %2853 = vmatmul.mubr.bf16.gmra.mrb[0].mxu0 %v2440
  %v2854 = vpop.f32.mrb[0].mxu0
  %v2855 = vadd.f32 %v1925, %v2854
  %v2856 = vpop.f32.mrb[0].mxu0
  %v2857 = vpop.f32.mrb[0].mxu0
  %v2858 = vadd.f32 %v1930, %v2857
  %v2859 = vpop.f32.mrb[0].mxu0
  %2860 = vdwg.mxu0
  %2861 = vmatprep.subr.bf16.mxu0 0
  %2862 = vmatpush1.bf16.msra.mxu0 %v1404
  %2863 = vmatprep.subr.bf16.mxu0 0
  %2864 = vmatpush1.bf16.msra.mxu0 %v1405
  %2865 = vmatprep.subr.bf16.mxu0 0
  %2866 = vmatpush1.bf16.msra.mxu0 %v1406
  %2867 = vmatprep.subr.bf16.mxu0 0
  %2868 = vmatpush1.bf16.msra.mxu0 %v1407
  %2869 = vmatprep.subr.bf16.mxu0 0
  %2870 = vmatpush1.bf16.msra.mxu0 %v1408
  %2871 = vmatprep.subr.bf16.mxu0 0
  %2872 = vmatpush1.bf16.msra.mxu0 %v1409
  %2873 = vmatprep.subr.bf16.mxu0 0
  %2874 = vmatpush1.bf16.msra.mxu0 %v1410
  %2875 = vmatprep.subr.bf16.mxu0 0
  %2876 = vmatpush1.bf16.msra.mxu0 %v1411
  %2877 = vmatprep.subr.bf16.mxu0 0
  %2878 = vmatpush1.bf16.msra.mxu0 %v1412
  %2879 = vmatprep.subr.bf16.mxu0 0
  %2880 = vmatpush1.bf16.msra.mxu0 %v1413
  %2881 = vmatprep.subr.bf16.mxu0 0
  %2882 = vmatpush1.bf16.msra.mxu0 %v1414
  %2883 = vmatprep.subr.bf16.mxu0 0
  %2884 = vmatpush1.bf16.msra.mxu0 %v1415
  %2885 = vmatprep.subr.bf16.mxu0 0
  %2886 = vmatpush1.bf16.msra.mxu0 %v1416
  %2887 = vmatprep.subr.bf16.mxu0 0
  %2888 = vmatpush1.bf16.msra.mxu0 %v1417
  %2889 = vmatprep.subr.bf16.mxu0 0
  %2890 = vmatpush1.bf16.msra.mxu0 %v1418
  %2891 = vmatprep.subr.bf16.mxu0 0
  %2892 = vmatpush1.bf16.msra.mxu0 %v1419
  %2893 = vmatprep.mubr.bf16.mxu0 %v2319
  %2894 = vmatmul.mubr.bf16.gmra.mrb[0].mxu0 %v2318
  %v2895 = vpop.f32.mrb[0].mxu0
  %v2896 = vadd.f32 %v2607, %v2895
  %v2897 = vpop.f32.mrb[0].mxu0
  %v2898 = vpop.f32.mrb[0].mxu0
  %v2899 = vadd.f32 %v2610, %v2898
  %v2900 = vpop.f32.mrb[0].mxu0
  %2901 = vmatprep.mubr.bf16.mxu0 %v2323
  %2902 = vmatmul.mubr.bf16.gmra.mrb[0].mxu0 %v2322
  %v2903 = vpop.f32.mrb[0].mxu0
  %v2904 = vadd.f32 %v2615, %v2903
  %v2905 = vpop.f32.mrb[0].mxu0
  %v2906 = vpop.f32.mrb[0].mxu0
  %v2907 = vadd.f32 %v2618, %v2906
  %v2908 = vpop.f32.mrb[0].mxu0
  %2909 = vmatprep.mubr.bf16.mxu0 %v2327
  %2910 = vmatmul.mubr.bf16.gmra.mrb[0].mxu0 %v2326
  %v2911 = vpop.f32.mrb[0].mxu0
  %v2912 = vadd.f32 %v2623, %v2911
  %v2913 = vpop.f32.mrb[0].mxu0
  %v2914 = vpop.f32.mrb[0].mxu0
  %v2915 = vadd.f32 %v2626, %v2914
  %v2916 = vpop.f32.mrb[0].mxu0
  %2917 = vmatprep.mubr.bf16.mxu0 %v2331
  %2918 = vmatmul.mubr.bf16.gmra.mrb[0].mxu0 %v2330
  %v2919 = vpop.f32.mrb[0].mxu0
  %v2920 = vadd.f32 %v2631, %v2919
  %v2921 = vpop.f32.mrb[0].mxu0
  %v2922 = vpop.f32.mrb[0].mxu0
  %v2923 = vadd.f32 %v2634, %v2922
  %v2924 = vpop.f32.mrb[0].mxu0
  %2925 = vmatprep.mubr.bf16.mxu0 %v2335
  %2926 = vmatmul.mubr.bf16.gmra.mrb[0].mxu0 %v2334
  %v2927 = vpop.f32.mrb[0].mxu0
  %v2928 = vadd.f32 %v2639, %v2927
  %v2929 = vpop.f32.mrb[0].mxu0
  %v2930 = vpop.f32.mrb[0].mxu0
  %v2931 = vadd.f32 %v2642, %v2930
  %v2932 = vpop.f32.mrb[0].mxu0
  %2933 = vmatprep.mubr.bf16.mxu0 %v2339
  %2934 = vmatmul.mubr.bf16.gmra.mrb[0].mxu0 %v2338
  %v2935 = vpop.f32.mrb[0].mxu0
  %v2936 = vadd.f32 %v2647, %v2935
  %v2937 = vpop.f32.mrb[0].mxu0
  %v2938 = vpop.f32.mrb[0].mxu0
  %v2939 = vadd.f32 %v2650, %v2938
  %v2940 = vpop.f32.mrb[0].mxu0
  %2941 = vmatprep.mubr.bf16.mxu0 %v2343
  %2942 = vmatmul.mubr.bf16.gmra.mrb[0].mxu0 %v2342
  %v2943 = vpop.f32.mrb[0].mxu0
  %v2944 = vadd.f32 %v2655, %v2943
  %v2945 = vpop.f32.mrb[0].mxu0
  %v2946 = vpop.f32.mrb[0].mxu0
  %v2947 = vadd.f32 %v2658, %v2946
  %v2948 = vpop.f32.mrb[0].mxu0
  %2949 = vmatprep.mubr.bf16.mxu0 %v2347
  %2950 = vmatmul.mubr.bf16.gmra.mrb[0].mxu0 %v2346
  %v2951 = vpop.f32.mrb[0].mxu0
  %v2952 = vadd.f32 %v2663, %v2951
  %v2953 = vpop.f32.mrb[0].mxu0
  %v2954 = vpop.f32.mrb[0].mxu0
  %v2955 = vadd.f32 %v2666, %v2954
  %v2956 = vpop.f32.mrb[0].mxu0
  %2957 = vmatprep.mubr.bf16.mxu0 %v2351
  %2958 = vmatmul.mubr.bf16.gmra.mrb[0].mxu0 %v2350
  %v2959 = vpop.f32.mrb[0].mxu0
  %v2960 = vadd.f32 %v2671, %v2959
  %v2961 = vpop.f32.mrb[0].mxu0
  %v2962 = vpop.f32.mrb[0].mxu0
  %v2963 = vadd.f32 %v2674, %v2962
  %v2964 = vpop.f32.mrb[0].mxu0
  %2965 = vmatprep.mubr.bf16.mxu0 %v2355
  %2966 = vmatmul.mubr.bf16.gmra.mrb[0].mxu0 %v2354
  %v2967 = vpop.f32.mrb[0].mxu0
  %v2968 = vadd.f32 %v2679, %v2967
  %v2969 = vpop.f32.mrb[0].mxu0
  %v2970 = vpop.f32.mrb[0].mxu0
  %v2971 = vadd.f32 %v2682, %v2970
  %v2972 = vpop.f32.mrb[0].mxu0
  %2973 = vmatprep.mubr.bf16.mxu0 %v2359
  %2974 = vmatmul.mubr.bf16.gmra.mrb[0].mxu0 %v2358
  %v2975 = vpop.f32.mrb[0].mxu0
  %v2976 = vadd.f32 %v2687, %v2975
  %v2977 = vpop.f32.mrb[0].mxu0
  %v2978 = vpop.f32.mrb[0].mxu0
  %v2979 = vadd.f32 %v2690, %v2978
  %v2980 = vpop.f32.mrb[0].mxu0
  %2981 = vmatprep.mubr.bf16.mxu0 %v2363
  %2982 = vmatmul.mubr.bf16.gmra.mrb[0].mxu0 %v2362
  %v2983 = vpop.f32.mrb[0].mxu0
  %v2984 = vadd.f32 %v2695, %v2983
  %v2985 = vpop.f32.mrb[0].mxu0
  %v2986 = vpop.f32.mrb[0].mxu0
  %v2987 = vadd.f32 %v2698, %v2986
  %v2988 = vpop.f32.mrb[0].mxu0
  %2989 = vmatprep.mubr.bf16.mxu0 %v2367
  %2990 = vmatmul.mubr.bf16.gmra.mrb[0].mxu0 %v2366
  %v2991 = vpop.f32.mrb[0].mxu0
  %v2992 = vadd.f32 %v2703, %v2991
  %v2993 = vpop.f32.mrb[0].mxu0
  %v2994 = vpop.f32.mrb[0].mxu0
  %v2995 = vadd.f32 %v2706, %v2994
  %v2996 = vpop.f32.mrb[0].mxu0
  %2997 = vmatprep.mubr.bf16.mxu0 %v2371
  %2998 = vmatmul.mubr.bf16.gmra.mrb[0].mxu0 %v2370
  %v2999 = vpop.f32.mrb[0].mxu0
  %v3000 = vadd.f32 %v2711, %v2999
  %v3001 = vpop.f32.mrb[0].mxu0
  %v3002 = vpop.f32.mrb[0].mxu0
  %v3003 = vadd.f32 %v2714, %v3002
  %v3004 = vpop.f32.mrb[0].mxu0
  %3005 = vmatprep.mubr.bf16.mxu0 %v2375
  %3006 = vmatmul.mubr.bf16.gmra.mrb[0].mxu0 %v2374
  %v3007 = vpop.f32.mrb[0].mxu0
  %v3008 = vadd.f32 %v2719, %v3007
  %v3009 = vpop.f32.mrb[0].mxu0
  %v3010 = vpop.f32.mrb[0].mxu0
  %v3011 = vadd.f32 %v2722, %v3010
  %v3012 = vpop.f32.mrb[0].mxu0
  %3013 = vmatprep.mubr.bf16.mxu0 %v2379
  %3014 = vmatmul.mubr.bf16.gmra.mrb[0].mxu0 %v2378
  %v3015 = vpop.f32.mrb[0].mxu0
  %v3016 = vadd.f32 %v2727, %v3015
  %v3017 = vpop.f32.mrb[0].mxu0
  %v3018 = vpop.f32.mrb[0].mxu0
  %v3019 = vadd.f32 %v2730, %v3018
  %v3020 = vpop.f32.mrb[0].mxu0
  %3021 = vmatprep.mubr.bf16.mxu0 %v2383
  %3022 = vmatmul.mubr.bf16.gmra.mrb[0].mxu0 %v2382
  %v3023 = vpop.f32.mrb[0].mxu0
  %v3024 = vadd.f32 %v2735, %v3023
  %v3025 = vpop.f32.mrb[0].mxu0
  %v3026 = vpop.f32.mrb[0].mxu0
  %v3027 = vadd.f32 %v2738, %v3026
  %v3028 = vpop.f32.mrb[0].mxu0
  %3029 = vmatprep.mubr.bf16.mxu0 %v2387
  %3030 = vmatmul.mubr.bf16.gmra.mrb[0].mxu0 %v2386
  %v3031 = vpop.f32.mrb[0].mxu0
  %v3032 = vadd.f32 %v2743, %v3031
  %v3033 = vpop.f32.mrb[0].mxu0
  %v3034 = vpop.f32.mrb[0].mxu0
  %v3035 = vadd.f32 %v2746, %v3034
  %v3036 = vpop.f32.mrb[0].mxu0
  %3037 = vmatprep.mubr.bf16.mxu0 %v2391
  %3038 = vmatmul.mubr.bf16.gmra.mrb[0].mxu0 %v2390
  %v3039 = vpop.f32.mrb[0].mxu0
  %v3040 = vadd.f32 %v2751, %v3039
  %v3041 = vpop.f32.mrb[0].mxu0
  %v3042 = vpop.f32.mrb[0].mxu0
  %v3043 = vadd.f32 %v2754, %v3042
  %v3044 = vpop.f32.mrb[0].mxu0
  %3045 = vmatprep.mubr.bf16.mxu0 %v2395
  %3046 = vmatmul.mubr.bf16.gmra.mrb[0].mxu0 %v2394
  %v3047 = vpop.f32.mrb[0].mxu0
  %v3048 = vadd.f32 %v2759, %v3047
  %v3049 = vpop.f32.mrb[0].mxu0
  %v3050 = vpop.f32.mrb[0].mxu0
  %v3051 = vadd.f32 %v2762, %v3050
  %v3052 = vpop.f32.mrb[0].mxu0
  %3053 = vmatprep.mubr.bf16.mxu0 %v2399
  %3054 = vmatmul.mubr.bf16.gmra.mrb[0].mxu0 %v2398
  %v3055 = vpop.f32.mrb[0].mxu0
  %v3056 = vadd.f32 %v2767, %v3055
  %v3057 = vpop.f32.mrb[0].mxu0
  %v3058 = vpop.f32.mrb[0].mxu0
  %v3059 = vadd.f32 %v2770, %v3058
  %v3060 = vpop.f32.mrb[0].mxu0
  %3061 = vmatprep.mubr.bf16.mxu0 %v2403
  %3062 = vmatmul.mubr.bf16.gmra.mrb[0].mxu0 %v2402
  %v3063 = vpop.f32.mrb[0].mxu0
  %v3064 = vadd.f32 %v2775, %v3063
  %v3065 = vpop.f32.mrb[0].mxu0
  %v3066 = vpop.f32.mrb[0].mxu0
  %v3067 = vadd.f32 %v2778, %v3066
  %v3068 = vpop.f32.mrb[0].mxu0
  %3069 = vmatprep.mubr.bf16.mxu0 %v2407
  %3070 = vmatmul.mubr.bf16.gmra.mrb[0].mxu0 %v2406
  %v3071 = vpop.f32.mrb[0].mxu0
  %v3072 = vadd.f32 %v2783, %v3071
  %v3073 = vpop.f32.mrb[0].mxu0
  %v3074 = vpop.f32.mrb[0].mxu0
  %v3075 = vadd.f32 %v2786, %v3074
  %v3076 = vpop.f32.mrb[0].mxu0
  %3077 = vmatprep.mubr.bf16.mxu0 %v2411
  %3078 = vmatmul.mubr.bf16.gmra.mrb[0].mxu0 %v2410
  %v3079 = vpop.f32.mrb[0].mxu0
  %v3080 = vadd.f32 %v2791, %v3079
  %v3081 = vpop.f32.mrb[0].mxu0
  %v3082 = vpop.f32.mrb[0].mxu0
  %v3083 = vadd.f32 %v2794, %v3082
  %v3084 = vpop.f32.mrb[0].mxu0
  %3085 = vmatprep.mubr.bf16.mxu0 %v2415
  %3086 = vmatmul.mubr.bf16.gmra.mrb[0].mxu0 %v2414
  %v3087 = vpop.f32.mrb[0].mxu0
  %v3088 = vadd.f32 %v2799, %v3087
  %v3089 = vpop.f32.mrb[0].mxu0
  %v3090 = vpop.f32.mrb[0].mxu0
  %v3091 = vadd.f32 %v2802, %v3090
  %v3092 = vpop.f32.mrb[0].mxu0
  %3093 = vmatprep.mubr.bf16.mxu0 %v2419
  %3094 = vmatmul.mubr.bf16.gmra.mrb[0].mxu0 %v2418
  %v3095 = vpop.f32.mrb[0].mxu0
  %v3096 = vadd.f32 %v2807, %v3095
  %v3097 = vpop.f32.mrb[0].mxu0
  %v3098 = vpop.f32.mrb[0].mxu0
  %v3099 = vadd.f32 %v2810, %v3098
  %v3100 = vpop.f32.mrb[0].mxu0
  %3101 = vmatprep.mubr.bf16.mxu0 %v2423
  %3102 = vmatmul.mubr.bf16.gmra.mrb[0].mxu0 %v2422
  %v3103 = vpop.f32.mrb[0].mxu0
  %v3104 = vadd.f32 %v2815, %v3103
  %v3105 = vpop.f32.mrb[0].mxu0
  %v3106 = vpop.f32.mrb[0].mxu0
  %v3107 = vadd.f32 %v2818, %v3106
  %v3108 = vpop.f32.mrb[0].mxu0
  %3109 = vmatprep.mubr.bf16.mxu0 %v2427
  %3110 = vmatmul.mubr.bf16.gmra.mrb[0].mxu0 %v2426
  %v3111 = vpop.f32.mrb[0].mxu0
  %v3112 = vadd.f32 %v2823, %v3111
  %v3113 = vpop.f32.mrb[0].mxu0
  %v3114 = vpop.f32.mrb[0].mxu0
  %v3115 = vadd.f32 %v2826, %v3114
  %v3116 = vpop.f32.mrb[0].mxu0
  %3117 = vmatprep.mubr.bf16.mxu0 %v2431
  %3118 = vmatmul.mubr.bf16.gmra.mrb[0].mxu0 %v2430
  %v3119 = vpop.f32.mrb[0].mxu0
  %v3120 = vadd.f32 %v2831, %v3119
  %v3121 = vpop.f32.mrb[0].mxu0
  %v3122 = vpop.f32.mrb[0].mxu0
  %v3123 = vadd.f32 %v2834, %v3122
  %v3124 = vpop.f32.mrb[0].mxu0
  %3125 = vmatprep.mubr.bf16.mxu0 %v2435
  %3126 = vmatmul.mubr.bf16.gmra.mrb[0].mxu0 %v2434
  %v3127 = vpop.f32.mrb[0].mxu0
  %v3128 = vadd.f32 %v2839, %v3127
  %v3129 = vpop.f32.mrb[0].mxu0
  %v3130 = vpop.f32.mrb[0].mxu0
  %v3131 = vadd.f32 %v2842, %v3130
  %v3132 = vpop.f32.mrb[0].mxu0
  %3133 = vmatprep.mubr.bf16.mxu0 %v2439
  %3134 = vmatmul.mubr.bf16.gmra.mrb[0].mxu0 %v2438
  %v3135 = vpop.f32.mrb[0].mxu0
  %v3136 = vadd.f32 %v2847, %v3135
  %v3137 = vpop.f32.mrb[0].mxu0
  %v3138 = vpop.f32.mrb[0].mxu0
  %v3139 = vadd.f32 %v2850, %v3138
  %v3140 = vpop.f32.mrb[0].mxu0
  %3141 = vmatprep.mubr.bf16.mxu0 %v2443
  %3142 = vmatmul.mubr.bf16.gmra.mrb[0].mxu0 %v2442
  %v3143 = vpop.f32.mrb[0].mxu0
  %v3144 = vadd.f32 %v2855, %v3143
  %v3145 = vpop.f32.mrb[0].mxu0
  %v3146 = vpop.f32.mrb[0].mxu0
  %v3147 = vadd.f32 %v2858, %v3146
  %v3148 = vpop.f32.mrb[0].mxu0
  %3149 = vdwg.mxu0
  %v3150 = vmax.f32 %v2896, 0.0
  %v3151 = vmax.f32 %v2899, 0.0
  %v3152 = vmax.f32 %v2904, 0.0
  %v3153 = vmax.f32 %v2907, 0.0
  %v3154 = vmax.f32 %v2912, 0.0
  %v3155 = vmax.f32 %v2915, 0.0
  %v3156 = vmax.f32 %v2920, 0.0
  %v3157 = vmax.f32 %v2923, 0.0
  %v3158 = vmax.f32 %v2928, 0.0
  %v3159 = vmax.f32 %v2931, 0.0
  %v3160 = vmax.f32 %v2936, 0.0
  %v3161 = vmax.f32 %v2939, 0.0
  %v3162 = vmax.f32 %v2944, 0.0
  %v3163 = vmax.f32 %v2947, 0.0
  %v3164 = vmax.f32 %v2952, 0.0
  %v3165 = vmax.f32 %v2955, 0.0
  %v3166 = vmax.f32 %v2960, 0.0
  %v3167 = vmax.f32 %v2963, 0.0
  %v3168 = vmax.f32 %v2968, 0.0
  %v3169 = vmax.f32 %v2971, 0.0
  %v3170 = vmax.f32 %v2976, 0.0
  %v3171 = vmax.f32 %v2979, 0.0
  %v3172 = vmax.f32 %v2984, 0.0
  %v3173 = vmax.f32 %v2987, 0.0
  %v3174 = vmax.f32 %v2992, 0.0
  %v3175 = vmax.f32 %v2995, 0.0
  %v3176 = vmax.f32 %v3000, 0.0
  %v3177 = vmax.f32 %v3003, 0.0
  %v3178 = vmax.f32 %v3008, 0.0
  %v3179 = vmax.f32 %v3011, 0.0
  %v3180 = vmax.f32 %v3016, 0.0
  %v3181 = vmax.f32 %v3019, 0.0
  %v3182 = vmax.f32 %v3024, 0.0
  %v3183 = vmax.f32 %v3027, 0.0
  %v3184 = vmax.f32 %v3032, 0.0
  %v3185 = vmax.f32 %v3035, 0.0
  %v3186 = vmax.f32 %v3040, 0.0
  %v3187 = vmax.f32 %v3043, 0.0
  %v3188 = vmax.f32 %v3048, 0.0
  %v3189 = vmax.f32 %v3051, 0.0
  %v3190 = vmax.f32 %v3056, 0.0
  %v3191 = vmax.f32 %v3059, 0.0
  %v3192 = vmax.f32 %v3064, 0.0
  %v3193 = vmax.f32 %v3067, 0.0
  %v3194 = vmax.f32 %v3072, 0.0
  %v3195 = vmax.f32 %v3075, 0.0
  %v3196 = vmax.f32 %v3080, 0.0
  %v3197 = vmax.f32 %v3083, 0.0
  %v3198 = vmax.f32 %v3088, 0.0
  %v3199 = vmax.f32 %v3091, 0.0
  %v3200 = vmax.f32 %v3096, 0.0
  %v3201 = vmax.f32 %v3099, 0.0
  %v3202 = vmax.f32 %v3104, 0.0
  %v3203 = vmax.f32 %v3107, 0.0
  %v3204 = vmax.f32 %v3112, 0.0
  %v3205 = vmax.f32 %v3115, 0.0
  %v3206 = vmax.f32 %v3120, 0.0
  %v3207 = vmax.f32 %v3123, 0.0
  %v3208 = vmax.f32 %v3128, 0.0
  %v3209 = vmax.f32 %v3131, 0.0
  %v3210 = vmax.f32 %v3136, 0.0
  %v3211 = vmax.f32 %v3139, 0.0
  %v3212 = vmax.f32 %v3144, 0.0
  %v3213 = vmax.f32 %v3147, 0.0
  %v3214 = vpack.c.bf16 %v3151, %v3150
  %v3215 = vpack.c.bf16 %v3153, %v3152
  %v3216 = vpack.c.bf16 %v3155, %v3154
  %v3217 = vpack.c.bf16 %v3157, %v3156
  %v3218 = vpack.c.bf16 %v3159, %v3158
  %v3219 = vpack.c.bf16 %v3161, %v3160
  %v3220 = vpack.c.bf16 %v3163, %v3162
  %v3221 = vpack.c.bf16 %v3165, %v3164
  %v3222 = vpack.c.bf16 %v3167, %v3166
  %v3223 = vpack.c.bf16 %v3169, %v3168
  %v3224 = vpack.c.bf16 %v3171, %v3170
  %v3225 = vpack.c.bf16 %v3173, %v3172
  %v3226 = vpack.c.bf16 %v3175, %v3174
  %v3227 = vpack.c.bf16 %v3177, %v3176
  %v3228 = vpack.c.bf16 %v3179, %v3178
  %v3229 = vpack.c.bf16 %v3181, %v3180
  %v3230 = vpack.c.bf16 %v3183, %v3182
  %v3231 = vpack.c.bf16 %v3185, %v3184
  %v3232 = vpack.c.bf16 %v3187, %v3186
  %v3233 = vpack.c.bf16 %v3189, %v3188
  %v3234 = vpack.c.bf16 %v3191, %v3190
  %v3235 = vpack.c.bf16 %v3193, %v3192
  %v3236 = vpack.c.bf16 %v3195, %v3194
  %v3237 = vpack.c.bf16 %v3197, %v3196
  %v3238 = vpack.c.bf16 %v3199, %v3198
  %v3239 = vpack.c.bf16 %v3201, %v3200
  %v3240 = vpack.c.bf16 %v3203, %v3202
  %v3241 = vpack.c.bf16 %v3205, %v3204
  %v3242 = vpack.c.bf16 %v3207, %v3206
  %v3243 = vpack.c.bf16 %v3209, %v3208
  %v3244 = vpack.c.bf16 %v3211, %v3210
  %v3245 = vpack.c.bf16 %v3213, %v3212
  %v3246 = vld [vmem:[%s5] sm:$0xff]
  %v3247 = vld [vmem:[%s5 + $0x8] sm:$0xff]
  %v3248 = vld [vmem:[%s5 + $0x10] sm:$0xff]
  %v3249 = vld [vmem:[%s5 + $0x18] sm:$0xff]
  %v3250 = vld [vmem:[%s5 + $0x20] sm:$0xff]
  %v3251 = vld [vmem:[%s5 + $0x28] sm:$0xff]
  %v3252 = vld [vmem:[%s5 + $0x30] sm:$0xff]
  %v3253 = vld [vmem:[%s5 + $0x38] sm:$0xff]
  %v3254 = vld [vmem:[%s5 + $0x40] sm:$0xff]
  %v3255 = vld [vmem:[%s5 + $0x48] sm:$0xff]
  %v3256 = vld [vmem:[%s5 + $0x50] sm:$0xff]
  %v3257 = vld [vmem:[%s5 + $0x58] sm:$0xff]
  %v3258 = vld [vmem:[%s5 + $0x60] sm:$0xff]
  %v3259 = vld [vmem:[%s5 + $0x68] sm:$0xff]
  %v3260 = vld [vmem:[%s5 + $0x70] sm:$0xff]
  %v3261 = vld [vmem:[%s5 + $0x78] sm:$0xff]
  %v3262 = vld [vmem:[%s5 + $0x80] sm:$0xff]
  %v3263 = vld [vmem:[%s5 + $0x88] sm:$0xff]
  %v3264 = vld [vmem:[%s5 + $0x90] sm:$0xff]
  %v3265 = vld [vmem:[%s5 + $0x98] sm:$0xff]
  %v3266 = vld [vmem:[%s5 + $0xa0] sm:$0xff]
  %v3267 = vld [vmem:[%s5 + $0xa8] sm:$0xff]
  %v3268 = vld [vmem:[%s5 + $0xb0] sm:$0xff]
  %v3269 = vld [vmem:[%s5 + $0xb8] sm:$0xff]
  %v3270 = vld [vmem:[%s5 + $0xc0] sm:$0xff]
  %v3271 = vld [vmem:[%s5 + $0xc8] sm:$0xff]
  %v3272 = vld [vmem:[%s5 + $0xd0] sm:$0xff]
  %v3273 = vld [vmem:[%s5 + $0xd8] sm:$0xff]
  %v3274 = vld [vmem:[%s5 + $0xe0] sm:$0xff]
  %v3275 = vld [vmem:[%s5 + $0xe8] sm:$0xff]
  %v3276 = vld [vmem:[%s5 + $0xf0] sm:$0xff]
  %v3277 = vld [vmem:[%s5 + $0xf8] sm:$0xff]
  %v3278 = vld [vmem:[%s5 + $0x100] sm:$0xff]
  %v3279 = vld [vmem:[%s5 + $0x108] sm:$0xff]
  %v3280 = vld [vmem:[%s5 + $0x110] sm:$0xff]
  %v3281 = vld [vmem:[%s5 + $0x118] sm:$0xff]
  %v3282 = vld [vmem:[%s5 + $0x120] sm:$0xff]
  %v3283 = vld [vmem:[%s5 + $0x128] sm:$0xff]
  %v3284 = vld [vmem:[%s5 + $0x130] sm:$0xff]
  %v3285 = vld [vmem:[%s5 + $0x138] sm:$0xff]
  %v3286 = vld [vmem:[%s5 + $0x140] sm:$0xff]
  %v3287 = vld [vmem:[%s5 + $0x148] sm:$0xff]
  %v3288 = vld [vmem:[%s5 + $0x150] sm:$0xff]
  %v3289 = vld [vmem:[%s5 + $0x158] sm:$0xff]
  %v3290 = vld [vmem:[%s5 + $0x160] sm:$0xff]
  %v3291 = vld [vmem:[%s5 + $0x168] sm:$0xff]
  %v3292 = vld [vmem:[%s5 + $0x170] sm:$0xff]
  %v3293 = vld [vmem:[%s5 + $0x178] sm:$0xff]
  %v3294 = vld [vmem:[%s5 + $0x180] sm:$0xff]
  %v3295 = vld [vmem:[%s5 + $0x188] sm:$0xff]
  %v3296 = vld [vmem:[%s5 + $0x190] sm:$0xff]
  %v3297 = vld [vmem:[%s5 + $0x198] sm:$0xff]
  %v3298 = vld [vmem:[%s5 + $0x1a0] sm:$0xff]
  %v3299 = vld [vmem:[%s5 + $0x1a8] sm:$0xff]
  %v3300 = vld [vmem:[%s5 + $0x1b0] sm:$0xff]
  %v3301 = vld [vmem:[%s5 + $0x1b8] sm:$0xff]
  %v3302 = vld [vmem:[%s5 + $0x1c0] sm:$0xff]
  %v3303 = vld [vmem:[%s5 + $0x1c8] sm:$0xff]
  %v3304 = vld [vmem:[%s5 + $0x1d0] sm:$0xff]
  %v3305 = vld [vmem:[%s5 + $0x1d8] sm:$0xff]
  %v3306 = vld [vmem:[%s5 + $0x1e0] sm:$0xff]
  %v3307 = vld [vmem:[%s5 + $0x1e8] sm:$0xff]
  %v3308 = vld [vmem:[%s5 + $0x1f0] sm:$0xff]
  %v3309 = vld [vmem:[%s5 + $0x1f8] sm:$0xff]
  %v3310 = vld [vmem:[%s5 + $0x200] sm:$0xff]
  %v3311 = vld [vmem:[%s5 + $0x208] sm:$0xff]
  %v3312 = vld [vmem:[%s5 + $0x210] sm:$0xff]
  %v3313 = vld [vmem:[%s5 + $0x218] sm:$0xff]
  %v3314 = vld [vmem:[%s5 + $0x220] sm:$0xff]
  %v3315 = vld [vmem:[%s5 + $0x228] sm:$0xff]
  %v3316 = vld [vmem:[%s5 + $0x230] sm:$0xff]
  %v3317 = vld [vmem:[%s5 + $0x238] sm:$0xff]
  %v3318 = vld [vmem:[%s5 + $0x240] sm:$0xff]
  %v3319 = vld [vmem:[%s5 + $0x248] sm:$0xff]
  %v3320 = vld [vmem:[%s5 + $0x250] sm:$0xff]
  %v3321 = vld [vmem:[%s5 + $0x258] sm:$0xff]
  %v3322 = vld [vmem:[%s5 + $0x260] sm:$0xff]
  %v3323 = vld [vmem:[%s5 + $0x268] sm:$0xff]
  %v3324 = vld [vmem:[%s5 + $0x270] sm:$0xff]
  %v3325 = vld [vmem:[%s5 + $0x278] sm:$0xff]
  %v3326 = vld [vmem:[%s5 + $0x280] sm:$0xff]
  %v3327 = vld [vmem:[%s5 + $0x288] sm:$0xff]
  %v3328 = vld [vmem:[%s5 + $0x290] sm:$0xff]
  %v3329 = vld [vmem:[%s5 + $0x298] sm:$0xff]
  %v3330 = vld [vmem:[%s5 + $0x2a0] sm:$0xff]
  %v3331 = vld [vmem:[%s5 + $0x2a8] sm:$0xff]
  %v3332 = vld [vmem:[%s5 + $0x2b0] sm:$0xff]
  %v3333 = vld [vmem:[%s5 + $0x2b8] sm:$0xff]
  %v3334 = vld [vmem:[%s5 + $0x2c0] sm:$0xff]
  %v3335 = vld [vmem:[%s5 + $0x2c8] sm:$0xff]
  %v3336 = vld [vmem:[%s5 + $0x2d0] sm:$0xff]
  %v3337 = vld [vmem:[%s5 + $0x2d8] sm:$0xff]
  %v3338 = vld [vmem:[%s5 + $0x2e0] sm:$0xff]
  %v3339 = vld [vmem:[%s5 + $0x2e8] sm:$0xff]
  %v3340 = vld [vmem:[%s5 + $0x2f0] sm:$0xff]
  %v3341 = vld [vmem:[%s5 + $0x2f8] sm:$0xff]
  %v3342 = vld [vmem:[%s5 + $0x300] sm:$0xff]
  %v3343 = vld [vmem:[%s5 + $0x308] sm:$0xff]
  %v3344 = vld [vmem:[%s5 + $0x310] sm:$0xff]
  %v3345 = vld [vmem:[%s5 + $0x318] sm:$0xff]
  %v3346 = vld [vmem:[%s5 + $0x320] sm:$0xff]
  %v3347 = vld [vmem:[%s5 + $0x328] sm:$0xff]
  %v3348 = vld [vmem:[%s5 + $0x330] sm:$0xff]
  %v3349 = vld [vmem:[%s5 + $0x338] sm:$0xff]
  %v3350 = vld [vmem:[%s5 + $0x340] sm:$0xff]
  %v3351 = vld [vmem:[%s5 + $0x348] sm:$0xff]
  %v3352 = vld [vmem:[%s5 + $0x350] sm:$0xff]
  %v3353 = vld [vmem:[%s5 + $0x358] sm:$0xff]
  %v3354 = vld [vmem:[%s5 + $0x360] sm:$0xff]
  %v3355 = vld [vmem:[%s5 + $0x368] sm:$0xff]
  %v3356 = vld [vmem:[%s5 + $0x370] sm:$0xff]
  %v3357 = vld [vmem:[%s5 + $0x378] sm:$0xff]
  %v3358 = vld [vmem:[%s5 + $0x380] sm:$0xff]
  %v3359 = vld [vmem:[%s5 + $0x388] sm:$0xff]
  %v3360 = vld [vmem:[%s5 + $0x390] sm:$0xff]
  %v3361 = vld [vmem:[%s5 + $0x398] sm:$0xff]
  %v3362 = vld [vmem:[%s5 + $0x3a0] sm:$0xff]
  %v3363 = vld [vmem:[%s5 + $0x3a8] sm:$0xff]
  %v3364 = vld [vmem:[%s5 + $0x3b0] sm:$0xff]
  %v3365 = vld [vmem:[%s5 + $0x3b8] sm:$0xff]
  %v3366 = vld [vmem:[%s5 + $0x3c0] sm:$0xff]
  %v3367 = vld [vmem:[%s5 + $0x3c8] sm:$0xff]
  %v3368 = vld [vmem:[%s5 + $0x3d0] sm:$0xff]
  %v3369 = vld [vmem:[%s5 + $0x3d8] sm:$0xff]
  %v3370 = vld [vmem:[%s5 + $0x3e0] sm:$0xff]
  %v3371 = vld [vmem:[%s5 + $0x3e8] sm:$0xff]
  %v3372 = vld [vmem:[%s5 + $0x3f0] sm:$0xff]
  %v3373 = vld [vmem:[%s5 + $0x3f8] sm:$0xff]
  %v3374 = vld [vmem:[%s6] sm:$0xff]
  %v3375 = vld [vmem:[%s6 + $0x8] sm:$0xff]
  %v3376 = vld [vmem:[%s6 + $0x10] sm:$0xff]
  %v3377 = vld [vmem:[%s6 + $0x18] sm:$0xff]
  %v3378 = vld [vmem:[%s6 + $0x20] sm:$0xff]
  %v3379 = vld [vmem:[%s6 + $0x28] sm:$0xff]
  %v3380 = vld [vmem:[%s6 + $0x30] sm:$0xff]
  %v3381 = vld [vmem:[%s6 + $0x38] sm:$0xff]
  %v3382 = vld [vmem:[%s6 + $0x40] sm:$0xff]
  %v3383 = vld [vmem:[%s6 + $0x48] sm:$0xff]
  %v3384 = vld [vmem:[%s6 + $0x50] sm:$0xff]
  %v3385 = vld [vmem:[%s6 + $0x58] sm:$0xff]
  %v3386 = vld [vmem:[%s6 + $0x60] sm:$0xff]
  %v3387 = vld [vmem:[%s6 + $0x68] sm:$0xff]
  %v3388 = vld [vmem:[%s6 + $0x70] sm:$0xff]
  %v3389 = vld [vmem:[%s6 + $0x78] sm:$0xff]
  %v3390 = vld [vmem:[%s6 + $0x80] sm:$0xff]
  %v3391 = vld [vmem:[%s6 + $0x88] sm:$0xff]
  %v3392 = vld [vmem:[%s6 + $0x90] sm:$0xff]
  %v3393 = vld [vmem:[%s6 + $0x98] sm:$0xff]
  %v3394 = vld [vmem:[%s6 + $0xa0] sm:$0xff]
  %v3395 = vld [vmem:[%s6 + $0xa8] sm:$0xff]
  %v3396 = vld [vmem:[%s6 + $0xb0] sm:$0xff]
  %v3397 = vld [vmem:[%s6 + $0xb8] sm:$0xff]
  %v3398 = vld [vmem:[%s6 + $0xc0] sm:$0xff]
  %v3399 = vld [vmem:[%s6 + $0xc8] sm:$0xff]
  %v3400 = vld [vmem:[%s6 + $0xd0] sm:$0xff]
  %v3401 = vld [vmem:[%s6 + $0xd8] sm:$0xff]
  %v3402 = vld [vmem:[%s6 + $0xe0] sm:$0xff]
  %v3403 = vld [vmem:[%s6 + $0xe8] sm:$0xff]
  %v3404 = vld [vmem:[%s6 + $0xf0] sm:$0xff]
  %v3405 = vld [vmem:[%s6 + $0xf8] sm:$0xff]
  %v3406 = vld [vmem:[%s6 + $0x100] sm:$0xff]
  %v3407 = vld [vmem:[%s6 + $0x108] sm:$0xff]
  %v3408 = vld [vmem:[%s6 + $0x110] sm:$0xff]
  %v3409 = vld [vmem:[%s6 + $0x118] sm:$0xff]
  %v3410 = vld [vmem:[%s6 + $0x120] sm:$0xff]
  %v3411 = vld [vmem:[%s6 + $0x128] sm:$0xff]
  %v3412 = vld [vmem:[%s6 + $0x130] sm:$0xff]
  %v3413 = vld [vmem:[%s6 + $0x138] sm:$0xff]
  %v3414 = vld [vmem:[%s6 + $0x140] sm:$0xff]
  %v3415 = vld [vmem:[%s6 + $0x148] sm:$0xff]
  %v3416 = vld [vmem:[%s6 + $0x150] sm:$0xff]
  %v3417 = vld [vmem:[%s6 + $0x158] sm:$0xff]
  %v3418 = vld [vmem:[%s6 + $0x160] sm:$0xff]
  %v3419 = vld [vmem:[%s6 + $0x168] sm:$0xff]
  %v3420 = vld [vmem:[%s6 + $0x170] sm:$0xff]
  %v3421 = vld [vmem:[%s6 + $0x178] sm:$0xff]
  %v3422 = vld [vmem:[%s6 + $0x180] sm:$0xff]
  %v3423 = vld [vmem:[%s6 + $0x188] sm:$0xff]
  %v3424 = vld [vmem:[%s6 + $0x190] sm:$0xff]
  %v3425 = vld [vmem:[%s6 + $0x198] sm:$0xff]
  %v3426 = vld [vmem:[%s6 + $0x1a0] sm:$0xff]
  %v3427 = vld [vmem:[%s6 + $0x1a8] sm:$0xff]
  %v3428 = vld [vmem:[%s6 + $0x1b0] sm:$0xff]
  %v3429 = vld [vmem:[%s6 + $0x1b8] sm:$0xff]
  %v3430 = vld [vmem:[%s6 + $0x1c0] sm:$0xff]
  %v3431 = vld [vmem:[%s6 + $0x1c8] sm:$0xff]
  %v3432 = vld [vmem:[%s6 + $0x1d0] sm:$0xff]
  %v3433 = vld [vmem:[%s6 + $0x1d8] sm:$0xff]
  %v3434 = vld [vmem:[%s6 + $0x1e0] sm:$0xff]
  %v3435 = vld [vmem:[%s6 + $0x1e8] sm:$0xff]
  %v3436 = vld [vmem:[%s6 + $0x1f0] sm:$0xff]
  %v3437 = vld [vmem:[%s6 + $0x1f8] sm:$0xff]
  %3439 = vset.pattern.permute.xlu0 0
  %3440 = vperm.xlu0 %3439, %v3374
  %v3441 = vpop.permute.xlu0 %3440
  %3444 = vset.pattern.permute.xlu0 0
  %3445 = vperm.xlu0 %3444, %v3375
  %v3446 = vpop.permute.xlu0 %3445
  %3449 = vset.pattern.permute.xlu0 0
  %3450 = vperm.xlu0 %3449, %v3376
  %v3451 = vpop.permute.xlu0 %3450
  %3454 = vset.pattern.permute.xlu0 0
  %3455 = vperm.xlu0 %3454, %v3377
  %v3456 = vpop.permute.xlu0 %3455
  %3459 = vset.pattern.permute.xlu0 0
  %3460 = vperm.xlu0 %3459, %v3378
  %v3461 = vpop.permute.xlu0 %3460
  %3464 = vset.pattern.permute.xlu0 0
  %3465 = vperm.xlu0 %3464, %v3379
  %v3466 = vpop.permute.xlu0 %3465
  %3469 = vset.pattern.permute.xlu0 0
  %3470 = vperm.xlu0 %3469, %v3380
  %v3471 = vpop.permute.xlu0 %3470
  %3474 = vset.pattern.permute.xlu0 0
  %3475 = vperm.xlu0 %3474, %v3381
  %v3476 = vpop.permute.xlu0 %3475
  %3479 = vset.pattern.permute.xlu0 0
  %3480 = vperm.xlu0 %3479, %v3382
  %v3481 = vpop.permute.xlu0 %3480
  %3484 = vset.pattern.permute.xlu0 0
  %3485 = vperm.xlu0 %3484, %v3383
  %v3486 = vpop.permute.xlu0 %3485
  %3489 = vset.pattern.permute.xlu0 0
  %3490 = vperm.xlu0 %3489, %v3384
  %v3491 = vpop.permute.xlu0 %3490
  %3494 = vset.pattern.permute.xlu0 0
  %3495 = vperm.xlu0 %3494, %v3385
  %v3496 = vpop.permute.xlu0 %3495
  %3499 = vset.pattern.permute.xlu0 0
  %3500 = vperm.xlu0 %3499, %v3386
  %v3501 = vpop.permute.xlu0 %3500
  %3504 = vset.pattern.permute.xlu0 0
  %3505 = vperm.xlu0 %3504, %v3387
  %v3506 = vpop.permute.xlu0 %3505
  %3509 = vset.pattern.permute.xlu0 0
  %3510 = vperm.xlu0 %3509, %v3388
  %v3511 = vpop.permute.xlu0 %3510
  %3514 = vset.pattern.permute.xlu0 0
  %3515 = vperm.xlu0 %3514, %v3389
  %v3516 = vpop.permute.xlu0 %3515
  %3519 = vset.pattern.permute.xlu0 0
  %3520 = vperm.xlu0 %3519, %v3390
  %v3521 = vpop.permute.xlu0 %3520
  %3524 = vset.pattern.permute.xlu0 0
  %3525 = vperm.xlu0 %3524, %v3391
  %v3526 = vpop.permute.xlu0 %3525
  %3529 = vset.pattern.permute.xlu0 0
  %3530 = vperm.xlu0 %3529, %v3392
  %v3531 = vpop.permute.xlu0 %3530
  %3534 = vset.pattern.permute.xlu0 0
  %3535 = vperm.xlu0 %3534, %v3393
  %v3536 = vpop.permute.xlu0 %3535
  %3539 = vset.pattern.permute.xlu0 0
  %3540 = vperm.xlu0 %3539, %v3394
  %v3541 = vpop.permute.xlu0 %3540
  %3544 = vset.pattern.permute.xlu0 0
  %3545 = vperm.xlu0 %3544, %v3395
  %v3546 = vpop.permute.xlu0 %3545
  %3549 = vset.pattern.permute.xlu0 0
  %3550 = vperm.xlu0 %3549, %v3396
  %v3551 = vpop.permute.xlu0 %3550
  %3554 = vset.pattern.permute.xlu0 0
  %3555 = vperm.xlu0 %3554, %v3397
  %v3556 = vpop.permute.xlu0 %3555
  %3559 = vset.pattern.permute.xlu0 0
  %3560 = vperm.xlu0 %3559, %v3398
  %v3561 = vpop.permute.xlu0 %3560
  %3564 = vset.pattern.permute.xlu0 0
  %3565 = vperm.xlu0 %3564, %v3399
  %v3566 = vpop.permute.xlu0 %3565
  %3569 = vset.pattern.permute.xlu0 0
  %3570 = vperm.xlu0 %3569, %v3400
  %v3571 = vpop.permute.xlu0 %3570
  %3574 = vset.pattern.permute.xlu0 0
  %3575 = vperm.xlu0 %3574, %v3401
  %v3576 = vpop.permute.xlu0 %3575
  %3579 = vset.pattern.permute.xlu0 0
  %3580 = vperm.xlu0 %3579, %v3402
  %v3581 = vpop.permute.xlu0 %3580
  %3584 = vset.pattern.permute.xlu0 0
  %3585 = vperm.xlu0 %3584, %v3403
  %v3586 = vpop.permute.xlu0 %3585
  %3589 = vset.pattern.permute.xlu0 0
  %3590 = vperm.xlu0 %3589, %v3404
  %v3591 = vpop.permute.xlu0 %3590
  %3594 = vset.pattern.permute.xlu0 0
  %3595 = vperm.xlu0 %3594, %v3405
  %v3596 = vpop.permute.xlu0 %3595
  %3599 = vset.pattern.permute.xlu0 0
  %3600 = vperm.xlu0 %3599, %v3406
  %v3601 = vpop.permute.xlu0 %3600
  %3604 = vset.pattern.permute.xlu0 0
  %3605 = vperm.xlu0 %3604, %v3407
  %v3606 = vpop.permute.xlu0 %3605
  %3609 = vset.pattern.permute.xlu0 0
  %3610 = vperm.xlu0 %3609, %v3408
  %v3611 = vpop.permute.xlu0 %3610
  %3614 = vset.pattern.permute.xlu0 0
  %3615 = vperm.xlu0 %3614, %v3409
  %v3616 = vpop.permute.xlu0 %3615
  %3619 = vset.pattern.permute.xlu0 0
  %3620 = vperm.xlu0 %3619, %v3410
  %v3621 = vpop.permute.xlu0 %3620
  %3624 = vset.pattern.permute.xlu0 0
  %3625 = vperm.xlu0 %3624, %v3411
  %v3626 = vpop.permute.xlu0 %3625
  %3629 = vset.pattern.permute.xlu0 0
  %3630 = vperm.xlu0 %3629, %v3412
  %v3631 = vpop.permute.xlu0 %3630
  %3634 = vset.pattern.permute.xlu0 0
  %3635 = vperm.xlu0 %3634, %v3413
  %v3636 = vpop.permute.xlu0 %3635
  %3639 = vset.pattern.permute.xlu0 0
  %3640 = vperm.xlu0 %3639, %v3414
  %v3641 = vpop.permute.xlu0 %3640
  %3644 = vset.pattern.permute.xlu0 0
  %3645 = vperm.xlu0 %3644, %v3415
  %v3646 = vpop.permute.xlu0 %3645
  %3649 = vset.pattern.permute.xlu0 0
  %3650 = vperm.xlu0 %3649, %v3416
  %v3651 = vpop.permute.xlu0 %3650
  %3654 = vset.pattern.permute.xlu0 0
  %3655 = vperm.xlu0 %3654, %v3417
  %v3656 = vpop.permute.xlu0 %3655
  %3659 = vset.pattern.permute.xlu0 0
  %3660 = vperm.xlu0 %3659, %v3418
  %v3661 = vpop.permute.xlu0 %3660
  %3664 = vset.pattern.permute.xlu0 0
  %3665 = vperm.xlu0 %3664, %v3419
  %v3666 = vpop.permute.xlu0 %3665
  %3669 = vset.pattern.permute.xlu0 0
  %3670 = vperm.xlu0 %3669, %v3420
  %v3671 = vpop.permute.xlu0 %3670
  %3674 = vset.pattern.permute.xlu0 0
  %3675 = vperm.xlu0 %3674, %v3421
  %v3676 = vpop.permute.xlu0 %3675
  %3679 = vset.pattern.permute.xlu0 0
  %3680 = vperm.xlu0 %3679, %v3422
  %v3681 = vpop.permute.xlu0 %3680
  %3684 = vset.pattern.permute.xlu0 0
  %3685 = vperm.xlu0 %3684, %v3423
  %v3686 = vpop.permute.xlu0 %3685
  %3689 = vset.pattern.permute.xlu0 0
  %3690 = vperm.xlu0 %3689, %v3424
  %v3691 = vpop.permute.xlu0 %3690
  %3694 = vset.pattern.permute.xlu0 0
  %3695 = vperm.xlu0 %3694, %v3425
  %v3696 = vpop.permute.xlu0 %3695
  %3699 = vset.pattern.permute.xlu0 0
  %3700 = vperm.xlu0 %3699, %v3426
  %v3701 = vpop.permute.xlu0 %3700
  %3704 = vset.pattern.permute.xlu0 0
  %3705 = vperm.xlu0 %3704, %v3427
  %v3706 = vpop.permute.xlu0 %3705
  %3709 = vset.pattern.permute.xlu0 0
  %3710 = vperm.xlu0 %3709, %v3428
  %v3711 = vpop.permute.xlu0 %3710
  %3714 = vset.pattern.permute.xlu0 0
  %3715 = vperm.xlu0 %3714, %v3429
  %v3716 = vpop.permute.xlu0 %3715
  %3719 = vset.pattern.permute.xlu0 0
  %3720 = vperm.xlu0 %3719, %v3430
  %v3721 = vpop.permute.xlu0 %3720
  %3724 = vset.pattern.permute.xlu0 0
  %3725 = vperm.xlu0 %3724, %v3431
  %v3726 = vpop.permute.xlu0 %3725
  %3729 = vset.pattern.permute.xlu0 0
  %3730 = vperm.xlu0 %3729, %v3432
  %v3731 = vpop.permute.xlu0 %3730
  %3734 = vset.pattern.permute.xlu0 0
  %3735 = vperm.xlu0 %3734, %v3433
  %v3736 = vpop.permute.xlu0 %3735
  %3739 = vset.pattern.permute.xlu0 0
  %3740 = vperm.xlu0 %3739, %v3434
  %v3741 = vpop.permute.xlu0 %3740
  %3744 = vset.pattern.permute.xlu0 0
  %3745 = vperm.xlu0 %3744, %v3435
  %v3746 = vpop.permute.xlu0 %3745
  %3749 = vset.pattern.permute.xlu0 0
  %3750 = vperm.xlu0 %3749, %v3436
  %v3751 = vpop.permute.xlu0 %3750
  %3754 = vset.pattern.permute.xlu0 0
  %3755 = vperm.xlu0 %3754, %v3437
  %v3756 = vpop.permute.xlu0 %3755
  %v3886 = vunpack.c.l.b16 %v3246
  %v3887 = vunpack.c.h.b16 %v3246
  %v3888 = vunpack.c.l.b16 %v3247
  %v3889 = vunpack.c.h.b16 %v3247
  %v3890 = vunpack.c.l.b16 %v3248
  %v3891 = vunpack.c.h.b16 %v3248
  %v3892 = vunpack.c.l.b16 %v3249
  %v3893 = vunpack.c.h.b16 %v3249
  %v3894 = vunpack.c.l.b16 %v3250
  %v3895 = vunpack.c.h.b16 %v3250
  %v3896 = vunpack.c.l.b16 %v3251
  %v3897 = vunpack.c.h.b16 %v3251
  %v3898 = vunpack.c.l.b16 %v3252
  %v3899 = vunpack.c.h.b16 %v3252
  %v3900 = vunpack.c.l.b16 %v3253
  %v3901 = vunpack.c.h.b16 %v3253
  %v3902 = vunpack.c.l.b16 %v3254
  %v3903 = vunpack.c.h.b16 %v3254
  %v3904 = vunpack.c.l.b16 %v3255
  %v3905 = vunpack.c.h.b16 %v3255
  %v3906 = vunpack.c.l.b16 %v3256
  %v3907 = vunpack.c.h.b16 %v3256
  %v3908 = vunpack.c.l.b16 %v3257
  %v3909 = vunpack.c.h.b16 %v3257
  %v3910 = vunpack.c.l.b16 %v3258
  %v3911 = vunpack.c.h.b16 %v3258
  %v3912 = vunpack.c.l.b16 %v3259
  %v3913 = vunpack.c.h.b16 %v3259
  %v3914 = vunpack.c.l.b16 %v3260
  %v3915 = vunpack.c.h.b16 %v3260
  %v3916 = vunpack.c.l.b16 %v3261
  %v3917 = vunpack.c.h.b16 %v3261
  %v3918 = vunpack.c.l.b16 %v3262
  %v3919 = vunpack.c.h.b16 %v3262
  %v3920 = vunpack.c.l.b16 %v3263
  %v3921 = vunpack.c.h.b16 %v3263
  %v3922 = vunpack.c.l.b16 %v3264
  %v3923 = vunpack.c.h.b16 %v3264
  %v3924 = vunpack.c.l.b16 %v3265
  %v3925 = vunpack.c.h.b16 %v3265
  %v3926 = vunpack.c.l.b16 %v3266
  %v3927 = vunpack.c.h.b16 %v3266
  %v3928 = vunpack.c.l.b16 %v3267
  %v3929 = vunpack.c.h.b16 %v3267
  %v3930 = vunpack.c.l.b16 %v3268
  %v3931 = vunpack.c.h.b16 %v3268
  %v3932 = vunpack.c.l.b16 %v3269
  %v3933 = vunpack.c.h.b16 %v3269
  %v3934 = vunpack.c.l.b16 %v3270
  %v3935 = vunpack.c.h.b16 %v3270
  %v3936 = vunpack.c.l.b16 %v3271
  %v3937 = vunpack.c.h.b16 %v3271
  %v3938 = vunpack.c.l.b16 %v3272
  %v3939 = vunpack.c.h.b16 %v3272
  %v3940 = vunpack.c.l.b16 %v3273
  %v3941 = vunpack.c.h.b16 %v3273
  %v3942 = vunpack.c.l.b16 %v3274
  %v3943 = vunpack.c.h.b16 %v3274
  %v3944 = vunpack.c.l.b16 %v3275
  %v3945 = vunpack.c.h.b16 %v3275
  %v3946 = vunpack.c.l.b16 %v3276
  %v3947 = vunpack.c.h.b16 %v3276
  %v3948 = vunpack.c.l.b16 %v3277
  %v3949 = vunpack.c.h.b16 %v3277
  %v3950 = vunpack.c.l.b16 %v3278
  %v3951 = vunpack.c.h.b16 %v3278
  %v3952 = vunpack.c.l.b16 %v3279
  %v3953 = vunpack.c.h.b16 %v3279
  %v3954 = vunpack.c.l.b16 %v3280
  %v3955 = vunpack.c.h.b16 %v3280
  %v3956 = vunpack.c.l.b16 %v3281
  %v3957 = vunpack.c.h.b16 %v3281
  %v3958 = vunpack.c.l.b16 %v3282
  %v3959 = vunpack.c.h.b16 %v3282
  %v3960 = vunpack.c.l.b16 %v3283
  %v3961 = vunpack.c.h.b16 %v3283
  %v3962 = vunpack.c.l.b16 %v3284
  %v3963 = vunpack.c.h.b16 %v3284
  %v3964 = vunpack.c.l.b16 %v3285
  %v3965 = vunpack.c.h.b16 %v3285
  %v3966 = vunpack.c.l.b16 %v3286
  %v3967 = vunpack.c.h.b16 %v3286
  %v3968 = vunpack.c.l.b16 %v3287
  %v3969 = vunpack.c.h.b16 %v3287
  %v3970 = vunpack.c.l.b16 %v3288
  %v3971 = vunpack.c.h.b16 %v3288
  %v3972 = vunpack.c.l.b16 %v3289
  %v3973 = vunpack.c.h.b16 %v3289
  %v3974 = vunpack.c.l.b16 %v3290
  %v3975 = vunpack.c.h.b16 %v3290
  %v3976 = vunpack.c.l.b16 %v3291
  %v3977 = vunpack.c.h.b16 %v3291
  %v3978 = vunpack.c.l.b16 %v3292
  %v3979 = vunpack.c.h.b16 %v3292
  %v3980 = vunpack.c.l.b16 %v3293
  %v3981 = vunpack.c.h.b16 %v3293
  %v3982 = vunpack.c.l.b16 %v3294
  %v3983 = vunpack.c.h.b16 %v3294
  %v3984 = vunpack.c.l.b16 %v3295
  %v3985 = vunpack.c.h.b16 %v3295
  %v3986 = vunpack.c.l.b16 %v3296
  %v3987 = vunpack.c.h.b16 %v3296
  %v3988 = vunpack.c.l.b16 %v3297
  %v3989 = vunpack.c.h.b16 %v3297
  %v3990 = vunpack.c.l.b16 %v3298
  %v3991 = vunpack.c.h.b16 %v3298
  %v3992 = vunpack.c.l.b16 %v3299
  %v3993 = vunpack.c.h.b16 %v3299
  %v3994 = vunpack.c.l.b16 %v3300
  %v3995 = vunpack.c.h.b16 %v3300
  %v3996 = vunpack.c.l.b16 %v3301
  %v3997 = vunpack.c.h.b16 %v3301
  %v3998 = vunpack.c.l.b16 %v3302
  %v3999 = vunpack.c.h.b16 %v3302
  %v4000 = vunpack.c.l.b16 %v3303
  %v4001 = vunpack.c.h.b16 %v3303
  %v4002 = vunpack.c.l.b16 %v3304
  %v4003 = vunpack.c.h.b16 %v3304
  %v4004 = vunpack.c.l.b16 %v3305
  %v4005 = vunpack.c.h.b16 %v3305
  %v4006 = vunpack.c.l.b16 %v3306
  %v4007 = vunpack.c.h.b16 %v3306
  %v4008 = vunpack.c.l.b16 %v3307
  %v4009 = vunpack.c.h.b16 %v3307
  %v4010 = vunpack.c.l.b16 %v3308
  %v4011 = vunpack.c.h.b16 %v3308
  %v4012 = vunpack.c.l.b16 %v3309
  %v4013 = vunpack.c.h.b16 %v3309
  %v4014 = vunpack.c.l.b16 %v3310
  %v4015 = vunpack.c.h.b16 %v3310
  %v4016 = vunpack.c.l.b16 %v3311
  %v4017 = vunpack.c.h.b16 %v3311
  %v4018 = vunpack.c.l.b16 %v3312
  %v4019 = vunpack.c.h.b16 %v3312
  %v4020 = vunpack.c.l.b16 %v3313
  %v4021 = vunpack.c.h.b16 %v3313
  %v4022 = vunpack.c.l.b16 %v3314
  %v4023 = vunpack.c.h.b16 %v3314
  %v4024 = vunpack.c.l.b16 %v3315
  %v4025 = vunpack.c.h.b16 %v3315
  %v4026 = vunpack.c.l.b16 %v3316
  %v4027 = vunpack.c.h.b16 %v3316
  %v4028 = vunpack.c.l.b16 %v3317
  %v4029 = vunpack.c.h.b16 %v3317
  %v4030 = vunpack.c.l.b16 %v3318
  %v4031 = vunpack.c.h.b16 %v3318
  %v4032 = vunpack.c.l.b16 %v3319
  %v4033 = vunpack.c.h.b16 %v3319
  %v4034 = vunpack.c.l.b16 %v3320
  %v4035 = vunpack.c.h.b16 %v3320
  %v4036 = vunpack.c.l.b16 %v3321
  %v4037 = vunpack.c.h.b16 %v3321
  %v4038 = vunpack.c.l.b16 %v3322
  %v4039 = vunpack.c.h.b16 %v3322
  %v4040 = vunpack.c.l.b16 %v3323
  %v4041 = vunpack.c.h.b16 %v3323
  %v4042 = vunpack.c.l.b16 %v3324
  %v4043 = vunpack.c.h.b16 %v3324
  %v4044 = vunpack.c.l.b16 %v3325
  %v4045 = vunpack.c.h.b16 %v3325
  %v4046 = vunpack.c.l.b16 %v3326
  %v4047 = vunpack.c.h.b16 %v3326
  %v4048 = vunpack.c.l.b16 %v3327
  %v4049 = vunpack.c.h.b16 %v3327
  %v4050 = vunpack.c.l.b16 %v3328
  %v4051 = vunpack.c.h.b16 %v3328
  %v4052 = vunpack.c.l.b16 %v3329
  %v4053 = vunpack.c.h.b16 %v3329
  %v4054 = vunpack.c.l.b16 %v3330
  %v4055 = vunpack.c.h.b16 %v3330
  %v4056 = vunpack.c.l.b16 %v3331
  %v4057 = vunpack.c.h.b16 %v3331
  %v4058 = vunpack.c.l.b16 %v3332
  %v4059 = vunpack.c.h.b16 %v3332
  %v4060 = vunpack.c.l.b16 %v3333
  %v4061 = vunpack.c.h.b16 %v3333
  %v4062 = vunpack.c.l.b16 %v3334
  %v4063 = vunpack.c.h.b16 %v3334
  %v4064 = vunpack.c.l.b16 %v3335
  %v4065 = vunpack.c.h.b16 %v3335
  %v4066 = vunpack.c.l.b16 %v3336
  %v4067 = vunpack.c.h.b16 %v3336
  %v4068 = vunpack.c.l.b16 %v3337
  %v4069 = vunpack.c.h.b16 %v3337
  %v4070 = vunpack.c.l.b16 %v3338
  %v4071 = vunpack.c.h.b16 %v3338
  %v4072 = vunpack.c.l.b16 %v3339
  %v4073 = vunpack.c.h.b16 %v3339
  %v4074 = vunpack.c.l.b16 %v3340
  %v4075 = vunpack.c.h.b16 %v3340
  %v4076 = vunpack.c.l.b16 %v3341
  %v4077 = vunpack.c.h.b16 %v3341
  %v4078 = vunpack.c.l.b16 %v3342
  %v4079 = vunpack.c.h.b16 %v3342
  %v4080 = vunpack.c.l.b16 %v3343
  %v4081 = vunpack.c.h.b16 %v3343
  %v4082 = vunpack.c.l.b16 %v3344
  %v4083 = vunpack.c.h.b16 %v3344
  %v4084 = vunpack.c.l.b16 %v3345
  %v4085 = vunpack.c.h.b16 %v3345
  %v4086 = vunpack.c.l.b16 %v3346
  %v4087 = vunpack.c.h.b16 %v3346
  %v4088 = vunpack.c.l.b16 %v3347
  %v4089 = vunpack.c.h.b16 %v3347
  %v4090 = vunpack.c.l.b16 %v3348
  %v4091 = vunpack.c.h.b16 %v3348
  %v4092 = vunpack.c.l.b16 %v3349
  %v4093 = vunpack.c.h.b16 %v3349
  %v4094 = vunpack.c.l.b16 %v3350
  %v4095 = vunpack.c.h.b16 %v3350
  %v4096 = vunpack.c.l.b16 %v3351
  %v4097 = vunpack.c.h.b16 %v3351
  %v4098 = vunpack.c.l.b16 %v3352
  %v4099 = vunpack.c.h.b16 %v3352
  %v4100 = vunpack.c.l.b16 %v3353
  %v4101 = vunpack.c.h.b16 %v3353
  %v4102 = vunpack.c.l.b16 %v3354
  %v4103 = vunpack.c.h.b16 %v3354
  %v4104 = vunpack.c.l.b16 %v3355
  %v4105 = vunpack.c.h.b16 %v3355
  %v4106 = vunpack.c.l.b16 %v3356
  %v4107 = vunpack.c.h.b16 %v3356
  %v4108 = vunpack.c.l.b16 %v3357
  %v4109 = vunpack.c.h.b16 %v3357
  %v4110 = vunpack.c.l.b16 %v3358
  %v4111 = vunpack.c.h.b16 %v3358
  %v4112 = vunpack.c.l.b16 %v3359
  %v4113 = vunpack.c.h.b16 %v3359
  %v4114 = vunpack.c.l.b16 %v3360
  %v4115 = vunpack.c.h.b16 %v3360
  %v4116 = vunpack.c.l.b16 %v3361
  %v4117 = vunpack.c.h.b16 %v3361
  %v4118 = vunpack.c.l.b16 %v3362
  %v4119 = vunpack.c.h.b16 %v3362
  %v4120 = vunpack.c.l.b16 %v3363
  %v4121 = vunpack.c.h.b16 %v3363
  %v4122 = vunpack.c.l.b16 %v3364
  %v4123 = vunpack.c.h.b16 %v3364
  %v4124 = vunpack.c.l.b16 %v3365
  %v4125 = vunpack.c.h.b16 %v3365
  %v4126 = vunpack.c.l.b16 %v3366
  %v4127 = vunpack.c.h.b16 %v3366
  %v4128 = vunpack.c.l.b16 %v3367
  %v4129 = vunpack.c.h.b16 %v3367
  %v4130 = vunpack.c.l.b16 %v3368
  %v4131 = vunpack.c.h.b16 %v3368
  %v4132 = vunpack.c.l.b16 %v3369
  %v4133 = vunpack.c.h.b16 %v3369
  %v4134 = vunpack.c.l.b16 %v3370
  %v4135 = vunpack.c.h.b16 %v3370
  %v4136 = vunpack.c.l.b16 %v3371
  %v4137 = vunpack.c.h.b16 %v3371
  %v4138 = vunpack.c.l.b16 %v3372
  %v4139 = vunpack.c.h.b16 %v3372
  %v4140 = vunpack.c.l.b16 %v3373
  %v4141 = vunpack.c.h.b16 %v3373
  %v4142 = vpack.c.b16 %v3890, %v3886
  %v4143 = vpack.c.b16 %v3891, %v3887
  %v4144 = vpack.c.b16 %v3892, %v3888
  %v4145 = vpack.c.b16 %v3893, %v3889
  %v4146 = vpack.c.b16 %v3898, %v3894
  %v4147 = vpack.c.b16 %v3899, %v3895
  %v4148 = vpack.c.b16 %v3900, %v3896
  %v4149 = vpack.c.b16 %v3901, %v3897
  %v4150 = vpack.c.b16 %v3906, %v3902
  %v4151 = vpack.c.b16 %v3907, %v3903
  %v4152 = vpack.c.b16 %v3908, %v3904
  %v4153 = vpack.c.b16 %v3909, %v3905
  %v4154 = vpack.c.b16 %v3914, %v3910
  %v4155 = vpack.c.b16 %v3915, %v3911
  %v4156 = vpack.c.b16 %v3916, %v3912
  %v4157 = vpack.c.b16 %v3917, %v3913
  %v4158 = vpack.c.b16 %v3922, %v3918
  %v4159 = vpack.c.b16 %v3923, %v3919
  %v4160 = vpack.c.b16 %v3924, %v3920
  %v4161 = vpack.c.b16 %v3925, %v3921
  %v4162 = vpack.c.b16 %v3930, %v3926
  %v4163 = vpack.c.b16 %v3931, %v3927
  %v4164 = vpack.c.b16 %v3932, %v3928
  %v4165 = vpack.c.b16 %v3933, %v3929
  %v4166 = vpack.c.b16 %v3938, %v3934
  %v4167 = vpack.c.b16 %v3939, %v3935
  %v4168 = vpack.c.b16 %v3940, %v3936
  %v4169 = vpack.c.b16 %v3941, %v3937
  %v4170 = vpack.c.b16 %v3946, %v3942
  %v4171 = vpack.c.b16 %v3947, %v3943
  %v4172 = vpack.c.b16 %v3948, %v3944
  %v4173 = vpack.c.b16 %v3949, %v3945
  %v4174 = vpack.c.b16 %v3954, %v3950
  %v4175 = vpack.c.b16 %v3955, %v3951
  %v4176 = vpack.c.b16 %v3956, %v3952
  %v4177 = vpack.c.b16 %v3957, %v3953
  %v4178 = vpack.c.b16 %v3962, %v3958
  %v4179 = vpack.c.b16 %v3963, %v3959
  %v4180 = vpack.c.b16 %v3964, %v3960
  %v4181 = vpack.c.b16 %v3965, %v3961
  %v4182 = vpack.c.b16 %v3970, %v3966
  %v4183 = vpack.c.b16 %v3971, %v3967
  %v4184 = vpack.c.b16 %v3972, %v3968
  %v4185 = vpack.c.b16 %v3973, %v3969
  %v4186 = vpack.c.b16 %v3978, %v3974
  %v4187 = vpack.c.b16 %v3979, %v3975
  %v4188 = vpack.c.b16 %v3980, %v3976
  %v4189 = vpack.c.b16 %v3981, %v3977
  %v4190 = vpack.c.b16 %v3986, %v3982
  %v4191 = vpack.c.b16 %v3987, %v3983
  %v4192 = vpack.c.b16 %v3988, %v3984
  %v4193 = vpack.c.b16 %v3989, %v3985
  %v4194 = vpack.c.b16 %v3994, %v3990
  %v4195 = vpack.c.b16 %v3995, %v3991
  %v4196 = vpack.c.b16 %v3996, %v3992
  %v4197 = vpack.c.b16 %v3997, %v3993
  %v4198 = vpack.c.b16 %v4002, %v3998
  %v4199 = vpack.c.b16 %v4003, %v3999
  %v4200 = vpack.c.b16 %v4004, %v4000
  %v4201 = vpack.c.b16 %v4005, %v4001
  %v4202 = vpack.c.b16 %v4010, %v4006
  %v4203 = vpack.c.b16 %v4011, %v4007
  %v4204 = vpack.c.b16 %v4012, %v4008
  %v4205 = vpack.c.b16 %v4013, %v4009
  %v4206 = vpack.c.b16 %v4018, %v4014
  %v4207 = vpack.c.b16 %v4019, %v4015
  %v4208 = vpack.c.b16 %v4020, %v4016
  %v4209 = vpack.c.b16 %v4021, %v4017
  %v4210 = vpack.c.b16 %v4026, %v4022
  %v4211 = vpack.c.b16 %v4027, %v4023
  %v4212 = vpack.c.b16 %v4028, %v4024
  %v4213 = vpack.c.b16 %v4029, %v4025
  %v4214 = vpack.c.b16 %v4034, %v4030
  %v4215 = vpack.c.b16 %v4035, %v4031
  %v4216 = vpack.c.b16 %v4036, %v4032
  %v4217 = vpack.c.b16 %v4037, %v4033
  %v4218 = vpack.c.b16 %v4042, %v4038
  %v4219 = vpack.c.b16 %v4043, %v4039
  %v4220 = vpack.c.b16 %v4044, %v4040
  %v4221 = vpack.c.b16 %v4045, %v4041
  %v4222 = vpack.c.b16 %v4050, %v4046
  %v4223 = vpack.c.b16 %v4051, %v4047
  %v4224 = vpack.c.b16 %v4052, %v4048
  %v4225 = vpack.c.b16 %v4053, %v4049
  %v4226 = vpack.c.b16 %v4058, %v4054
  %v4227 = vpack.c.b16 %v4059, %v4055
  %v4228 = vpack.c.b16 %v4060, %v4056
  %v4229 = vpack.c.b16 %v4061, %v4057
  %v4230 = vpack.c.b16 %v4066, %v4062
  %v4231 = vpack.c.b16 %v4067, %v4063
  %v4232 = vpack.c.b16 %v4068, %v4064
  %v4233 = vpack.c.b16 %v4069, %v4065
  %v4234 = vpack.c.b16 %v4074, %v4070
  %v4235 = vpack.c.b16 %v4075, %v4071
  %v4236 = vpack.c.b16 %v4076, %v4072
  %v4237 = vpack.c.b16 %v4077, %v4073
  %v4238 = vpack.c.b16 %v4082, %v4078
  %v4239 = vpack.c.b16 %v4083, %v4079
  %v4240 = vpack.c.b16 %v4084, %v4080
  %v4241 = vpack.c.b16 %v4085, %v4081
  %v4242 = vpack.c.b16 %v4090, %v4086
  %v4243 = vpack.c.b16 %v4091, %v4087
  %v4244 = vpack.c.b16 %v4092, %v4088
  %v4245 = vpack.c.b16 %v4093, %v4089
  %v4246 = vpack.c.b16 %v4098, %v4094
  %v4247 = vpack.c.b16 %v4099, %v4095
  %v4248 = vpack.c.b16 %v4100, %v4096
  %v4249 = vpack.c.b16 %v4101, %v4097
  %v4250 = vpack.c.b16 %v4106, %v4102
  %v4251 = vpack.c.b16 %v4107, %v4103
  %v4252 = vpack.c.b16 %v4108, %v4104
  %v4253 = vpack.c.b16 %v4109, %v4105
  %v4254 = vpack.c.b16 %v4114, %v4110
  %v4255 = vpack.c.b16 %v4115, %v4111
  %v4256 = vpack.c.b16 %v4116, %v4112
  %v4257 = vpack.c.b16 %v4117, %v4113
  %v4258 = vpack.c.b16 %v4122, %v4118
  %v4259 = vpack.c.b16 %v4123, %v4119
  %v4260 = vpack.c.b16 %v4124, %v4120
  %v4261 = vpack.c.b16 %v4125, %v4121
  %v4262 = vpack.c.b16 %v4130, %v4126
  %v4263 = vpack.c.b16 %v4131, %v4127
  %v4264 = vpack.c.b16 %v4132, %v4128
  %v4265 = vpack.c.b16 %v4133, %v4129
  %v4266 = vpack.c.b16 %v4138, %v4134
  %v4267 = vpack.c.b16 %v4139, %v4135
  %v4268 = vpack.c.b16 %v4140, %v4136
  %v4269 = vpack.c.b16 %v4141, %v4137
  %4398 = vmatprep.subr.bf16.mxu0 0
  %4399 = vmatpush1.bf16.msra.mxu0 %v3214
  %4400 = vmatprep.subr.bf16.mxu0 0
  %4401 = vmatpush1.bf16.msra.mxu0 %v3215
  %4402 = vmatprep.subr.bf16.mxu0 0
  %4403 = vmatpush1.bf16.msra.mxu0 %v3216
  %4404 = vmatprep.subr.bf16.mxu0 0
  %4405 = vmatpush1.bf16.msra.mxu0 %v3217
  %4406 = vmatprep.subr.bf16.mxu0 0
  %4407 = vmatpush1.bf16.msra.mxu0 %v3218
  %4408 = vmatprep.subr.bf16.mxu0 0
  %4409 = vmatpush1.bf16.msra.mxu0 %v3219
  %4410 = vmatprep.subr.bf16.mxu0 0
  %4411 = vmatpush1.bf16.msra.mxu0 %v3220
  %4412 = vmatprep.subr.bf16.mxu0 0
  %4413 = vmatpush1.bf16.msra.mxu0 %v3221
  %4414 = vmatprep.subr.bf16.mxu0 0
  %4415 = vmatpush1.bf16.msra.mxu0 %v3222
  %4416 = vmatprep.subr.bf16.mxu0 0
  %4417 = vmatpush1.bf16.msra.mxu0 %v3223
  %4418 = vmatprep.subr.bf16.mxu0 0
  %4419 = vmatpush1.bf16.msra.mxu0 %v3224
  %4420 = vmatprep.subr.bf16.mxu0 0
  %4421 = vmatpush1.bf16.msra.mxu0 %v3225
  %4422 = vmatprep.subr.bf16.mxu0 0
  %4423 = vmatpush1.bf16.msra.mxu0 %v3226
  %4424 = vmatprep.subr.bf16.mxu0 0
  %4425 = vmatpush1.bf16.msra.mxu0 %v3227
  %4426 = vmatprep.subr.bf16.mxu0 0
  %4427 = vmatpush1.bf16.msra.mxu0 %v3228
  %4428 = vmatprep.subr.bf16.mxu0 0
  %4429 = vmatpush1.bf16.msra.mxu0 %v3229
  %4430 = vmatprep.mubr.bf16.mxu0 %v4143
  %4431 = vmatmul.mubr.bf16.gmra.mrb[0].mxu0 %v4142
  %v4432 = vpop.f32.mrb[0].mxu0
  %v4433 = vadd.f32 %v3441, %v4432
  %v4434 = vpop.f32.mrb[0].mxu0
  %v4435 = vpop.f32.mrb[0].mxu0
  %v4436 = vadd.f32 %v3446, %v4435
  %v4437 = vpop.f32.mrb[0].mxu0
  %4438 = vmatprep.mubr.bf16.mxu0 %v4147
  %4439 = vmatmul.mubr.bf16.gmra.mrb[0].mxu0 %v4146
  %v4440 = vpop.f32.mrb[0].mxu0
  %v4441 = vadd.f32 %v3451, %v4440
  %v4442 = vpop.f32.mrb[0].mxu0
  %v4443 = vpop.f32.mrb[0].mxu0
  %v4444 = vadd.f32 %v3456, %v4443
  %v4445 = vpop.f32.mrb[0].mxu0
  %4446 = vmatprep.mubr.bf16.mxu0 %v4151
  %4447 = vmatmul.mubr.bf16.gmra.mrb[0].mxu0 %v4150
  %v4448 = vpop.f32.mrb[0].mxu0
  %v4449 = vadd.f32 %v3461, %v4448
  %v4450 = vpop.f32.mrb[0].mxu0
  %v4451 = vpop.f32.mrb[0].mxu0
  %v4452 = vadd.f32 %v3466, %v4451
  %v4453 = vpop.f32.mrb[0].mxu0
  %4454 = vmatprep.mubr.bf16.mxu0 %v4155
  %4455 = vmatmul.mubr.bf16.gmra.mrb[0].mxu0 %v4154
  %v4456 = vpop.f32.mrb[0].mxu0
  %v4457 = vadd.f32 %v3471, %v4456
  %v4458 = vpop.f32.mrb[0].mxu0
  %v4459 = vpop.f32.mrb[0].mxu0
  %v4460 = vadd.f32 %v3476, %v4459
  %v4461 = vpop.f32.mrb[0].mxu0
  %4462 = vmatprep.mubr.bf16.mxu0 %v4159
  %4463 = vmatmul.mubr.bf16.gmra.mrb[0].mxu0 %v4158
  %v4464 = vpop.f32.mrb[0].mxu0
  %v4465 = vadd.f32 %v3481, %v4464
  %v4466 = vpop.f32.mrb[0].mxu0
  %v4467 = vpop.f32.mrb[0].mxu0
  %v4468 = vadd.f32 %v3486, %v4467
  %v4469 = vpop.f32.mrb[0].mxu0
  %4470 = vmatprep.mubr.bf16.mxu0 %v4163
  %4471 = vmatmul.mubr.bf16.gmra.mrb[0].mxu0 %v4162
  %v4472 = vpop.f32.mrb[0].mxu0
  %v4473 = vadd.f32 %v3491, %v4472
  %v4474 = vpop.f32.mrb[0].mxu0
  %v4475 = vpop.f32.mrb[0].mxu0
  %v4476 = vadd.f32 %v3496, %v4475
  %v4477 = vpop.f32.mrb[0].mxu0
  %4478 = vmatprep.mubr.bf16.mxu0 %v4167
  %4479 = vmatmul.mubr.bf16.gmra.mrb[0].mxu0 %v4166
  %v4480 = vpop.f32.mrb[0].mxu0
  %v4481 = vadd.f32 %v3501, %v4480
  %v4482 = vpop.f32.mrb[0].mxu0
  %v4483 = vpop.f32.mrb[0].mxu0
  %v4484 = vadd.f32 %v3506, %v4483
  %v4485 = vpop.f32.mrb[0].mxu0
  %4486 = vmatprep.mubr.bf16.mxu0 %v4171
  %4487 = vmatmul.mubr.bf16.gmra.mrb[0].mxu0 %v4170
  %v4488 = vpop.f32.mrb[0].mxu0
  %v4489 = vadd.f32 %v3511, %v4488
  %v4490 = vpop.f32.mrb[0].mxu0
  %v4491 = vpop.f32.mrb[0].mxu0
  %v4492 = vadd.f32 %v3516, %v4491
  %v4493 = vpop.f32.mrb[0].mxu0
  %4494 = vmatprep.mubr.bf16.mxu0 %v4175
  %4495 = vmatmul.mubr.bf16.gmra.mrb[0].mxu0 %v4174
  %v4496 = vpop.f32.mrb[0].mxu0
  %v4497 = vadd.f32 %v3521, %v4496
  %v4498 = vpop.f32.mrb[0].mxu0
  %v4499 = vpop.f32.mrb[0].mxu0
  %v4500 = vadd.f32 %v3526, %v4499
  %v4501 = vpop.f32.mrb[0].mxu0
  %4502 = vmatprep.mubr.bf16.mxu0 %v4179
  %4503 = vmatmul.mubr.bf16.gmra.mrb[0].mxu0 %v4178
  %v4504 = vpop.f32.mrb[0].mxu0
  %v4505 = vadd.f32 %v3531, %v4504
  %v4506 = vpop.f32.mrb[0].mxu0
  %v4507 = vpop.f32.mrb[0].mxu0
  %v4508 = vadd.f32 %v3536, %v4507
  %v4509 = vpop.f32.mrb[0].mxu0
  %4510 = vmatprep.mubr.bf16.mxu0 %v4183
  %4511 = vmatmul.mubr.bf16.gmra.mrb[0].mxu0 %v4182
  %v4512 = vpop.f32.mrb[0].mxu0
  %v4513 = vadd.f32 %v3541, %v4512
  %v4514 = vpop.f32.mrb[0].mxu0
  %v4515 = vpop.f32.mrb[0].mxu0
  %v4516 = vadd.f32 %v3546, %v4515
  %v4517 = vpop.f32.mrb[0].mxu0
  %4518 = vmatprep.mubr.bf16.mxu0 %v4187
  %4519 = vmatmul.mubr.bf16.gmra.mrb[0].mxu0 %v4186
  %v4520 = vpop.f32.mrb[0].mxu0
  %v4521 = vadd.f32 %v3551, %v4520
  %v4522 = vpop.f32.mrb[0].mxu0
  %v4523 = vpop.f32.mrb[0].mxu0
  %v4524 = vadd.f32 %v3556, %v4523
  %v4525 = vpop.f32.mrb[0].mxu0
  %4526 = vmatprep.mubr.bf16.mxu0 %v4191
  %4527 = vmatmul.mubr.bf16.gmra.mrb[0].mxu0 %v4190
  %v4528 = vpop.f32.mrb[0].mxu0
  %v4529 = vadd.f32 %v3561, %v4528
  %v4530 = vpop.f32.mrb[0].mxu0
  %v4531 = vpop.f32.mrb[0].mxu0
  %v4532 = vadd.f32 %v3566, %v4531
  %v4533 = vpop.f32.mrb[0].mxu0
  %4534 = vmatprep.mubr.bf16.mxu0 %v4195
  %4535 = vmatmul.mubr.bf16.gmra.mrb[0].mxu0 %v4194
  %v4536 = vpop.f32.mrb[0].mxu0
  %v4537 = vadd.f32 %v3571, %v4536
  %v4538 = vpop.f32.mrb[0].mxu0
  %v4539 = vpop.f32.mrb[0].mxu0
  %v4540 = vadd.f32 %v3576, %v4539
  %v4541 = vpop.f32.mrb[0].mxu0
  %4542 = vmatprep.mubr.bf16.mxu0 %v4199
  %4543 = vmatmul.mubr.bf16.gmra.mrb[0].mxu0 %v4198
  %v4544 = vpop.f32.mrb[0].mxu0
  %v4545 = vadd.f32 %v3581, %v4544
  %v4546 = vpop.f32.mrb[0].mxu0
  %v4547 = vpop.f32.mrb[0].mxu0
  %v4548 = vadd.f32 %v3586, %v4547
  %v4549 = vpop.f32.mrb[0].mxu0
  %4550 = vmatprep.mubr.bf16.mxu0 %v4203
  %4551 = vmatmul.mubr.bf16.gmra.mrb[0].mxu0 %v4202
  %v4552 = vpop.f32.mrb[0].mxu0
  %v4553 = vadd.f32 %v3591, %v4552
  %v4554 = vpop.f32.mrb[0].mxu0
  %v4555 = vpop.f32.mrb[0].mxu0
  %v4556 = vadd.f32 %v3596, %v4555
  %v4557 = vpop.f32.mrb[0].mxu0
  %4558 = vmatprep.mubr.bf16.mxu0 %v4207
  %4559 = vmatmul.mubr.bf16.gmra.mrb[0].mxu0 %v4206
  %v4560 = vpop.f32.mrb[0].mxu0
  %v4561 = vadd.f32 %v3601, %v4560
  %v4562 = vpop.f32.mrb[0].mxu0
  %v4563 = vpop.f32.mrb[0].mxu0
  %v4564 = vadd.f32 %v3606, %v4563
  %v4565 = vpop.f32.mrb[0].mxu0
  %4566 = vmatprep.mubr.bf16.mxu0 %v4211
  %4567 = vmatmul.mubr.bf16.gmra.mrb[0].mxu0 %v4210
  %v4568 = vpop.f32.mrb[0].mxu0
  %v4569 = vadd.f32 %v3611, %v4568
  %v4570 = vpop.f32.mrb[0].mxu0
  %v4571 = vpop.f32.mrb[0].mxu0
  %v4572 = vadd.f32 %v3616, %v4571
  %v4573 = vpop.f32.mrb[0].mxu0
  %4574 = vmatprep.mubr.bf16.mxu0 %v4215
  %4575 = vmatmul.mubr.bf16.gmra.mrb[0].mxu0 %v4214
  %v4576 = vpop.f32.mrb[0].mxu0
  %v4577 = vadd.f32 %v3621, %v4576
  %v4578 = vpop.f32.mrb[0].mxu0
  %v4579 = vpop.f32.mrb[0].mxu0
  %v4580 = vadd.f32 %v3626, %v4579
  %v4581 = vpop.f32.mrb[0].mxu0
  %4582 = vmatprep.mubr.bf16.mxu0 %v4219
  %4583 = vmatmul.mubr.bf16.gmra.mrb[0].mxu0 %v4218
  %v4584 = vpop.f32.mrb[0].mxu0
  %v4585 = vadd.f32 %v3631, %v4584
  %v4586 = vpop.f32.mrb[0].mxu0
  %v4587 = vpop.f32.mrb[0].mxu0
  %v4588 = vadd.f32 %v3636, %v4587
  %v4589 = vpop.f32.mrb[0].mxu0
  %4590 = vmatprep.mubr.bf16.mxu0 %v4223
  %4591 = vmatmul.mubr.bf16.gmra.mrb[0].mxu0 %v4222
  %v4592 = vpop.f32.mrb[0].mxu0
  %v4593 = vadd.f32 %v3641, %v4592
  %v4594 = vpop.f32.mrb[0].mxu0
  %v4595 = vpop.f32.mrb[0].mxu0
  %v4596 = vadd.f32 %v3646, %v4595
  %v4597 = vpop.f32.mrb[0].mxu0
  %4598 = vmatprep.mubr.bf16.mxu0 %v4227
  %4599 = vmatmul.mubr.bf16.gmra.mrb[0].mxu0 %v4226
  %v4600 = vpop.f32.mrb[0].mxu0
  %v4601 = vadd.f32 %v3651, %v4600
  %v4602 = vpop.f32.mrb[0].mxu0
  %v4603 = vpop.f32.mrb[0].mxu0
  %v4604 = vadd.f32 %v3656, %v4603
  %v4605 = vpop.f32.mrb[0].mxu0
  %4606 = vmatprep.mubr.bf16.mxu0 %v4231
  %4607 = vmatmul.mubr.bf16.gmra.mrb[0].mxu0 %v4230
  %v4608 = vpop.f32.mrb[0].mxu0
  %v4609 = vadd.f32 %v3661, %v4608
  %v4610 = vpop.f32.mrb[0].mxu0
  %v4611 = vpop.f32.mrb[0].mxu0
  %v4612 = vadd.f32 %v3666, %v4611
  %v4613 = vpop.f32.mrb[0].mxu0
  %4614 = vmatprep.mubr.bf16.mxu0 %v4235
  %4615 = vmatmul.mubr.bf16.gmra.mrb[0].mxu0 %v4234
  %v4616 = vpop.f32.mrb[0].mxu0
  %v4617 = vadd.f32 %v3671, %v4616
  %v4618 = vpop.f32.mrb[0].mxu0
  %v4619 = vpop.f32.mrb[0].mxu0
  %v4620 = vadd.f32 %v3676, %v4619
  %v4621 = vpop.f32.mrb[0].mxu0
  %4622 = vmatprep.mubr.bf16.mxu0 %v4239
  %4623 = vmatmul.mubr.bf16.gmra.mrb[0].mxu0 %v4238
  %v4624 = vpop.f32.mrb[0].mxu0
  %v4625 = vadd.f32 %v3681, %v4624
  %v4626 = vpop.f32.mrb[0].mxu0
  %v4627 = vpop.f32.mrb[0].mxu0
  %v4628 = vadd.f32 %v3686, %v4627
  %v4629 = vpop.f32.mrb[0].mxu0
  %4630 = vmatprep.mubr.bf16.mxu0 %v4243
  %4631 = vmatmul.mubr.bf16.gmra.mrb[0].mxu0 %v4242
  %v4632 = vpop.f32.mrb[0].mxu0
  %v4633 = vadd.f32 %v3691, %v4632
  %v4634 = vpop.f32.mrb[0].mxu0
  %v4635 = vpop.f32.mrb[0].mxu0
  %v4636 = vadd.f32 %v3696, %v4635
  %v4637 = vpop.f32.mrb[0].mxu0
  %4638 = vmatprep.mubr.bf16.mxu0 %v4247
  %4639 = vmatmul.mubr.bf16.gmra.mrb[0].mxu0 %v4246
  %v4640 = vpop.f32.mrb[0].mxu0
  %v4641 = vadd.f32 %v3701, %v4640
  %v4642 = vpop.f32.mrb[0].mxu0
  %v4643 = vpop.f32.mrb[0].mxu0
  %v4644 = vadd.f32 %v3706, %v4643
  %v4645 = vpop.f32.mrb[0].mxu0
  %4646 = vmatprep.mubr.bf16.mxu0 %v4251
  %4647 = vmatmul.mubr.bf16.gmra.mrb[0].mxu0 %v4250
  %v4648 = vpop.f32.mrb[0].mxu0
  %v4649 = vadd.f32 %v3711, %v4648
  %v4650 = vpop.f32.mrb[0].mxu0
  %v4651 = vpop.f32.mrb[0].mxu0
  %v4652 = vadd.f32 %v3716, %v4651
  %v4653 = vpop.f32.mrb[0].mxu0
  %4654 = vmatprep.mubr.bf16.mxu0 %v4255
  %4655 = vmatmul.mubr.bf16.gmra.mrb[0].mxu0 %v4254
  %v4656 = vpop.f32.mrb[0].mxu0
  %v4657 = vadd.f32 %v3721, %v4656
  %v4658 = vpop.f32.mrb[0].mxu0
  %v4659 = vpop.f32.mrb[0].mxu0
  %v4660 = vadd.f32 %v3726, %v4659
  %v4661 = vpop.f32.mrb[0].mxu0
  %4662 = vmatprep.mubr.bf16.mxu0 %v4259
  %4663 = vmatmul.mubr.bf16.gmra.mrb[0].mxu0 %v4258
  %v4664 = vpop.f32.mrb[0].mxu0
  %v4665 = vadd.f32 %v3731, %v4664
  %v4666 = vpop.f32.mrb[0].mxu0
  %v4667 = vpop.f32.mrb[0].mxu0
  %v4668 = vadd.f32 %v3736, %v4667
  %v4669 = vpop.f32.mrb[0].mxu0
  %4670 = vmatprep.mubr.bf16.mxu0 %v4263
  %4671 = vmatmul.mubr.bf16.gmra.mrb[0].mxu0 %v4262
  %v4672 = vpop.f32.mrb[0].mxu0
  %v4673 = vadd.f32 %v3741, %v4672
  %v4674 = vpop.f32.mrb[0].mxu0
  %v4675 = vpop.f32.mrb[0].mxu0
  %v4676 = vadd.f32 %v3746, %v4675
  %v4677 = vpop.f32.mrb[0].mxu0
  %4678 = vmatprep.mubr.bf16.mxu0 %v4267
  %4679 = vmatmul.mubr.bf16.gmra.mrb[0].mxu0 %v4266
  %v4680 = vpop.f32.mrb[0].mxu0
  %v4681 = vadd.f32 %v3751, %v4680
  %v4682 = vpop.f32.mrb[0].mxu0
  %v4683 = vpop.f32.mrb[0].mxu0
  %v4684 = vadd.f32 %v3756, %v4683
  %v4685 = vpop.f32.mrb[0].mxu0
  %4686 = vdwg.mxu0
  %4687 = vmatprep.subr.bf16.mxu0 0
  %4688 = vmatpush1.bf16.msra.mxu0 %v3230
  %4689 = vmatprep.subr.bf16.mxu0 0
  %4690 = vmatpush1.bf16.msra.mxu0 %v3231
  %4691 = vmatprep.subr.bf16.mxu0 0
  %4692 = vmatpush1.bf16.msra.mxu0 %v3232
  %4693 = vmatprep.subr.bf16.mxu0 0
  %4694 = vmatpush1.bf16.msra.mxu0 %v3233
  %4695 = vmatprep.subr.bf16.mxu0 0
  %4696 = vmatpush1.bf16.msra.mxu0 %v3234
  %4697 = vmatprep.subr.bf16.mxu0 0
  %4698 = vmatpush1.bf16.msra.mxu0 %v3235
  %4699 = vmatprep.subr.bf16.mxu0 0
  %4700 = vmatpush1.bf16.msra.mxu0 %v3236
  %4701 = vmatprep.subr.bf16.mxu0 0
  %4702 = vmatpush1.bf16.msra.mxu0 %v3237
  %4703 = vmatprep.subr.bf16.mxu0 0
  %4704 = vmatpush1.bf16.msra.mxu0 %v3238
  %4705 = vmatprep.subr.bf16.mxu0 0
  %4706 = vmatpush1.bf16.msra.mxu0 %v3239
  %4707 = vmatprep.subr.bf16.mxu0 0
  %4708 = vmatpush1.bf16.msra.mxu0 %v3240
  %4709 = vmatprep.subr.bf16.mxu0 0
  %4710 = vmatpush1.bf16.msra.mxu0 %v3241
  %4711 = vmatprep.subr.bf16.mxu0 0
  %4712 = vmatpush1.bf16.msra.mxu0 %v3242
  %4713 = vmatprep.subr.bf16.mxu0 0
  %4714 = vmatpush1.bf16.msra.mxu0 %v3243
  %4715 = vmatprep.subr.bf16.mxu0 0
  %4716 = vmatpush1.bf16.msra.mxu0 %v3244
  %4717 = vmatprep.subr.bf16.mxu0 0
  %4718 = vmatpush1.bf16.msra.mxu0 %v3245
  %4719 = vmatprep.mubr.bf16.mxu0 %v4145
  %4720 = vmatmul.mubr.bf16.gmra.mrb[0].mxu0 %v4144
  %v4721 = vpop.f32.mrb[0].mxu0
  %v4722 = vadd.f32 %v4433, %v4721
  %v4723 = vpop.f32.mrb[0].mxu0
  %v4724 = vpop.f32.mrb[0].mxu0
  %v4725 = vadd.f32 %v4436, %v4724
  %v4726 = vpop.f32.mrb[0].mxu0
  %4727 = vmatprep.mubr.bf16.mxu0 %v4149
  %4728 = vmatmul.mubr.bf16.gmra.mrb[0].mxu0 %v4148
  %v4729 = vpop.f32.mrb[0].mxu0
  %v4730 = vadd.f32 %v4441, %v4729
  %v4731 = vpop.f32.mrb[0].mxu0
  %v4732 = vpop.f32.mrb[0].mxu0
  %v4733 = vadd.f32 %v4444, %v4732
  %v4734 = vpop.f32.mrb[0].mxu0
  %4735 = vmatprep.mubr.bf16.mxu0 %v4153
  %4736 = vmatmul.mubr.bf16.gmra.mrb[0].mxu0 %v4152
  %v4737 = vpop.f32.mrb[0].mxu0
  %v4738 = vadd.f32 %v4449, %v4737
  %v4739 = vpop.f32.mrb[0].mxu0
  %v4740 = vpop.f32.mrb[0].mxu0
  %v4741 = vadd.f32 %v4452, %v4740
  %v4742 = vpop.f32.mrb[0].mxu0
  %4743 = vmatprep.mubr.bf16.mxu0 %v4157
  %4744 = vmatmul.mubr.bf16.gmra.mrb[0].mxu0 %v4156
  %v4745 = vpop.f32.mrb[0].mxu0
  %v4746 = vadd.f32 %v4457, %v4745
  %v4747 = vpop.f32.mrb[0].mxu0
  %v4748 = vpop.f32.mrb[0].mxu0
  %v4749 = vadd.f32 %v4460, %v4748
  %v4750 = vpop.f32.mrb[0].mxu0
  %4751 = vmatprep.mubr.bf16.mxu0 %v4161
  %4752 = vmatmul.mubr.bf16.gmra.mrb[0].mxu0 %v4160
  %v4753 = vpop.f32.mrb[0].mxu0
  %v4754 = vadd.f32 %v4465, %v4753
  %v4755 = vpop.f32.mrb[0].mxu0
  %v4756 = vpop.f32.mrb[0].mxu0
  %v4757 = vadd.f32 %v4468, %v4756
  %v4758 = vpop.f32.mrb[0].mxu0
  %4759 = vmatprep.mubr.bf16.mxu0 %v4165
  %4760 = vmatmul.mubr.bf16.gmra.mrb[0].mxu0 %v4164
  %v4761 = vpop.f32.mrb[0].mxu0
  %v4762 = vadd.f32 %v4473, %v4761
  %v4763 = vpop.f32.mrb[0].mxu0
  %v4764 = vpop.f32.mrb[0].mxu0
  %v4765 = vadd.f32 %v4476, %v4764
  %v4766 = vpop.f32.mrb[0].mxu0
  %4767 = vmatprep.mubr.bf16.mxu0 %v4169
  %4768 = vmatmul.mubr.bf16.gmra.mrb[0].mxu0 %v4168
  %v4769 = vpop.f32.mrb[0].mxu0
  %v4770 = vadd.f32 %v4481, %v4769
  %v4771 = vpop.f32.mrb[0].mxu0
  %v4772 = vpop.f32.mrb[0].mxu0
  %v4773 = vadd.f32 %v4484, %v4772
  %v4774 = vpop.f32.mrb[0].mxu0
  %4775 = vmatprep.mubr.bf16.mxu0 %v4173
  %4776 = vmatmul.mubr.bf16.gmra.mrb[0].mxu0 %v4172
  %v4777 = vpop.f32.mrb[0].mxu0
  %v4778 = vadd.f32 %v4489, %v4777
  %v4779 = vpop.f32.mrb[0].mxu0
  %v4780 = vpop.f32.mrb[0].mxu0
  %v4781 = vadd.f32 %v4492, %v4780
  %v4782 = vpop.f32.mrb[0].mxu0
  %4783 = vmatprep.mubr.bf16.mxu0 %v4177
  %4784 = vmatmul.mubr.bf16.gmra.mrb[0].mxu0 %v4176
  %v4785 = vpop.f32.mrb[0].mxu0
  %v4786 = vadd.f32 %v4497, %v4785
  %v4787 = vpop.f32.mrb[0].mxu0
  %v4788 = vpop.f32.mrb[0].mxu0
  %v4789 = vadd.f32 %v4500, %v4788
  %v4790 = vpop.f32.mrb[0].mxu0
  %4791 = vmatprep.mubr.bf16.mxu0 %v4181
  %4792 = vmatmul.mubr.bf16.gmra.mrb[0].mxu0 %v4180
  %v4793 = vpop.f32.mrb[0].mxu0
  %v4794 = vadd.f32 %v4505, %v4793
  %v4795 = vpop.f32.mrb[0].mxu0
  %v4796 = vpop.f32.mrb[0].mxu0
  %v4797 = vadd.f32 %v4508, %v4796
  %v4798 = vpop.f32.mrb[0].mxu0
  %4799 = vmatprep.mubr.bf16.mxu0 %v4185
  %4800 = vmatmul.mubr.bf16.gmra.mrb[0].mxu0 %v4184
  %v4801 = vpop.f32.mrb[0].mxu0
  %v4802 = vadd.f32 %v4513, %v4801
  %v4803 = vpop.f32.mrb[0].mxu0
  %v4804 = vpop.f32.mrb[0].mxu0
  %v4805 = vadd.f32 %v4516, %v4804
  %v4806 = vpop.f32.mrb[0].mxu0
  %4807 = vmatprep.mubr.bf16.mxu0 %v4189
  %4808 = vmatmul.mubr.bf16.gmra.mrb[0].mxu0 %v4188
  %v4809 = vpop.f32.mrb[0].mxu0
  %v4810 = vadd.f32 %v4521, %v4809
  %v4811 = vpop.f32.mrb[0].mxu0
  %v4812 = vpop.f32.mrb[0].mxu0
  %v4813 = vadd.f32 %v4524, %v4812
  %v4814 = vpop.f32.mrb[0].mxu0
  %4815 = vmatprep.mubr.bf16.mxu0 %v4193
  %4816 = vmatmul.mubr.bf16.gmra.mrb[0].mxu0 %v4192
  %v4817 = vpop.f32.mrb[0].mxu0
  %v4818 = vadd.f32 %v4529, %v4817
  %v4819 = vpop.f32.mrb[0].mxu0
  %v4820 = vpop.f32.mrb[0].mxu0
  %v4821 = vadd.f32 %v4532, %v4820
  %v4822 = vpop.f32.mrb[0].mxu0
  %4823 = vmatprep.mubr.bf16.mxu0 %v4197
  %4824 = vmatmul.mubr.bf16.gmra.mrb[0].mxu0 %v4196
  %v4825 = vpop.f32.mrb[0].mxu0
  %v4826 = vadd.f32 %v4537, %v4825
  %v4827 = vpop.f32.mrb[0].mxu0
  %v4828 = vpop.f32.mrb[0].mxu0
  %v4829 = vadd.f32 %v4540, %v4828
  %v4830 = vpop.f32.mrb[0].mxu0
  %4831 = vmatprep.mubr.bf16.mxu0 %v4201
  %4832 = vmatmul.mubr.bf16.gmra.mrb[0].mxu0 %v4200
  %v4833 = vpop.f32.mrb[0].mxu0
  %v4834 = vadd.f32 %v4545, %v4833
  %v4835 = vpop.f32.mrb[0].mxu0
  %v4836 = vpop.f32.mrb[0].mxu0
  %v4837 = vadd.f32 %v4548, %v4836
  %v4838 = vpop.f32.mrb[0].mxu0
  %4839 = vmatprep.mubr.bf16.mxu0 %v4205
  %4840 = vmatmul.mubr.bf16.gmra.mrb[0].mxu0 %v4204
  %v4841 = vpop.f32.mrb[0].mxu0
  %v4842 = vadd.f32 %v4553, %v4841
  %v4843 = vpop.f32.mrb[0].mxu0
  %v4844 = vpop.f32.mrb[0].mxu0
  %v4845 = vadd.f32 %v4556, %v4844
  %v4846 = vpop.f32.mrb[0].mxu0
  %4847 = vmatprep.mubr.bf16.mxu0 %v4209
  %4848 = vmatmul.mubr.bf16.gmra.mrb[0].mxu0 %v4208
  %v4849 = vpop.f32.mrb[0].mxu0
  %v4850 = vadd.f32 %v4561, %v4849
  %v4851 = vpop.f32.mrb[0].mxu0
  %v4852 = vpop.f32.mrb[0].mxu0
  %v4853 = vadd.f32 %v4564, %v4852
  %v4854 = vpop.f32.mrb[0].mxu0
  %4855 = vmatprep.mubr.bf16.mxu0 %v4213
  %4856 = vmatmul.mubr.bf16.gmra.mrb[0].mxu0 %v4212
  %v4857 = vpop.f32.mrb[0].mxu0
  %v4858 = vadd.f32 %v4569, %v4857
  %v4859 = vpop.f32.mrb[0].mxu0
  %v4860 = vpop.f32.mrb[0].mxu0
  %v4861 = vadd.f32 %v4572, %v4860
  %v4862 = vpop.f32.mrb[0].mxu0
  %4863 = vmatprep.mubr.bf16.mxu0 %v4217
  %4864 = vmatmul.mubr.bf16.gmra.mrb[0].mxu0 %v4216
  %v4865 = vpop.f32.mrb[0].mxu0
  %v4866 = vadd.f32 %v4577, %v4865
  %v4867 = vpop.f32.mrb[0].mxu0
  %v4868 = vpop.f32.mrb[0].mxu0
  %v4869 = vadd.f32 %v4580, %v4868
  %v4870 = vpop.f32.mrb[0].mxu0
  %4871 = vmatprep.mubr.bf16.mxu0 %v4221
  %4872 = vmatmul.mubr.bf16.gmra.mrb[0].mxu0 %v4220
  %v4873 = vpop.f32.mrb[0].mxu0
  %v4874 = vadd.f32 %v4585, %v4873
  %v4875 = vpop.f32.mrb[0].mxu0
  %v4876 = vpop.f32.mrb[0].mxu0
  %v4877 = vadd.f32 %v4588, %v4876
  %v4878 = vpop.f32.mrb[0].mxu0
  %4879 = vmatprep.mubr.bf16.mxu0 %v4225
  %4880 = vmatmul.mubr.bf16.gmra.mrb[0].mxu0 %v4224
  %v4881 = vpop.f32.mrb[0].mxu0
  %v4882 = vadd.f32 %v4593, %v4881
  %v4883 = vpop.f32.mrb[0].mxu0
  %v4884 = vpop.f32.mrb[0].mxu0
  %v4885 = vadd.f32 %v4596, %v4884
  %v4886 = vpop.f32.mrb[0].mxu0
  %4887 = vmatprep.mubr.bf16.mxu0 %v4229
  %4888 = vmatmul.mubr.bf16.gmra.mrb[0].mxu0 %v4228
  %v4889 = vpop.f32.mrb[0].mxu0
  %v4890 = vadd.f32 %v4601, %v4889
  %v4891 = vpop.f32.mrb[0].mxu0
  %v4892 = vpop.f32.mrb[0].mxu0
  %v4893 = vadd.f32 %v4604, %v4892
  %v4894 = vpop.f32.mrb[0].mxu0
  %4895 = vmatprep.mubr.bf16.mxu0 %v4233
  %4896 = vmatmul.mubr.bf16.gmra.mrb[0].mxu0 %v4232
  %v4897 = vpop.f32.mrb[0].mxu0
  %v4898 = vadd.f32 %v4609, %v4897
  %v4899 = vpop.f32.mrb[0].mxu0
  %v4900 = vpop.f32.mrb[0].mxu0
  %v4901 = vadd.f32 %v4612, %v4900
  %v4902 = vpop.f32.mrb[0].mxu0
  %4903 = vmatprep.mubr.bf16.mxu0 %v4237
  %4904 = vmatmul.mubr.bf16.gmra.mrb[0].mxu0 %v4236
  %v4905 = vpop.f32.mrb[0].mxu0
  %v4906 = vadd.f32 %v4617, %v4905
  %v4907 = vpop.f32.mrb[0].mxu0
  %v4908 = vpop.f32.mrb[0].mxu0
  %v4909 = vadd.f32 %v4620, %v4908
  %v4910 = vpop.f32.mrb[0].mxu0
  %4911 = vmatprep.mubr.bf16.mxu0 %v4241
  %4912 = vmatmul.mubr.bf16.gmra.mrb[0].mxu0 %v4240
  %v4913 = vpop.f32.mrb[0].mxu0
  %v4914 = vadd.f32 %v4625, %v4913
  %v4915 = vpop.f32.mrb[0].mxu0
  %v4916 = vpop.f32.mrb[0].mxu0
  %v4917 = vadd.f32 %v4628, %v4916
  %v4918 = vpop.f32.mrb[0].mxu0
  %4919 = vmatprep.mubr.bf16.mxu0 %v4245
  %4920 = vmatmul.mubr.bf16.gmra.mrb[0].mxu0 %v4244
  %v4921 = vpop.f32.mrb[0].mxu0
  %v4922 = vadd.f32 %v4633, %v4921
  %v4923 = vpop.f32.mrb[0].mxu0
  %v4924 = vpop.f32.mrb[0].mxu0
  %v4925 = vadd.f32 %v4636, %v4924
  %v4926 = vpop.f32.mrb[0].mxu0
  %4927 = vmatprep.mubr.bf16.mxu0 %v4249
  %4928 = vmatmul.mubr.bf16.gmra.mrb[0].mxu0 %v4248
  %v4929 = vpop.f32.mrb[0].mxu0
  %v4930 = vadd.f32 %v4641, %v4929
  %v4931 = vpop.f32.mrb[0].mxu0
  %v4932 = vpop.f32.mrb[0].mxu0
  %v4933 = vadd.f32 %v4644, %v4932
  %v4934 = vpop.f32.mrb[0].mxu0
  %4935 = vmatprep.mubr.bf16.mxu0 %v4253
  %4936 = vmatmul.mubr.bf16.gmra.mrb[0].mxu0 %v4252
  %v4937 = vpop.f32.mrb[0].mxu0
  %v4938 = vadd.f32 %v4649, %v4937
  %v4939 = vpop.f32.mrb[0].mxu0
  %v4940 = vpop.f32.mrb[0].mxu0
  %v4941 = vadd.f32 %v4652, %v4940
  %v4942 = vpop.f32.mrb[0].mxu0
  %4943 = vmatprep.mubr.bf16.mxu0 %v4257
  %4944 = vmatmul.mubr.bf16.gmra.mrb[0].mxu0 %v4256
  %v4945 = vpop.f32.mrb[0].mxu0
  %v4946 = vadd.f32 %v4657, %v4945
  %v4947 = vpop.f32.mrb[0].mxu0
  %v4948 = vpop.f32.mrb[0].mxu0
  %v4949 = vadd.f32 %v4660, %v4948
  %v4950 = vpop.f32.mrb[0].mxu0
  %4951 = vmatprep.mubr.bf16.mxu0 %v4261
  %4952 = vmatmul.mubr.bf16.gmra.mrb[0].mxu0 %v4260
  %v4953 = vpop.f32.mrb[0].mxu0
  %v4954 = vadd.f32 %v4665, %v4953
  %v4955 = vpop.f32.mrb[0].mxu0
  %v4956 = vpop.f32.mrb[0].mxu0
  %v4957 = vadd.f32 %v4668, %v4956
  %v4958 = vpop.f32.mrb[0].mxu0
  %4959 = vmatprep.mubr.bf16.mxu0 %v4265
  %4960 = vmatmul.mubr.bf16.gmra.mrb[0].mxu0 %v4264
  %v4961 = vpop.f32.mrb[0].mxu0
  %v4962 = vadd.f32 %v4673, %v4961
  %v4963 = vpop.f32.mrb[0].mxu0
  %v4964 = vpop.f32.mrb[0].mxu0
  %v4965 = vadd.f32 %v4676, %v4964
  %v4966 = vpop.f32.mrb[0].mxu0
  %4967 = vmatprep.mubr.bf16.mxu0 %v4269
  %4968 = vmatmul.mubr.bf16.gmra.mrb[0].mxu0 %v4268
  %v4969 = vpop.f32.mrb[0].mxu0
  %v4970 = vadd.f32 %v4681, %v4969
  %v4971 = vpop.f32.mrb[0].mxu0
  %v4972 = vpop.f32.mrb[0].mxu0
  %v4973 = vadd.f32 %v4684, %v4972
  %v4974 = vpop.f32.mrb[0].mxu0
  %4975 = vdwg.mxu0
  %v4976 = vmax.f32 %v4722, 0.0
  %v4977 = vmax.f32 %v4725, 0.0
  %v4978 = vmax.f32 %v4730, 0.0
  %v4979 = vmax.f32 %v4733, 0.0
  %v4980 = vmax.f32 %v4738, 0.0
  %v4981 = vmax.f32 %v4741, 0.0
  %v4982 = vmax.f32 %v4746, 0.0
  %v4983 = vmax.f32 %v4749, 0.0
  %v4984 = vmax.f32 %v4754, 0.0
  %v4985 = vmax.f32 %v4757, 0.0
  %v4986 = vmax.f32 %v4762, 0.0
  %v4987 = vmax.f32 %v4765, 0.0
  %v4988 = vmax.f32 %v4770, 0.0
  %v4989 = vmax.f32 %v4773, 0.0
  %v4990 = vmax.f32 %v4778, 0.0
  %v4991 = vmax.f32 %v4781, 0.0
  %v4992 = vmax.f32 %v4786, 0.0
  %v4993 = vmax.f32 %v4789, 0.0
  %v4994 = vmax.f32 %v4794, 0.0
  %v4995 = vmax.f32 %v4797, 0.0
  %v4996 = vmax.f32 %v4802, 0.0
  %v4997 = vmax.f32 %v4805, 0.0
  %v4998 = vmax.f32 %v4810, 0.0
  %v4999 = vmax.f32 %v4813, 0.0
  %v5000 = vmax.f32 %v4818, 0.0
  %v5001 = vmax.f32 %v4821, 0.0
  %v5002 = vmax.f32 %v4826, 0.0
  %v5003 = vmax.f32 %v4829, 0.0
  %v5004 = vmax.f32 %v4834, 0.0
  %v5005 = vmax.f32 %v4837, 0.0
  %v5006 = vmax.f32 %v4842, 0.0
  %v5007 = vmax.f32 %v4845, 0.0
  %v5008 = vmax.f32 %v4850, 0.0
  %v5009 = vmax.f32 %v4853, 0.0
  %v5010 = vmax.f32 %v4858, 0.0
  %v5011 = vmax.f32 %v4861, 0.0
  %v5012 = vmax.f32 %v4866, 0.0
  %v5013 = vmax.f32 %v4869, 0.0
  %v5014 = vmax.f32 %v4874, 0.0
  %v5015 = vmax.f32 %v4877, 0.0
  %v5016 = vmax.f32 %v4882, 0.0
  %v5017 = vmax.f32 %v4885, 0.0
  %v5018 = vmax.f32 %v4890, 0.0
  %v5019 = vmax.f32 %v4893, 0.0
  %v5020 = vmax.f32 %v4898, 0.0
  %v5021 = vmax.f32 %v4901, 0.0
  %v5022 = vmax.f32 %v4906, 0.0
  %v5023 = vmax.f32 %v4909, 0.0
  %v5024 = vmax.f32 %v4914, 0.0
  %v5025 = vmax.f32 %v4917, 0.0
  %v5026 = vmax.f32 %v4922, 0.0
  %v5027 = vmax.f32 %v4925, 0.0
  %v5028 = vmax.f32 %v4930, 0.0
  %v5029 = vmax.f32 %v4933, 0.0
  %v5030 = vmax.f32 %v4938, 0.0
  %v5031 = vmax.f32 %v4941, 0.0
  %v5032 = vmax.f32 %v4946, 0.0
  %v5033 = vmax.f32 %v4949, 0.0
  %v5034 = vmax.f32 %v4954, 0.0
  %v5035 = vmax.f32 %v4957, 0.0
  %v5036 = vmax.f32 %v4962, 0.0
  %v5037 = vmax.f32 %v4965, 0.0
  %v5038 = vmax.f32 %v4970, 0.0
  %v5039 = vmax.f32 %v4973, 0.0
  %v5040 = vld [vmem:[%s7] sm:$0xff]
  %v5041 = vld [vmem:[%s7 + $0x8] sm:$0xff]
  %v5042 = vld [vmem:[%s7 + $0x10] sm:$0xff]
  %v5043 = vld [vmem:[%s7 + $0x18] sm:$0xff]
  %v5044 = vld [vmem:[%s7 + $0x20] sm:$0xff]
  %v5045 = vld [vmem:[%s7 + $0x28] sm:$0xff]
  %v5046 = vld [vmem:[%s7 + $0x30] sm:$0xff]
  %v5047 = vld [vmem:[%s7 + $0x38] sm:$0xff]
  %v5048 = vld [vmem:[%s7 + $0x40] sm:$0xff]
  %v5049 = vld [vmem:[%s7 + $0x48] sm:$0xff]
  %v5050 = vld [vmem:[%s7 + $0x50] sm:$0xff]
  %v5051 = vld [vmem:[%s7 + $0x58] sm:$0xff]
  %v5052 = vld [vmem:[%s7 + $0x60] sm:$0xff]
  %v5053 = vld [vmem:[%s7 + $0x68] sm:$0xff]
  %v5054 = vld [vmem:[%s7 + $0x70] sm:$0xff]
  %v5055 = vld [vmem:[%s7 + $0x78] sm:$0xff]
  %v5056 = vld [vmem:[%s7 + $0x80] sm:$0xff]
  %v5057 = vld [vmem:[%s7 + $0x88] sm:$0xff]
  %v5058 = vld [vmem:[%s7 + $0x90] sm:$0xff]
  %v5059 = vld [vmem:[%s7 + $0x98] sm:$0xff]
  %v5060 = vld [vmem:[%s7 + $0xa0] sm:$0xff]
  %v5061 = vld [vmem:[%s7 + $0xa8] sm:$0xff]
  %v5062 = vld [vmem:[%s7 + $0xb0] sm:$0xff]
  %v5063 = vld [vmem:[%s7 + $0xb8] sm:$0xff]
  %v5064 = vld [vmem:[%s7 + $0xc0] sm:$0xff]
  %v5065 = vld [vmem:[%s7 + $0xc8] sm:$0xff]
  %v5066 = vld [vmem:[%s7 + $0xd0] sm:$0xff]
  %v5067 = vld [vmem:[%s7 + $0xd8] sm:$0xff]
  %v5068 = vld [vmem:[%s7 + $0xe0] sm:$0xff]
  %v5069 = vld [vmem:[%s7 + $0xe8] sm:$0xff]
  %v5070 = vld [vmem:[%s7 + $0xf0] sm:$0xff]
  %v5071 = vld [vmem:[%s7 + $0xf8] sm:$0xff]
  %v5072 = vld [vmem:[%s7 + $0x100] sm:$0xff]
  %v5073 = vld [vmem:[%s7 + $0x108] sm:$0xff]
  %v5074 = vld [vmem:[%s7 + $0x110] sm:$0xff]
  %v5075 = vld [vmem:[%s7 + $0x118] sm:$0xff]
  %v5076 = vld [vmem:[%s7 + $0x120] sm:$0xff]
  %v5077 = vld [vmem:[%s7 + $0x128] sm:$0xff]
  %v5078 = vld [vmem:[%s7 + $0x130] sm:$0xff]
  %v5079 = vld [vmem:[%s7 + $0x138] sm:$0xff]
  %v5080 = vld [vmem:[%s7 + $0x140] sm:$0xff]
  %v5081 = vld [vmem:[%s7 + $0x148] sm:$0xff]
  %v5082 = vld [vmem:[%s7 + $0x150] sm:$0xff]
  %v5083 = vld [vmem:[%s7 + $0x158] sm:$0xff]
  %v5084 = vld [vmem:[%s7 + $0x160] sm:$0xff]
  %v5085 = vld [vmem:[%s7 + $0x168] sm:$0xff]
  %v5086 = vld [vmem:[%s7 + $0x170] sm:$0xff]
  %v5087 = vld [vmem:[%s7 + $0x178] sm:$0xff]
  %v5088 = vld [vmem:[%s7 + $0x180] sm:$0xff]
  %v5089 = vld [vmem:[%s7 + $0x188] sm:$0xff]
  %v5090 = vld [vmem:[%s7 + $0x190] sm:$0xff]
  %v5091 = vld [vmem:[%s7 + $0x198] sm:$0xff]
  %v5092 = vld [vmem:[%s7 + $0x1a0] sm:$0xff]
  %v5093 = vld [vmem:[%s7 + $0x1a8] sm:$0xff]
  %v5094 = vld [vmem:[%s7 + $0x1b0] sm:$0xff]
  %v5095 = vld [vmem:[%s7 + $0x1b8] sm:$0xff]
  %v5096 = vld [vmem:[%s7 + $0x1c0] sm:$0xff]
  %v5097 = vld [vmem:[%s7 + $0x1c8] sm:$0xff]
  %v5098 = vld [vmem:[%s7 + $0x1d0] sm:$0xff]
  %v5099 = vld [vmem:[%s7 + $0x1d8] sm:$0xff]
  %v5100 = vld [vmem:[%s7 + $0x1e0] sm:$0xff]
  %v5101 = vld [vmem:[%s7 + $0x1e8] sm:$0xff]
  %v5102 = vld [vmem:[%s7 + $0x1f0] sm:$0xff]
  %v5103 = vld [vmem:[%s7 + $0x1f8] sm:$0xff]
  %5105 = vset.pattern.permute.xlu0 0
  %5106 = vperm.xlu0 %5105, %v5040
  %v5107 = vpop.permute.xlu0 %5106
  %5110 = vset.pattern.permute.xlu0 0
  %5111 = vperm.xlu0 %5110, %v5041
  %v5112 = vpop.permute.xlu0 %5111
  %5115 = vset.pattern.permute.xlu0 0
  %5116 = vperm.xlu0 %5115, %v5042
  %v5117 = vpop.permute.xlu0 %5116
  %5120 = vset.pattern.permute.xlu0 0
  %5121 = vperm.xlu0 %5120, %v5043
  %v5122 = vpop.permute.xlu0 %5121
  %5125 = vset.pattern.permute.xlu0 0
  %5126 = vperm.xlu0 %5125, %v5044
  %v5127 = vpop.permute.xlu0 %5126
  %5130 = vset.pattern.permute.xlu0 0
  %5131 = vperm.xlu0 %5130, %v5045
  %v5132 = vpop.permute.xlu0 %5131
  %5135 = vset.pattern.permute.xlu0 0
  %5136 = vperm.xlu0 %5135, %v5046
  %v5137 = vpop.permute.xlu0 %5136
  %5140 = vset.pattern.permute.xlu0 0
  %5141 = vperm.xlu0 %5140, %v5047
  %v5142 = vpop.permute.xlu0 %5141
  %5145 = vset.pattern.permute.xlu0 0
  %5146 = vperm.xlu0 %5145, %v5048
  %v5147 = vpop.permute.xlu0 %5146
  %5150 = vset.pattern.permute.xlu0 0
  %5151 = vperm.xlu0 %5150, %v5049
  %v5152 = vpop.permute.xlu0 %5151
  %5155 = vset.pattern.permute.xlu0 0
  %5156 = vperm.xlu0 %5155, %v5050
  %v5157 = vpop.permute.xlu0 %5156
  %5160 = vset.pattern.permute.xlu0 0
  %5161 = vperm.xlu0 %5160, %v5051
  %v5162 = vpop.permute.xlu0 %5161
  %5165 = vset.pattern.permute.xlu0 0
  %5166 = vperm.xlu0 %5165, %v5052
  %v5167 = vpop.permute.xlu0 %5166
  %5170 = vset.pattern.permute.xlu0 0
  %5171 = vperm.xlu0 %5170, %v5053
  %v5172 = vpop.permute.xlu0 %5171
  %5175 = vset.pattern.permute.xlu0 0
  %5176 = vperm.xlu0 %5175, %v5054
  %v5177 = vpop.permute.xlu0 %5176
  %5180 = vset.pattern.permute.xlu0 0
  %5181 = vperm.xlu0 %5180, %v5055
  %v5182 = vpop.permute.xlu0 %5181
  %5185 = vset.pattern.permute.xlu0 0
  %5186 = vperm.xlu0 %5185, %v5056
  %v5187 = vpop.permute.xlu0 %5186
  %5190 = vset.pattern.permute.xlu0 0
  %5191 = vperm.xlu0 %5190, %v5057
  %v5192 = vpop.permute.xlu0 %5191
  %5195 = vset.pattern.permute.xlu0 0
  %5196 = vperm.xlu0 %5195, %v5058
  %v5197 = vpop.permute.xlu0 %5196
  %5200 = vset.pattern.permute.xlu0 0
  %5201 = vperm.xlu0 %5200, %v5059
  %v5202 = vpop.permute.xlu0 %5201
  %5205 = vset.pattern.permute.xlu0 0
  %5206 = vperm.xlu0 %5205, %v5060
  %v5207 = vpop.permute.xlu0 %5206
  %5210 = vset.pattern.permute.xlu0 0
  %5211 = vperm.xlu0 %5210, %v5061
  %v5212 = vpop.permute.xlu0 %5211
  %5215 = vset.pattern.permute.xlu0 0
  %5216 = vperm.xlu0 %5215, %v5062
  %v5217 = vpop.permute.xlu0 %5216
  %5220 = vset.pattern.permute.xlu0 0
  %5221 = vperm.xlu0 %5220, %v5063
  %v5222 = vpop.permute.xlu0 %5221
  %5225 = vset.pattern.permute.xlu0 0
  %5226 = vperm.xlu0 %5225, %v5064
  %v5227 = vpop.permute.xlu0 %5226
  %5230 = vset.pattern.permute.xlu0 0
  %5231 = vperm.xlu0 %5230, %v5065
  %v5232 = vpop.permute.xlu0 %5231
  %5235 = vset.pattern.permute.xlu0 0
  %5236 = vperm.xlu0 %5235, %v5066
  %v5237 = vpop.permute.xlu0 %5236
  %5240 = vset.pattern.permute.xlu0 0
  %5241 = vperm.xlu0 %5240, %v5067
  %v5242 = vpop.permute.xlu0 %5241
  %5245 = vset.pattern.permute.xlu0 0
  %5246 = vperm.xlu0 %5245, %v5068
  %v5247 = vpop.permute.xlu0 %5246
  %5250 = vset.pattern.permute.xlu0 0
  %5251 = vperm.xlu0 %5250, %v5069
  %v5252 = vpop.permute.xlu0 %5251
  %5255 = vset.pattern.permute.xlu0 0
  %5256 = vperm.xlu0 %5255, %v5070
  %v5257 = vpop.permute.xlu0 %5256
  %5260 = vset.pattern.permute.xlu0 0
  %5261 = vperm.xlu0 %5260, %v5071
  %v5262 = vpop.permute.xlu0 %5261
  %5265 = vset.pattern.permute.xlu0 0
  %5266 = vperm.xlu0 %5265, %v5072
  %v5267 = vpop.permute.xlu0 %5266
  %5270 = vset.pattern.permute.xlu0 0
  %5271 = vperm.xlu0 %5270, %v5073
  %v5272 = vpop.permute.xlu0 %5271
  %5275 = vset.pattern.permute.xlu0 0
  %5276 = vperm.xlu0 %5275, %v5074
  %v5277 = vpop.permute.xlu0 %5276
  %5280 = vset.pattern.permute.xlu0 0
  %5281 = vperm.xlu0 %5280, %v5075
  %v5282 = vpop.permute.xlu0 %5281
  %5285 = vset.pattern.permute.xlu0 0
  %5286 = vperm.xlu0 %5285, %v5076
  %v5287 = vpop.permute.xlu0 %5286
  %5290 = vset.pattern.permute.xlu0 0
  %5291 = vperm.xlu0 %5290, %v5077
  %v5292 = vpop.permute.xlu0 %5291
  %5295 = vset.pattern.permute.xlu0 0
  %5296 = vperm.xlu0 %5295, %v5078
  %v5297 = vpop.permute.xlu0 %5296
  %5300 = vset.pattern.permute.xlu0 0
  %5301 = vperm.xlu0 %5300, %v5079
  %v5302 = vpop.permute.xlu0 %5301
  %5305 = vset.pattern.permute.xlu0 0
  %5306 = vperm.xlu0 %5305, %v5080
  %v5307 = vpop.permute.xlu0 %5306
  %5310 = vset.pattern.permute.xlu0 0
  %5311 = vperm.xlu0 %5310, %v5081
  %v5312 = vpop.permute.xlu0 %5311
  %5315 = vset.pattern.permute.xlu0 0
  %5316 = vperm.xlu0 %5315, %v5082
  %v5317 = vpop.permute.xlu0 %5316
  %5320 = vset.pattern.permute.xlu0 0
  %5321 = vperm.xlu0 %5320, %v5083
  %v5322 = vpop.permute.xlu0 %5321
  %5325 = vset.pattern.permute.xlu0 0
  %5326 = vperm.xlu0 %5325, %v5084
  %v5327 = vpop.permute.xlu0 %5326
  %5330 = vset.pattern.permute.xlu0 0
  %5331 = vperm.xlu0 %5330, %v5085
  %v5332 = vpop.permute.xlu0 %5331
  %5335 = vset.pattern.permute.xlu0 0
  %5336 = vperm.xlu0 %5335, %v5086
  %v5337 = vpop.permute.xlu0 %5336
  %5340 = vset.pattern.permute.xlu0 0
  %5341 = vperm.xlu0 %5340, %v5087
  %v5342 = vpop.permute.xlu0 %5341
  %5345 = vset.pattern.permute.xlu0 0
  %5346 = vperm.xlu0 %5345, %v5088
  %v5347 = vpop.permute.xlu0 %5346
  %5350 = vset.pattern.permute.xlu0 0
  %5351 = vperm.xlu0 %5350, %v5089
  %v5352 = vpop.permute.xlu0 %5351
  %5355 = vset.pattern.permute.xlu0 0
  %5356 = vperm.xlu0 %5355, %v5090
  %v5357 = vpop.permute.xlu0 %5356
  %5360 = vset.pattern.permute.xlu0 0
  %5361 = vperm.xlu0 %5360, %v5091
  %v5362 = vpop.permute.xlu0 %5361
  %5365 = vset.pattern.permute.xlu0 0
  %5366 = vperm.xlu0 %5365, %v5092
  %v5367 = vpop.permute.xlu0 %5366
  %5370 = vset.pattern.permute.xlu0 0
  %5371 = vperm.xlu0 %5370, %v5093
  %v5372 = vpop.permute.xlu0 %5371
  %5375 = vset.pattern.permute.xlu0 0
  %5376 = vperm.xlu0 %5375, %v5094
  %v5377 = vpop.permute.xlu0 %5376
  %5380 = vset.pattern.permute.xlu0 0
  %5381 = vperm.xlu0 %5380, %v5095
  %v5382 = vpop.permute.xlu0 %5381
  %5385 = vset.pattern.permute.xlu0 0
  %5386 = vperm.xlu0 %5385, %v5096
  %v5387 = vpop.permute.xlu0 %5386
  %5390 = vset.pattern.permute.xlu0 0
  %5391 = vperm.xlu0 %5390, %v5097
  %v5392 = vpop.permute.xlu0 %5391
  %5395 = vset.pattern.permute.xlu0 0
  %5396 = vperm.xlu0 %5395, %v5098
  %v5397 = vpop.permute.xlu0 %5396
  %5400 = vset.pattern.permute.xlu0 0
  %5401 = vperm.xlu0 %5400, %v5099
  %v5402 = vpop.permute.xlu0 %5401
  %5405 = vset.pattern.permute.xlu0 0
  %5406 = vperm.xlu0 %5405, %v5100
  %v5407 = vpop.permute.xlu0 %5406
  %5410 = vset.pattern.permute.xlu0 0
  %5411 = vperm.xlu0 %5410, %v5101
  %v5412 = vpop.permute.xlu0 %5411
  %5415 = vset.pattern.permute.xlu0 0
  %5416 = vperm.xlu0 %5415, %v5102
  %v5417 = vpop.permute.xlu0 %5416
  %5420 = vset.pattern.permute.xlu0 0
  %5421 = vperm.xlu0 %5420, %v5103
  %v5422 = vpop.permute.xlu0 %5421
  %v5424 = vmul.f32 %v5107, %v4976
  %v5425 = vmul.f32 %v5112, %v4977
  %v5426 = vmul.f32 %v5117, %v4978
  %v5427 = vmul.f32 %v5122, %v4979
  %v5428 = vmul.f32 %v5127, %v4980
  %v5429 = vmul.f32 %v5132, %v4981
  %v5430 = vmul.f32 %v5137, %v4982
  %v5431 = vmul.f32 %v5142, %v4983
  %v5432 = vmul.f32 %v5147, %v4984
  %v5433 = vmul.f32 %v5152, %v4985
  %v5434 = vmul.f32 %v5157, %v4986
  %v5435 = vmul.f32 %v5162, %v4987
  %v5436 = vmul.f32 %v5167, %v4988
  %v5437 = vmul.f32 %v5172, %v4989
  %v5438 = vmul.f32 %v5177, %v4990
  %v5439 = vmul.f32 %v5182, %v4991
  %v5440 = vmul.f32 %v5187, %v4992
  %v5441 = vmul.f32 %v5192, %v4993
  %v5442 = vmul.f32 %v5197, %v4994
  %v5443 = vmul.f32 %v5202, %v4995
  %v5444 = vmul.f32 %v5207, %v4996
  %v5445 = vmul.f32 %v5212, %v4997
  %v5446 = vmul.f32 %v5217, %v4998
  %v5447 = vmul.f32 %v5222, %v4999
  %v5448 = vmul.f32 %v5227, %v5000
  %v5449 = vmul.f32 %v5232, %v5001
  %v5450 = vmul.f32 %v5237, %v5002
  %v5451 = vmul.f32 %v5242, %v5003
  %v5452 = vmul.f32 %v5247, %v5004
  %v5453 = vmul.f32 %v5252, %v5005
  %v5454 = vmul.f32 %v5257, %v5006
  %v5455 = vmul.f32 %v5262, %v5007
  %v5456 = vmul.f32 %v5267, %v5008
  %v5457 = vmul.f32 %v5272, %v5009
  %v5458 = vmul.f32 %v5277, %v5010
  %v5459 = vmul.f32 %v5282, %v5011
  %v5460 = vmul.f32 %v5287, %v5012
  %v5461 = vmul.f32 %v5292, %v5013
  %v5462 = vmul.f32 %v5297, %v5014
  %v5463 = vmul.f32 %v5302, %v5015
  %v5464 = vmul.f32 %v5307, %v5016
  %v5465 = vmul.f32 %v5312, %v5017
  %v5466 = vmul.f32 %v5317, %v5018
  %v5467 = vmul.f32 %v5322, %v5019
  %v5468 = vmul.f32 %v5327, %v5020
  %v5469 = vmul.f32 %v5332, %v5021
  %v5470 = vmul.f32 %v5337, %v5022
  %v5471 = vmul.f32 %v5342, %v5023
  %v5472 = vmul.f32 %v5347, %v5024
  %v5473 = vmul.f32 %v5352, %v5025
  %v5474 = vmul.f32 %v5357, %v5026
  %v5475 = vmul.f32 %v5362, %v5027
  %v5476 = vmul.f32 %v5367, %v5028
  %v5477 = vmul.f32 %v5372, %v5029
  %v5478 = vmul.f32 %v5377, %v5030
  %v5479 = vmul.f32 %v5382, %v5031
  %v5480 = vmul.f32 %v5387, %v5032
  %v5481 = vmul.f32 %v5392, %v5033
  %v5482 = vmul.f32 %v5397, %v5034
  %v5483 = vmul.f32 %v5402, %v5035
  %v5484 = vmul.f32 %v5407, %v5036
  %v5485 = vmul.f32 %v5412, %v5037
  %v5486 = vmul.f32 %v5417, %v5038
  %v5487 = vmul.f32 %v5422, %v5039
  %v5488 = vadd.f32 %v5424, %v5425
  %v5489 = vadd.f32 %v5488, %v5426
  %v5490 = vadd.f32 %v5489, %v5427
  %v5491 = vadd.f32 %v5490, %v5428
  %v5492 = vadd.f32 %v5491, %v5429
  %v5493 = vadd.f32 %v5492, %v5430
  %v5494 = vadd.f32 %v5493, %v5431
  %v5495 = vadd.f32 %v5494, %v5432
  %v5496 = vadd.f32 %v5495, %v5433
  %v5497 = vadd.f32 %v5496, %v5434
  %v5498 = vadd.f32 %v5497, %v5435
  %v5499 = vadd.f32 %v5498, %v5436
  %v5500 = vadd.f32 %v5499, %v5437
  %v5501 = vadd.f32 %v5500, %v5438
  %v5502 = vadd.f32 %v5501, %v5439
  %v5503 = vadd.f32 %v5502, %v5440
  %v5504 = vadd.f32 %v5503, %v5441
  %v5505 = vadd.f32 %v5504, %v5442
  %v5506 = vadd.f32 %v5505, %v5443
  %v5507 = vadd.f32 %v5506, %v5444
  %v5508 = vadd.f32 %v5507, %v5445
  %v5509 = vadd.f32 %v5508, %v5446
  %v5510 = vadd.f32 %v5509, %v5447
  %v5511 = vadd.f32 %v5510, %v5448
  %v5512 = vadd.f32 %v5511, %v5449
  %v5513 = vadd.f32 %v5512, %v5450
  %v5514 = vadd.f32 %v5513, %v5451
  %v5515 = vadd.f32 %v5514, %v5452
  %v5516 = vadd.f32 %v5515, %v5453
  %v5517 = vadd.f32 %v5516, %v5454
  %v5518 = vadd.f32 %v5517, %v5455
  %v5519 = vadd.f32 %v5518, %v5456
  %v5520 = vadd.f32 %v5519, %v5457
  %v5521 = vadd.f32 %v5520, %v5458
  %v5522 = vadd.f32 %v5521, %v5459
  %v5523 = vadd.f32 %v5522, %v5460
  %v5524 = vadd.f32 %v5523, %v5461
  %v5525 = vadd.f32 %v5524, %v5462
  %v5526 = vadd.f32 %v5525, %v5463
  %v5527 = vadd.f32 %v5526, %v5464
  %v5528 = vadd.f32 %v5527, %v5465
  %v5529 = vadd.f32 %v5528, %v5466
  %v5530 = vadd.f32 %v5529, %v5467
  %v5531 = vadd.f32 %v5530, %v5468
  %v5532 = vadd.f32 %v5531, %v5469
  %v5533 = vadd.f32 %v5532, %v5470
  %v5534 = vadd.f32 %v5533, %v5471
  %v5535 = vadd.f32 %v5534, %v5472
  %v5536 = vadd.f32 %v5535, %v5473
  %v5537 = vadd.f32 %v5536, %v5474
  %v5538 = vadd.f32 %v5537, %v5475
  %v5539 = vadd.f32 %v5538, %v5476
  %v5540 = vadd.f32 %v5539, %v5477
  %v5541 = vadd.f32 %v5540, %v5478
  %v5542 = vadd.f32 %v5541, %v5479
  %v5543 = vadd.f32 %v5542, %v5480
  %v5544 = vadd.f32 %v5543, %v5481
  %v5545 = vadd.f32 %v5544, %v5482
  %v5546 = vadd.f32 %v5545, %v5483
  %v5547 = vadd.f32 %v5546, %v5484
  %v5548 = vadd.f32 %v5547, %v5485
  %v5549 = vadd.f32 %v5548, %v5486
  %v5550 = vadd.f32 %v5549, %v5487
  %v5551 = vrot.slane %v5550, 4
  %v5552 = vadd.f32 %v5550, %v5551
  %v5553 = vrot.slane %v5552, 2
  %v5554 = vadd.f32 %v5552, %v5553
  %v5555 = vrot.slane %v5554, 1
  %v5556 = vadd.f32 %v5554, %v5555
  %v5557 = vld [vmem:[#allocation2] sm:$0x1]
  %5559 = vset.pattern.permute.xlu0 0
  %5560 = vperm.xlu0 %5559, %v5557
  %v5561 = vpop.permute.xlu0 %5560
  %v5563 = vlaneseq
  %v5564 = vshrl.u32 %v5563, 7
  %v5565 = vsub.s32 0, %v5564
  %v5566 = vrot.slane %v5561, %v5565
  %v5567 = vadd.f32 %v5556, %v5566
  %v5568 = vxor.u32 %v5567, 2147483648
  %v5569 = vmul.f32 %v5568, 1.442695
  %v5570 = vpow.pop %v5569
  %v5571 = vadd.f32 %v5570, 1.0
  %v5572 = vrcp.pop %v5571
  %v5573 = vmul.f32 1.0, %v5572
  %5574 = vst [vmem:[%s9] sm:$0x1] %v5573
  // Predicated region
  $region38: #{discriminator_forward.1} parent=0 // pred_check
    _
  $region39: #{discriminator_forward.1} parent=0 // pred_check_branch
    %5576 = sbr.rel (0) target = $region41
  $region40: #{discriminator_forward.1} parent=0 // pred_region
    _
  $region41: #{discriminator_forward.1} parent=0 // pred_fallthru
    _
  // Predicated region
  $region42: #{discriminator_forward.1} parent=0 // pred_check
    _
  $region43: #{discriminator_forward.1} parent=0 // pred_check_branch
    %5578 = sbr.rel (0) target = $region45
  $region44: #{discriminator_forward.1} parent=0 // pred_region
    _
  $region45: #{discriminator_forward.1} parent=0 // pred_fallthru
    _

</llo_original>
